<compile_context>
chip_gen: v6e
topology: v6e:2x2x1
jax: 0.10.0
libtpu: 0.0.40
codegen_flags: <defaults>
</compile_context>

<pallas_src>
import jax
import jax.numpy as jnp
from jax import lax
from jax.experimental import pallas as pl
from jax.experimental.pallas import tpu as pltpu

_VMEM_LIMIT = 48 * 1024 * 1024  # explicit scoped-VMEM limit (fits v5e/v6e/v7x)
_VMEM_SPEC = pl.BlockSpec(memory_space=pltpu.MemorySpace.VMEM)


# ----------------------------- Pallas kernels -----------------------------

def bidir_gru_layer_kernel(x_ref, wih_ref, whh_ref, bih_ref, bhhn_ref,
                           out_ref, gi_ref):
    """One GRU layer; grid axis 0 = direction (0: forward, 1: backward in time).

    x_ref:    (T, B, Din)  f32   (shared by both directions)
    wih_ref:  (Din, 3H)    bf16  (this direction, pre-transposed)
    whh_ref:  (H, 3H)      bf16
    bih_ref:  (1, 3H)      f32   b_ih with b_hh[r,z] pre-folded in
    bhhn_ref: (1, H)       f32   b_hh of the n gate (must stay inside r*(...))
    out_ref:  (T, B, H)    f32   this direction's slab of the (2,T,B,H) output
    gi_ref:   (T, B, 3H)   f32   VMEM scratch for the hoisted input projection
    """
    d = pl.program_id(0)
    T, B, Din = x_ref.shape
    H = whh_ref.shape[0]

    # Hoisted whole-sequence input projection (one big MXU matmul; b_ih and
    # the r/z hidden biases are already folded into bih_ref).
    x2d = x_ref[...].reshape(T * B, Din).astype(jnp.bfloat16)
    gi = jnp.dot(x2d, wih_ref[...],
                 preferred_element_type=jnp.float32) + bih_ref[...]
    gi_ref[...] = gi.reshape(T, B, 3 * H)

    whh = whh_ref[...]          # hoisted out of the recurrence
    bhh_n = bhhn_ref[...]

    # Affine time index: t = t0 + sgn*s  (fwd: 0..T-1, bwd: T-1..0).
    t0 = d * (T - 1)
    sgn = 1 - 2 * d

    def step(s, h):
        t = t0 + sgn * s
        g = gi_ref[t]                                          # (B, 3H)
        gh = jnp.dot(h.astype(jnp.bfloat16), whh,
                     preferred_element_type=jnp.float32)       # (B, 3H)
        r = jax.nn.sigmoid(g[:, 0:H] + gh[:, 0:H])
        z = jax.nn.sigmoid(g[:, H:2 * H] + gh[:, H:2 * H])
        n = jnp.tanh(g[:, 2 * H:] + r * (gh[:, 2 * H:] + bhh_n))
        h_new = n + z * (h - n)                                # == (1-z)*n + z*h
        out_ref[t] = h_new
        return h_new

    lax.fori_loop(0, T, step, jnp.zeros((B, H), jnp.float32), unroll=True)


def gru_head_kernel(h01_ref, wf_ih_ref, wf_hh_ref, bf_ih_ref, bf_hhn_ref,
                    wb_ih_ref, bb_ih_ref, bb_hhn_ref, wfc_ref, bfc_ref,
                    out_ref, gi_ref):
    """Last GRU layer (both directions) + final fc, fused in one kernel.

    h01_ref: (2, T, B, H) f32  direction-major output of the previous layer
    wf_*:    forward-direction weights of the last layer (W_ih^T (2H,3H) bf16,
             W_hh^T (H,3H) bf16, folded b_ih (1,3H) f32, b_hh_n (1,H) f32)
    wb_*:    backward-direction W_ih^T (2H,3H) bf16, folded b_ih, b_hh_n
             (W_hh_bwd is not needed, see below)
    wfc_ref: (1, 2H) f32, bfc_ref: (1, 1) f32
    out_ref: (B, 1) f32
    gi_ref:  (T, B, 3H) f32 VMEM scratch
    """
    T, B, H = h01_ref.shape[1], h01_ref.shape[2], h01_ref.shape[3]

    f_in = h01_ref[0].reshape(T * B, H).astype(jnp.bfloat16)
    b_in = h01_ref[1].reshape(T * B, H).astype(jnp.bfloat16)

    # Hoisted input projection for the forward direction of the last layer:
    # concat([f, b], -1) @ W  ==  f @ W[:H] + b @ W[H:]  (no concat needed).
    gi = (jnp.dot(f_in, wf_ih_ref[0:H, :], preferred_element_type=jnp.float32)
          + jnp.dot(b_in, wf_ih_ref[H:2 * H, :],
                    preferred_element_type=jnp.float32)
          + bf_ih_ref[...])
    gi_ref[...] = gi.reshape(T, B, 3 * H)

    whh = wf_hh_ref[...]
    bhh_n = bf_hhn_ref[...]

    def fstep(t, h):
        g = gi_ref[t]
        gh = jnp.dot(h.astype(jnp.bfloat16), whh,
                     preferred_element_type=jnp.float32)
        r = jax.nn.sigmoid(g[:, 0:H] + gh[:, 0:H])
        z = jax.nn.sigmoid(g[:, H:2 * H] + gh[:, H:2 * H])
        n = jnp.tanh(g[:, 2 * H:] + r * (gh[:, 2 * H:] + bhh_n))
        return n + z * (h - n)

    h_f = lax.fori_loop(0, T, fstep, jnp.zeros((B, H), jnp.float32),
                        unroll=True)

    # Backward direction of the last layer: the module only consumes
    # output[:, -1, :], and for the reversed direction the value at t = T-1 is
    # exactly one GRU step on the t = T-1 features starting from h = 0
    # (so h @ W_hh == 0 and W_hh_bwd does not affect the result; only the
    # hidden biases survive, and the r/z parts are already folded into bb_ih).
    xf = h01_ref[0, T - 1].astype(jnp.bfloat16)      # (B, H)
    xb = h01_ref[1, T - 1].astype(jnp.bfloat16)      # (B, H)
    gib = (jnp.dot(xf, wb_ih_ref[0:H, :], preferred_element_type=jnp.float32)
           + jnp.dot(xb, wb_ih_ref[H:2 * H, :],
                     preferred_element_type=jnp.float32)
           + bb_ih_ref[...])
    rb = jax.nn.sigmoid(gib[:, 0:H])
    zb = jax.nn.sigmoid(gib[:, H:2 * H])
    nb = jnp.tanh(gib[:, 2 * H:] + rb * bb_hhn_ref[...])
    h_b = nb - zb * nb                               # (1 - z) * n   (h0 = 0)

    # TODO(synk): nn.Dropout(0.5) is identity in eval/inference mode; the
    # train-mode stochastic mask is intentionally not applied here.

    # Final linear layer (output width 1): VPU multiply + lane reduce.
    out = (jnp.sum(h_f * wfc_ref[:, 0:H], axis=1, keepdims=True)
           + jnp.sum(h_b * wfc_ref[:, H:2 * H], axis=1, keepdims=True)
           + bfc_ref[...])
    out_ref[...] = out


# ------------------------------- wrappers ---------------------------------

def _prep_dir_params(p, H):
    """PyTorch (W_ih, W_hh, b_ih, b_hh) -> (W_ih^T bf16, W_hh^T bf16,
    folded b_ih (1,3H), b_hh_n (1,H))."""
    wih = jnp.transpose(p[0], (1, 0)).astype(jnp.bfloat16)
    whh = jnp.transpose(p[1], (1, 0)).astype(jnp.bfloat16)
    bih = p[2].reshape(1, 3 * H)
    bhh = p[3].reshape(1, 3 * H)
    bih_fold = bih.at[:, :2 * H].add(bhh[:, :2 * H])   # fold r,z hidden biases
    bhh_n = bhh[:, 2 * H:]
    return wih, whh, bih_fold, bhh_n


def run_bidir_gru_layer(x_tbd, p_fwd, p_bwd):
    """x_tbd: (T, B, Din); params are PyTorch-shaped. Returns (2, T, B, H)."""
    T, B, Din = x_tbd.shape
    H = p_fwd[1].shape[1]
    wf, whf, bf, bnf = _prep_dir_params(p_fwd, H)
    wb, whb, bb, bnb = _prep_dir_params(p_bwd, H)
    wih = jnp.stack([wf, wb])               # (2, Din, 3H) bf16
    whh = jnp.stack([whf, whb])             # (2, H, 3H)   bf16
    bih = jnp.stack([bf, bb])               # (2, 1, 3H)   f32
    bhhn = jnp.stack([bnf, bnb])            # (2, 1, H)    f32
    return pl.pallas_call(
        bidir_gru_layer_kernel,
        out_shape=jax.ShapeDtypeStruct((2, T, B, H), jnp.float32),
        grid=(2,),
        in_specs=[
            pl.BlockSpec((T, B, Din), lambda d: (0, 0, 0)),
            pl.BlockSpec((None, Din, 3 * H), lambda d: (d, 0, 0)),
            pl.BlockSpec((None, H, 3 * H), lambda d: (d, 0, 0)),
            pl.BlockSpec((None, 1, 3 * H), lambda d: (d, 0, 0)),
            pl.BlockSpec((None, 1, H), lambda d: (d, 0, 0)),
        ],
        out_specs=pl.BlockSpec((None, T, B, H), lambda d: (d, 0, 0, 0)),
        scratch_shapes=[pltpu.VMEM((T, B, 3 * H), jnp.float32)],
        compiler_params=pltpu.CompilerParams(
            dimension_semantics=("parallel",),
            vmem_limit_bytes=_VMEM_LIMIT),
    )(x_tbd, wih, whh, bih, bhhn)


def run_gru_head(h_dirs, p_fwd, p_bwd, w_fc, b_fc):
    """h_dirs: (2, T, B, H). Returns (B, 1): fc(dropout(last-step bidir output))."""
    _, T, B, H = h_dirs.shape
    wf_ih, wf_hh, bf_ih, bf_hhn = _prep_dir_params(p_fwd, H)
    wb_ih, _, bb_ih, bb_hhn = _prep_dir_params(p_bwd, H)
    return pl.pallas_call(
        gru_head_kernel,
        out_shape=jax.ShapeDtypeStruct((B, 1), jnp.float32),
        in_specs=[_VMEM_SPEC] * 10,
        out_specs=_VMEM_SPEC,
        scratch_shapes=[pltpu.VMEM((T, B, 3 * H), jnp.float32)],
        compiler_params=pltpu.CompilerParams(vmem_limit_bytes=_VMEM_LIMIT),
    )(h_dirs, wf_ih, wf_hh, bf_ih, bf_hhn,
      wb_ih, bb_ih, bb_hhn, w_fc, b_fc.reshape(1, 1))


def rnn_model_forward(x, params, num_layers=2, bidirectional=True):
    """Mirrors RNNModel.forward: bi-GRU (batch_first) -> last step -> dropout -> fc.

    x: (B, T, input_dim) f32 (PyTorch batch_first). Returns (B, 1) f32.
    """
    # TODO(synk): unidirectional / single-layer head variants not implemented.
    assert bidirectional and num_layers >= 2
    x_t = jnp.transpose(x, (1, 0, 2))                   # (T, B, Din) time-major
    layer_in = x_t
    out_dirs = None
    for layer in range(num_layers - 1):
        out_dirs = run_bidir_gru_layer(
            layer_in, params[f"l{layer}_fwd"], params[f"l{layer}_bwd"])
        if layer + 1 < num_layers - 1:                  # only for 3+ layer stacks
            T, B = layer_in.shape[0], layer_in.shape[1]
            H = out_dirs.shape[-1]
            layer_in = jnp.transpose(out_dirs, (1, 2, 0, 3)).reshape(T, B, 2 * H)
    last = num_layers - 1
    return run_gru_head(out_dirs, params[f"l{last}_fwd"], params[f"l{last}_bwd"],
                        *params["fc"])


# --------------------------- parameter creation ----------------------------

def init_params(key, input_dim, hidden_dim, num_layers=2, bidirectional=True):
    """Deterministic init matching PyTorch GRU/Linear parameter shapes."""
    params = {}
    k = 1.0 / jnp.sqrt(hidden_dim)
    directions = ["fwd", "bwd"] if bidirectional else ["fwd"]
    num_dir = len(directions)
    for layer in range(num_layers):
        d_in = input_dim if layer == 0 else hidden_dim * num_dir
        for d in directions:
            key, k1, k2, k3, k4 = jax.random.split(key, 5)
            params[f"l{layer}_{d}"] = (
                jax.random.uniform(k1, (3 * hidden_dim, d_in), jnp.float32, -k, k),
                jax.random.uniform(k2, (3 * hidden_dim, hidden_dim), jnp.float32, -k, k),
                jax.random.uniform(k3, (3 * hidden_dim,), jnp.float32, -k, k),
                jax.random.uniform(k4, (3 * hidden_dim,), jnp.float32, -k, k),
            )
    fc_in = hidden_dim * num_dir
    kf = 1.0 / jnp.sqrt(fc_in)
    key, k1, k2 = jax.random.split(key, 3)
    params["fc"] = (
        jax.random.uniform(k1, (1, fc_in), jnp.float32, -kf, kf),
        jax.random.uniform(k2, (1,), jnp.float32, -kf, kf),
    )
    return params


# --------------------------------- main ------------------------------------

if __name__ == "__main__":
    B, T, INPUT_DIM, HIDDEN_DIM = 2, 8, 16, 32
    key = jax.random.PRNGKey(0)
    key, kx = jax.random.split(key)
    x = jax.random.normal(kx, (B, T, INPUT_DIM), jnp.float32)

    params = init_params(key, INPUT_DIM, HIDDEN_DIM, num_layers=2,
                         bidirectional=True)

    fwd = jax.jit(lambda xx: rnn_model_forward(xx, params, num_layers=2,
                                               bidirectional=True))
    out = jax.block_until_ready(fwd(x))
    assert out.shape == (B, 1), out.shape
    assert bool(jnp.all(jnp.isfinite(out)))
    print("KERNEL_OK")
</pallas_src>

<mosaic_0001>
module attributes {stable_mosaic.version = 11 : i64} {
  func.func @bidir_gru_layer_kernel(%arg0: i32, %arg1: memref<8x2x16xf32, #tpu.memory_space<vmem>>, %arg2: memref<1x16x96xbf16, #tpu.memory_space<vmem>>, %arg3: memref<1x32x96xbf16, #tpu.memory_space<vmem>>, %arg4: memref<1x1x96xf32, #tpu.memory_space<vmem>>, %arg5: memref<1x1x32xf32, #tpu.memory_space<vmem>>, %arg6: memref<1x8x2x32xf32, #tpu.memory_space<vmem>>, %arg7: memref<8x2x96xf32, #tpu.memory_space<vmem>>) attributes {dimension_semantics = [#tpu.dimension_semantics<parallel>], iteration_bounds = array<i64: 2>, scalar_prefetch = 0 : i64, scratch_operands = 1 : i64, tpu.core_type = #tpu.core_type<tc>, window_params = [{pipeline_mode = #tpu.pipeline_mode<synchronous>, transform_indices = @transform_0, window_bounds = array<i64: 8, 2, 16>}, {transform_indices = @transform_1, window_bounds = array<i64: 1, 16, 96>}, {transform_indices = @transform_2, window_bounds = array<i64: 1, 32, 96>}, {transform_indices = @transform_3, window_bounds = array<i64: 1, 1, 96>}, {transform_indices = @transform_4, window_bounds = array<i64: 1, 1, 32>}, {transform_indices = @transform_5, window_bounds = array<i64: 1, 8, 2, 32>}]} {
    %c0 = arith.constant 0 : index
    %c0_0 = arith.constant 0 : index
    %c0_1 = arith.constant 0 : index
    %0 = vector.load %arg1[%c0, %c0_0, %c0_1] : memref<8x2x16xf32, #tpu.memory_space<vmem>>, vector<8x2x16xf32>
    %1 = vector.shape_cast %0 : vector<8x2x16xf32> to vector<16x16xf32>
    %2 = arith.truncf %1 : vector<16x16xf32> to vector<16x16xbf16>
    %c0_2 = arith.constant 0 : index
    %c0_3 = arith.constant 0 : index
    %c0_4 = arith.constant 0 : index
    %3 = vector.load %arg2[%c0_2, %c0_3, %c0_4] : memref<1x16x96xbf16, #tpu.memory_space<vmem>>, vector<1x16x96xbf16>
    %4 = vector.shape_cast %3 : vector<1x16x96xbf16> to vector<16x96xbf16>
    %cst = arith.constant dense<0.000000e+00> : vector<16x96xf32>
    %5 = tpu.matmul %2, %4, %cst {dimension_numbers = #tpu.dot_dimension_numbers<[1], [0], [0], [1], [0, 0, 1, 1], [], []>} : vector<16x16xbf16>, vector<16x96xbf16>, vector<16x96xf32> -> vector<16x96xf32>
    %c0_5 = arith.constant 0 : index
    %c0_6 = arith.constant 0 : index
    %c0_7 = arith.constant 0 : index
    %6 = vector.load %arg4[%c0_5, %c0_6, %c0_7] : memref<1x1x96xf32, #tpu.memory_space<vmem>>, vector<1x1x96xf32>
    %7 = vector.shape_cast %6 : vector<1x1x96xf32> to vector<1x96xf32>
    %8 = vector.broadcast %7 : vector<1x96xf32> to vector<16x96xf32>
    %9 = arith.addf %5, %8 : vector<16x96xf32>
    %10 = vector.shape_cast %9 : vector<16x96xf32> to vector<8x2x96xf32>
    %c0_8 = arith.constant 0 : index
    %c0_9 = arith.constant 0 : index
    %c0_10 = arith.constant 0 : index
    %11 = vector.load %arg7[%c0_8, %c0_9, %c0_10] : memref<8x2x96xf32, #tpu.memory_space<vmem>>, vector<8x2x96xf32>
    tpu.vector_store %arg7[%c0_8, %c0_9, %c0_10], %10 {strides = array<i32>} : memref<8x2x96xf32, #tpu.memory_space<vmem>>, vector<8x2x96xf32>,
    %c0_11 = arith.constant 0 : index
    %c0_12 = arith.constant 0 : index
    %c0_13 = arith.constant 0 : index
    %12 = vector.load %arg3[%c0_11, %c0_12, %c0_13] : memref<1x32x96xbf16, #tpu.memory_space<vmem>>, vector<1x32x96xbf16>
    %13 = vector.shape_cast %12 : vector<1x32x96xbf16> to vector<32x96xbf16>
    %c0_14 = arith.constant 0 : index
    %c0_15 = arith.constant 0 : index
    %c0_16 = arith.constant 0 : index
    %14 = vector.load %arg5[%c0_14, %c0_15, %c0_16] : memref<1x1x32xf32, #tpu.memory_space<vmem>>, vector<1x1x32xf32>
    %15 = vector.shape_cast %14 : vector<1x1x32xf32> to vector<1x32xf32>
    %c7_i32 = arith.constant 7 : i32
    %16 = arith.muli %arg0, %c7_i32 : i32
    %c2_i32 = arith.constant 2 : i32
    %17 = arith.muli %c2_i32, %arg0 : i32
    %c1_i32 = arith.constant 1 : i32
    %18 = arith.subi %c1_i32, %17 : i32
    %cst_17 = arith.constant 0.000000e+00 : f32
    %19 = vector.broadcast %cst_17 : f32 to vector<2x32xf32>
    %c0_i32 = arith.constant 0 : i32
    %20 = arith.muli %18, %c0_i32 : i32
    %21 = arith.addi %16, %20 : i32
    %22 = arith.index_cast %21 : i32 to index
    %c0_18 = arith.constant 0 : index
    %c0_19 = arith.constant 0 : index
    %23 = vector.load %arg7[%22, %c0_18, %c0_19] : memref<8x2x96xf32, #tpu.memory_space<vmem>>, vector<1x2x96xf32>
    %24 = vector.shape_cast %23 : vector<1x2x96xf32> to vector<2x96xf32>
    %25 = arith.truncf %19 : vector<2x32xf32> to vector<2x32xbf16>
    %cst_20 = arith.constant dense<0.000000e+00> : vector<2x96xf32>
    %26 = tpu.matmul %25, %13, %cst_20 {dimension_numbers = #tpu.dot_dimension_numbers<[1], [0], [0], [1], [0, 0, 1, 1], [], []>} : vector<2x32xbf16>, vector<32x96xbf16>, vector<2x96xf32> -> vector<2x96xf32>
    %27 = vector.extract_strided_slice %24 {offsets = [0, 0], sizes = [2, 32], strides = [1, 1]} : vector<2x96xf32> to vector<2x32xf32>
    %28 = vector.extract_strided_slice %26 {offsets = [0, 0], sizes = [2, 32], strides = [1, 1]} : vector<2x96xf32> to vector<2x32xf32>
    %29 = arith.addf %27, %28 : vector<2x32xf32>
    %30 = arith.negf %29 : vector<2x32xf32>
    %31 = math.exp %30 : vector<2x32xf32>
    %cst_21 = arith.constant 1.000000e+00 : f32
    %32 = vector.broadcast %cst_21 : f32 to vector<2x32xf32>
    %33 = arith.addf %32, %31 : vector<2x32xf32>
    %34 = arith.divf %32, %33 : vector<2x32xf32>
    %35 = vector.extract_strided_slice %24 {offsets = [0, 32], sizes = [2, 32], strides = [1, 1]} : vector<2x96xf32> to vector<2x32xf32>
    %36 = vector.extract_strided_slice %26 {offsets = [0, 32], sizes = [2, 32], strides = [1, 1]} : vector<2x96xf32> to vector<2x32xf32>
    %37 = arith.addf %35, %36 : vector<2x32xf32>
    %38 = arith.negf %37 : vector<2x32xf32>
    %39 = math.exp %38 : vector<2x32xf32>
    %cst_22 = arith.constant 1.000000e+00 : f32
    %40 = vector.broadcast %cst_22 : f32 to vector<2x32xf32>
    %41 = arith.addf %40, %39 : vector<2x32xf32>
    %42 = arith.divf %40, %41 : vector<2x32xf32>
    %43 = vector.extract_strided_slice %24 {offsets = [0, 64], sizes = [2, 32], strides = [1, 1]} : vector<2x96xf32> to vector<2x32xf32>
    %44 = vector.extract_strided_slice %26 {offsets = [0, 64], sizes = [2, 32], strides = [1, 1]} : vector<2x96xf32> to vector<2x32xf32>
    %45 = vector.broadcast %15 : vector<1x32xf32> to vector<2x32xf32>
    %46 = arith.addf %44, %45 : vector<2x32xf32>
    %47 = arith.mulf %34, %46 : vector<2x32xf32>
    %48 = arith.addf %43, %47 : vector<2x32xf32>
    %49 = math.tanh %48 : vector<2x32xf32>
    %50 = arith.subf %19, %49 : vector<2x32xf32>
    %51 = arith.mulf %42, %50 : vector<2x32xf32>
    %52 = arith.addf %49, %51 : vector<2x32xf32>
    %c0_23 = arith.constant 0 : index
    %53 = arith.index_cast %21 : i32 to index
    %c0_24 = arith.constant 0 : index
    %c0_25 = arith.constant 0 : index
    %54 = vector.load %arg6[%c0_23, %53, %c0_24, %c0_25] : memref<1x8x2x32xf32, #tpu.memory_space<vmem>>, vector<1x1x2x32xf32>
    %55 = vector.shape_cast %54 : vector<1x1x2x32xf32> to vector<2x32xf32>
    %56 = vector.shape_cast %52 : vector<2x32xf32> to vector<1x1x2x32xf32>
    tpu.vector_store %arg6[%c0_23, %53, %c0_24, %c0_25], %56 {strides = array<i32>} : memref<1x8x2x32xf32, #tpu.memory_space<vmem>>, vector<1x1x2x32xf32>,
    %c1_i32_26 = arith.constant 1 : i32
    %57 = arith.muli %18, %c1_i32_26 : i32
    %58 = arith.addi %16, %57 : i32
    %59 = arith.index_cast %58 : i32 to index
    %c0_27 = arith.constant 0 : index
    %c0_28 = arith.constant 0 : index
    %60 = vector.load %arg7[%59, %c0_27, %c0_28] : memref<8x2x96xf32, #tpu.memory_space<vmem>>, vector<1x2x96xf32>
    %61 = vector.shape_cast %60 : vector<1x2x96xf32> to vector<2x96xf32>
    %62 = arith.truncf %52 : vector<2x32xf32> to vector<2x32xbf16>
    %cst_29 = arith.constant dense<0.000000e+00> : vector<2x96xf32>
    %63 = tpu.matmul %62, %13, %cst_29 {dimension_numbers = #tpu.dot_dimension_numbers<[1], [0], [0], [1], [0, 0, 1, 1], [], []>} : vector<2x32xbf16>, vector<32x96xbf16>, vector<2x96xf32> -> vector<2x96xf32>
    %64 = vector.extract_strided_slice %61 {offsets = [0, 0], sizes = [2, 32], strides = [1, 1]} : vector<2x96xf32> to vector<2x32xf32>
    %65 = vector.extract_strided_slice %63 {offsets = [0, 0], sizes = [2, 32], strides = [1, 1]} : vector<2x96xf32> to vector<2x32xf32>
    %66 = arith.addf %64, %65 : vector<2x32xf32>
    %67 = arith.negf %66 : vector<2x32xf32>
    %68 = math.exp %67 : vector<2x32xf32>
    %cst_30 = arith.constant 1.000000e+00 : f32
    %69 = vector.broadcast %cst_30 : f32 to vector<2x32xf32>
    %70 = arith.addf %69, %68 : vector<2x32xf32>
    %71 = arith.divf %69, %70 : vector<2x32xf32>
    %72 = vector.extract_strided_slice %61 {offsets = [0, 32], sizes = [2, 32], strides = [1, 1]} : vector<2x96xf32> to vector<2x32xf32>
    %73 = vector.extract_strided_slice %63 {offsets = [0, 32], sizes = [2, 32], strides = [1, 1]} : vector<2x96xf32> to vector<2x32xf32>
    %74 = arith.addf %72, %73 : vector<2x32xf32>
    %75 = arith.negf %74 : vector<2x32xf32>
    %76 = math.exp %75 : vector<2x32xf32>
    %cst_31 = arith.constant 1.000000e+00 : f32
    %77 = vector.broadcast %cst_31 : f32 to vector<2x32xf32>
    %78 = arith.addf %77, %76 : vector<2x32xf32>
    %79 = arith.divf %77, %78 : vector<2x32xf32>
    %80 = vector.extract_strided_slice %61 {offsets = [0, 64], sizes = [2, 32], strides = [1, 1]} : vector<2x96xf32> to vector<2x32xf32>
    %81 = vector.extract_strided_slice %63 {offsets = [0, 64], sizes = [2, 32], strides = [1, 1]} : vector<2x96xf32> to vector<2x32xf32>
    %82 = vector.broadcast %15 : vector<1x32xf32> to vector<2x32xf32>
    %83 = arith.addf %81, %82 : vector<2x32xf32>
    %84 = arith.mulf %71, %83 : vector<2x32xf32>
    %85 = arith.addf %80, %84 : vector<2x32xf32>
    %86 = math.tanh %85 : vector<2x32xf32>
    %87 = arith.subf %52, %86 : vector<2x32xf32>
    %88 = arith.mulf %79, %87 : vector<2x32xf32>
    %89 = arith.addf %86, %88 : vector<2x32xf32>
    %c0_32 = arith.constant 0 : index
    %90 = arith.index_cast %58 : i32 to index
    %c0_33 = arith.constant 0 : index
    %c0_34 = arith.constant 0 : index
    %91 = vector.load %arg6[%c0_32, %90, %c0_33, %c0_34] : memref<1x8x2x32xf32, #tpu.memory_space<vmem>>, vector<1x1x2x32xf32>
    %92 = vector.shape_cast %91 : vector<1x1x2x32xf32> to vector<2x32xf32>
    %93 = vector.shape_cast %89 : vector<2x32xf32> to vector<1x1x2x32xf32>
    tpu.vector_store %arg6[%c0_32, %90, %c0_33, %c0_34], %93 {strides = array<i32>} : memref<1x8x2x32xf32, #tpu.memory_space<vmem>>, vector<1x1x2x32xf32>,
    %c2_i32_35 = arith.constant 2 : i32
    %94 = arith.muli %18, %c2_i32_35 : i32
    %95 = arith.addi %16, %94 : i32
    %96 = arith.index_cast %95 : i32 to index
    %c0_36 = arith.constant 0 : index
    %c0_37 = arith.constant 0 : index
    %97 = vector.load %arg7[%96, %c0_36, %c0_37] : memref<8x2x96xf32, #tpu.memory_space<vmem>>, vector<1x2x96xf32>
    %98 = vector.shape_cast %97 : vector<1x2x96xf32> to vector<2x96xf32>
    %99 = arith.truncf %89 : vector<2x32xf32> to vector<2x32xbf16>
    %cst_38 = arith.constant dense<0.000000e+00> : vector<2x96xf32>
    %100 = tpu.matmul %99, %13, %cst_38 {dimension_numbers = #tpu.dot_dimension_numbers<[1], [0], [0], [1], [0, 0, 1, 1], [], []>} : vector<2x32xbf16>, vector<32x96xbf16>, vector<2x96xf32> -> vector<2x96xf32>
    %101 = vector.extract_strided_slice %98 {offsets = [0, 0], sizes = [2, 32], strides = [1, 1]} : vector<2x96xf32> to vector<2x32xf32>
    %102 = vector.extract_strided_slice %100 {offsets = [0, 0], sizes = [2, 32], strides = [1, 1]} : vector<2x96xf32> to vector<2x32xf32>
    %103 = arith.addf %101, %102 : vector<2x32xf32>
    %104 = arith.negf %103 : vector<2x32xf32>
    %105 = math.exp %104 : vector<2x32xf32>
    %cst_39 = arith.constant 1.000000e+00 : f32
    %106 = vector.broadcast %cst_39 : f32 to vector<2x32xf32>
    %107 = arith.addf %106, %105 : vector<2x32xf32>
    %108 = arith.divf %106, %107 : vector<2x32xf32>
    %109 = vector.extract_strided_slice %98 {offsets = [0, 32], sizes = [2, 32], strides = [1, 1]} : vector<2x96xf32> to vector<2x32xf32>
    %110 = vector.extract_strided_slice %100 {offsets = [0, 32], sizes = [2, 32], strides = [1, 1]} : vector<2x96xf32> to vector<2x32xf32>
    %111 = arith.addf %109, %110 : vector<2x32xf32>
    %112 = arith.negf %111 : vector<2x32xf32>
    %113 = math.exp %112 : vector<2x32xf32>
    %cst_40 = arith.constant 1.000000e+00 : f32
    %114 = vector.broadcast %cst_40 : f32 to vector<2x32xf32>
    %115 = arith.addf %114, %113 : vector<2x32xf32>
    %116 = arith.divf %114, %115 : vector<2x32xf32>
    %117 = vector.extract_strided_slice %98 {offsets = [0, 64], sizes = [2, 32], strides = [1, 1]} : vector<2x96xf32> to vector<2x32xf32>
    %118 = vector.extract_strided_slice %100 {offsets = [0, 64], sizes = [2, 32], strides = [1, 1]} : vector<2x96xf32> to vector<2x32xf32>
    %119 = vector.broadcast %15 : vector<1x32xf32> to vector<2x32xf32>
    %120 = arith.addf %118, %119 : vector<2x32xf32>
    %121 = arith.mulf %108, %120 : vector<2x32xf32>
    %122 = arith.addf %117, %121 : vector<2x32xf32>
    %123 = math.tanh %122 : vector<2x32xf32>
    %124 = arith.subf %89, %123 : vector<2x32xf32>
    %125 = arith.mulf %116, %124 : vector<2x32xf32>
    %126 = arith.addf %123, %125 : vector<2x32xf32>
    %c0_41 = arith.constant 0 : index
    %127 = arith.index_cast %95 : i32 to index
    %c0_42 = arith.constant 0 : index
    %c0_43 = arith.constant 0 : index
    %128 = vector.load %arg6[%c0_41, %127, %c0_42, %c0_43] : memref<1x8x2x32xf32, #tpu.memory_space<vmem>>, vector<1x1x2x32xf32>
    %129 = vector.shape_cast %128 : vector<1x1x2x32xf32> to vector<2x32xf32>
    %130 = vector.shape_cast %126 : vector<2x32xf32> to vector<1x1x2x32xf32>
    tpu.vector_store %arg6[%c0_41, %127, %c0_42, %c0_43], %130 {strides = array<i32>} : memref<1x8x2x32xf32, #tpu.memory_space<vmem>>, vector<1x1x2x32xf32>,
    %c3_i32 = arith.constant 3 : i32
    %131 = arith.muli %18, %c3_i32 : i32
    %132 = arith.addi %16, %131 : i32
    %133 = arith.index_cast %132 : i32 to index
    %c0_44 = arith.constant 0 : index
    %c0_45 = arith.constant 0 : index
    %134 = vector.load %arg7[%133, %c0_44, %c0_45] : memref<8x2x96xf32, #tpu.memory_space<vmem>>, vector<1x2x96xf32>
    %135 = vector.shape_cast %134 : vector<1x2x96xf32> to vector<2x96xf32>
    %136 = arith.truncf %126 : vector<2x32xf32> to vector<2x32xbf16>
    %cst_46 = arith.constant dense<0.000000e+00> : vector<2x96xf32>
    %137 = tpu.matmul %136, %13, %cst_46 {dimension_numbers = #tpu.dot_dimension_numbers<[1], [0], [0], [1], [0, 0, 1, 1], [], []>} : vector<2x32xbf16>, vector<32x96xbf16>, vector<2x96xf32> -> vector<2x96xf32>
    %138 = vector.extract_strided_slice %135 {offsets = [0, 0], sizes = [2, 32], strides = [1, 1]} : vector<2x96xf32> to vector<2x32xf32>
    %139 = vector.extract_strided_slice %137 {offsets = [0, 0], sizes = [2, 32], strides = [1, 1]} : vector<2x96xf32> to vector<2x32xf32>
    %140 = arith.addf %138, %139 : vector<2x32xf32>
    %141 = arith.negf %140 : vector<2x32xf32>
    %142 = math.exp %141 : vector<2x32xf32>
    %cst_47 = arith.constant 1.000000e+00 : f32
    %143 = vector.broadcast %cst_47 : f32 to vector<2x32xf32>
    %144 = arith.addf %143, %142 : vector<2x32xf32>
    %145 = arith.divf %143, %144 : vector<2x32xf32>
    %146 = vector.extract_strided_slice %135 {offsets = [0, 32], sizes = [2, 32], strides = [1, 1]} : vector<2x96xf32> to vector<2x32xf32>
    %147 = vector.extract_strided_slice %137 {offsets = [0, 32], sizes = [2, 32], strides = [1, 1]} : vector<2x96xf32> to vector<2x32xf32>
    %148 = arith.addf %146, %147 : vector<2x32xf32>
    %149 = arith.negf %148 : vector<2x32xf32>
    %150 = math.exp %149 : vector<2x32xf32>
    %cst_48 = arith.constant 1.000000e+00 : f32
    %151 = vector.broadcast %cst_48 : f32 to vector<2x32xf32>
    %152 = arith.addf %151, %150 : vector<2x32xf32>
    %153 = arith.divf %151, %152 : vector<2x32xf32>
    %154 = vector.extract_strided_slice %135 {offsets = [0, 64], sizes = [2, 32], strides = [1, 1]} : vector<2x96xf32> to vector<2x32xf32>
    %155 = vector.extract_strided_slice %137 {offsets = [0, 64], sizes = [2, 32], strides = [1, 1]} : vector<2x96xf32> to vector<2x32xf32>
    %156 = vector.broadcast %15 : vector<1x32xf32> to vector<2x32xf32>
    %157 = arith.addf %155, %156 : vector<2x32xf32>
    %158 = arith.mulf %145, %157 : vector<2x32xf32>
    %159 = arith.addf %154, %158 : vector<2x32xf32>
    %160 = math.tanh %159 : vector<2x32xf32>
    %161 = arith.subf %126, %160 : vector<2x32xf32>
    %162 = arith.mulf %153, %161 : vector<2x32xf32>
    %163 = arith.addf %160, %162 : vector<2x32xf32>
    %c0_49 = arith.constant 0 : index
    %164 = arith.index_cast %132 : i32 to index
    %c0_50 = arith.constant 0 : index
    %c0_51 = arith.constant 0 : index
    %165 = vector.load %arg6[%c0_49, %164, %c0_50, %c0_51] : memref<1x8x2x32xf32, #tpu.memory_space<vmem>>, vector<1x1x2x32xf32>
    %166 = vector.shape_cast %165 : vector<1x1x2x32xf32> to vector<2x32xf32>
    %167 = vector.shape_cast %163 : vector<2x32xf32> to vector<1x1x2x32xf32>
    tpu.vector_store %arg6[%c0_49, %164, %c0_50, %c0_51], %167 {strides = array<i32>} : memref<1x8x2x32xf32, #tpu.memory_space<vmem>>, vector<1x1x2x32xf32>,
    %c4_i32 = arith.constant 4 : i32
    %168 = arith.muli %18, %c4_i32 : i32
    %169 = arith.addi %16, %168 : i32
    %170 = arith.index_cast %169 : i32 to index
    %c0_52 = arith.constant 0 : index
    %c0_53 = arith.constant 0 : index
    %171 = vector.load %arg7[%170, %c0_52, %c0_53] : memref<8x2x96xf32, #tpu.memory_space<vmem>>, vector<1x2x96xf32>
    %172 = vector.shape_cast %171 : vector<1x2x96xf32> to vector<2x96xf32>
    %173 = arith.truncf %163 : vector<2x32xf32> to vector<2x32xbf16>
    %cst_54 = arith.constant dense<0.000000e+00> : vector<2x96xf32>
    %174 = tpu.matmul %173, %13, %cst_54 {dimension_numbers = #tpu.dot_dimension_numbers<[1], [0], [0], [1], [0, 0, 1, 1], [], []>} : vector<2x32xbf16>, vector<32x96xbf16>, vector<2x96xf32> -> vector<2x96xf32>
    %175 = vector.extract_strided_slice %172 {offsets = [0, 0], sizes = [2, 32], strides = [1, 1]} : vector<2x96xf32> to vector<2x32xf32>
    %176 = vector.extract_strided_slice %174 {offsets = [0, 0], sizes = [2, 32], strides = [1, 1]} : vector<2x96xf32> to vector<2x32xf32>
    %177 = arith.addf %175, %176 : vector<2x32xf32>
    %178 = arith.negf %177 : vector<2x32xf32>
    %179 = math.exp %178 : vector<2x32xf32>
    %cst_55 = arith.constant 1.000000e+00 : f32
    %180 = vector.broadcast %cst_55 : f32 to vector<2x32xf32>
    %181 = arith.addf %180, %179 : vector<2x32xf32>
    %182 = arith.divf %180, %181 : vector<2x32xf32>
    %183 = vector.extract_strided_slice %172 {offsets = [0, 32], sizes = [2, 32], strides = [1, 1]} : vector<2x96xf32> to vector<2x32xf32>
    %184 = vector.extract_strided_slice %174 {offsets = [0, 32], sizes = [2, 32], strides = [1, 1]} : vector<2x96xf32> to vector<2x32xf32>
    %185 = arith.addf %183, %184 : vector<2x32xf32>
    %186 = arith.negf %185 : vector<2x32xf32>
    %187 = math.exp %186 : vector<2x32xf32>
    %cst_56 = arith.constant 1.000000e+00 : f32
    %188 = vector.broadcast %cst_56 : f32 to vector<2x32xf32>
    %189 = arith.addf %188, %187 : vector<2x32xf32>
    %190 = arith.divf %188, %189 : vector<2x32xf32>
    %191 = vector.extract_strided_slice %172 {offsets = [0, 64], sizes = [2, 32], strides = [1, 1]} : vector<2x96xf32> to vector<2x32xf32>
    %192 = vector.extract_strided_slice %174 {offsets = [0, 64], sizes = [2, 32], strides = [1, 1]} : vector<2x96xf32> to vector<2x32xf32>
    %193 = vector.broadcast %15 : vector<1x32xf32> to vector<2x32xf32>
    %194 = arith.addf %192, %193 : vector<2x32xf32>
    %195 = arith.mulf %182, %194 : vector<2x32xf32>
    %196 = arith.addf %191, %195 : vector<2x32xf32>
    %197 = math.tanh %196 : vector<2x32xf32>
    %198 = arith.subf %163, %197 : vector<2x32xf32>
    %199 = arith.mulf %190, %198 : vector<2x32xf32>
    %200 = arith.addf %197, %199 : vector<2x32xf32>
    %c0_57 = arith.constant 0 : index
    %201 = arith.index_cast %169 : i32 to index
    %c0_58 = arith.constant 0 : index
    %c0_59 = arith.constant 0 : index
    %202 = vector.load %arg6[%c0_57, %201, %c0_58, %c0_59] : memref<1x8x2x32xf32, #tpu.memory_space<vmem>>, vector<1x1x2x32xf32>
    %203 = vector.shape_cast %202 : vector<1x1x2x32xf32> to vector<2x32xf32>
    %204 = vector.shape_cast %200 : vector<2x32xf32> to vector<1x1x2x32xf32>
    tpu.vector_store %arg6[%c0_57, %201, %c0_58, %c0_59], %204 {strides = array<i32>} : memref<1x8x2x32xf32, #tpu.memory_space<vmem>>, vector<1x1x2x32xf32>,
    %c5_i32 = arith.constant 5 : i32
    %205 = arith.muli %18, %c5_i32 : i32
    %206 = arith.addi %16, %205 : i32
    %207 = arith.index_cast %206 : i32 to index
    %c0_60 = arith.constant 0 : index
    %c0_61 = arith.constant 0 : index
    %208 = vector.load %arg7[%207, %c0_60, %c0_61] : memref<8x2x96xf32, #tpu.memory_space<vmem>>, vector<1x2x96xf32>
    %209 = vector.shape_cast %208 : vector<1x2x96xf32> to vector<2x96xf32>
    %210 = arith.truncf %200 : vector<2x32xf32> to vector<2x32xbf16>
    %cst_62 = arith.constant dense<0.000000e+00> : vector<2x96xf32>
    %211 = tpu.matmul %210, %13, %cst_62 {dimension_numbers = #tpu.dot_dimension_numbers<[1], [0], [0], [1], [0, 0, 1, 1], [], []>} : vector<2x32xbf16>, vector<32x96xbf16>, vector<2x96xf32> -> vector<2x96xf32>
    %212 = vector.extract_strided_slice %209 {offsets = [0, 0], sizes = [2, 32], strides = [1, 1]} : vector<2x96xf32> to vector<2x32xf32>
    %213 = vector.extract_strided_slice %211 {offsets = [0, 0], sizes = [2, 32], strides = [1, 1]} : vector<2x96xf32> to vector<2x32xf32>
    %214 = arith.addf %212, %213 : vector<2x32xf32>
    %215 = arith.negf %214 : vector<2x32xf32>
    %216 = math.exp %215 : vector<2x32xf32>
    %cst_63 = arith.constant 1.000000e+00 : f32
    %217 = vector.broadcast %cst_63 : f32 to vector<2x32xf32>
    %218 = arith.addf %217, %216 : vector<2x32xf32>
    %219 = arith.divf %217, %218 : vector<2x32xf32>
    %220 = vector.extract_strided_slice %209 {offsets = [0, 32], sizes = [2, 32], strides = [1, 1]} : vector<2x96xf32> to vector<2x32xf32>
    %221 = vector.extract_strided_slice %211 {offsets = [0, 32], sizes = [2, 32], strides = [1, 1]} : vector<2x96xf32> to vector<2x32xf32>
    %222 = arith.addf %220, %221 : vector<2x32xf32>
    %223 = arith.negf %222 : vector<2x32xf32>
    %224 = math.exp %223 : vector<2x32xf32>
    %cst_64 = arith.constant 1.000000e+00 : f32
    %225 = vector.broadcast %cst_64 : f32 to vector<2x32xf32>
    %226 = arith.addf %225, %224 : vector<2x32xf32>
    %227 = arith.divf %225, %226 : vector<2x32xf32>
    %228 = vector.extract_strided_slice %209 {offsets = [0, 64], sizes = [2, 32], strides = [1, 1]} : vector<2x96xf32> to vector<2x32xf32>
    %229 = vector.extract_strided_slice %211 {offsets = [0, 64], sizes = [2, 32], strides = [1, 1]} : vector<2x96xf32> to vector<2x32xf32>
    %230 = vector.broadcast %15 : vector<1x32xf32> to vector<2x32xf32>
    %231 = arith.addf %229, %230 : vector<2x32xf32>
    %232 = arith.mulf %219, %231 : vector<2x32xf32>
    %233 = arith.addf %228, %232 : vector<2x32xf32>
    %234 = math.tanh %233 : vector<2x32xf32>
    %235 = arith.subf %200, %234 : vector<2x32xf32>
    %236 = arith.mulf %227, %235 : vector<2x32xf32>
    %237 = arith.addf %234, %236 : vector<2x32xf32>
    %c0_65 = arith.constant 0 : index
    %238 = arith.index_cast %206 : i32 to index
    %c0_66 = arith.constant 0 : index
    %c0_67 = arith.constant 0 : index
    %239 = vector.load %arg6[%c0_65, %238, %c0_66, %c0_67] : memref<1x8x2x32xf32, #tpu.memory_space<vmem>>, vector<1x1x2x32xf32>
    %240 = vector.shape_cast %239 : vector<1x1x2x32xf32> to vector<2x32xf32>
    %241 = vector.shape_cast %237 : vector<2x32xf32> to vector<1x1x2x32xf32>
    tpu.vector_store %arg6[%c0_65, %238, %c0_66, %c0_67], %241 {strides = array<i32>} : memref<1x8x2x32xf32, #tpu.memory_space<vmem>>, vector<1x1x2x32xf32>,
    %c6_i32 = arith.constant 6 : i32
    %242 = arith.muli %18, %c6_i32 : i32
    %243 = arith.addi %16, %242 : i32
    %244 = arith.index_cast %243 : i32 to index
    %c0_68 = arith.constant 0 : index
    %c0_69 = arith.constant 0 : index
    %245 = vector.load %arg7[%244, %c0_68, %c0_69] : memref<8x2x96xf32, #tpu.memory_space<vmem>>, vector<1x2x96xf32>
    %246 = vector.shape_cast %245 : vector<1x2x96xf32> to vector<2x96xf32>
    %247 = arith.truncf %237 : vector<2x32xf32> to vector<2x32xbf16>
    %cst_70 = arith.constant dense<0.000000e+00> : vector<2x96xf32>
    %248 = tpu.matmul %247, %13, %cst_70 {dimension_numbers = #tpu.dot_dimension_numbers<[1], [0], [0], [1], [0, 0, 1, 1], [], []>} : vector<2x32xbf16>, vector<32x96xbf16>, vector<2x96xf32> -> vector<2x96xf32>
    %249 = vector.extract_strided_slice %246 {offsets = [0, 0], sizes = [2, 32], strides = [1, 1]} : vector<2x96xf32> to vector<2x32xf32>
    %250 = vector.extract_strided_slice %248 {offsets = [0, 0], sizes = [2, 32], strides = [1, 1]} : vector<2x96xf32> to vector<2x32xf32>
    %251 = arith.addf %249, %250 : vector<2x32xf32>
    %252 = arith.negf %251 : vector<2x32xf32>
    %253 = math.exp %252 : vector<2x32xf32>
    %cst_71 = arith.constant 1.000000e+00 : f32
    %254 = vector.broadcast %cst_71 : f32 to vector<2x32xf32>
    %255 = arith.addf %254, %253 : vector<2x32xf32>
    %256 = arith.divf %254, %255 : vector<2x32xf32>
    %257 = vector.extract_strided_slice %246 {offsets = [0, 32], sizes = [2, 32], strides = [1, 1]} : vector<2x96xf32> to vector<2x32xf32>
    %258 = vector.extract_strided_slice %248 {offsets = [0, 32], sizes = [2, 32], strides = [1, 1]} : vector<2x96xf32> to vector<2x32xf32>
    %259 = arith.addf %257, %258 : vector<2x32xf32>
    %260 = arith.negf %259 : vector<2x32xf32>
    %261 = math.exp %260 : vector<2x32xf32>
    %cst_72 = arith.constant 1.000000e+00 : f32
    %262 = vector.broadcast %cst_72 : f32 to vector<2x32xf32>
    %263 = arith.addf %262, %261 : vector<2x32xf32>
    %264 = arith.divf %262, %263 : vector<2x32xf32>
    %265 = vector.extract_strided_slice %246 {offsets = [0, 64], sizes = [2, 32], strides = [1, 1]} : vector<2x96xf32> to vector<2x32xf32>
    %266 = vector.extract_strided_slice %248 {offsets = [0, 64], sizes = [2, 32], strides = [1, 1]} : vector<2x96xf32> to vector<2x32xf32>
    %267 = vector.broadcast %15 : vector<1x32xf32> to vector<2x32xf32>
    %268 = arith.addf %266, %267 : vector<2x32xf32>
    %269 = arith.mulf %256, %268 : vector<2x32xf32>
    %270 = arith.addf %265, %269 : vector<2x32xf32>
    %271 = math.tanh %270 : vector<2x32xf32>
    %272 = arith.subf %237, %271 : vector<2x32xf32>
    %273 = arith.mulf %264, %272 : vector<2x32xf32>
    %274 = arith.addf %271, %273 : vector<2x32xf32>
    %c0_73 = arith.constant 0 : index
    %275 = arith.index_cast %243 : i32 to index
    %c0_74 = arith.constant 0 : index
    %c0_75 = arith.constant 0 : index
    %276 = vector.load %arg6[%c0_73, %275, %c0_74, %c0_75] : memref<1x8x2x32xf32, #tpu.memory_space<vmem>>, vector<1x1x2x32xf32>
    %277 = vector.shape_cast %276 : vector<1x1x2x32xf32> to vector<2x32xf32>
    %278 = vector.shape_cast %274 : vector<2x32xf32> to vector<1x1x2x32xf32>
    tpu.vector_store %arg6[%c0_73, %275, %c0_74, %c0_75], %278 {strides = array<i32>} : memref<1x8x2x32xf32, #tpu.memory_space<vmem>>, vector<1x1x2x32xf32>,
    %c7_i32_76 = arith.constant 7 : i32
    %279 = arith.muli %18, %c7_i32_76 : i32
    %280 = arith.addi %16, %279 : i32
    %281 = arith.index_cast %280 : i32 to index
    %c0_77 = arith.constant 0 : index
    %c0_78 = arith.constant 0 : index
    %282 = vector.load %arg7[%281, %c0_77, %c0_78] : memref<8x2x96xf32, #tpu.memory_space<vmem>>, vector<1x2x96xf32>
    %283 = vector.shape_cast %282 : vector<1x2x96xf32> to vector<2x96xf32>
    %284 = arith.truncf %274 : vector<2x32xf32> to vector<2x32xbf16>
    %cst_79 = arith.constant dense<0.000000e+00> : vector<2x96xf32>
    %285 = tpu.matmul %284, %13, %cst_79 {dimension_numbers = #tpu.dot_dimension_numbers<[1], [0], [0], [1], [0, 0, 1, 1], [], []>} : vector<2x32xbf16>, vector<32x96xbf16>, vector<2x96xf32> -> vector<2x96xf32>
    %286 = vector.extract_strided_slice %283 {offsets = [0, 0], sizes = [2, 32], strides = [1, 1]} : vector<2x96xf32> to vector<2x32xf32>
    %287 = vector.extract_strided_slice %285 {offsets = [0, 0], sizes = [2, 32], strides = [1, 1]} : vector<2x96xf32> to vector<2x32xf32>
    %288 = arith.addf %286, %287 : vector<2x32xf32>
    %289 = arith.negf %288 : vector<2x32xf32>
    %290 = math.exp %289 : vector<2x32xf32>
    %cst_80 = arith.constant 1.000000e+00 : f32
    %291 = vector.broadcast %cst_80 : f32 to vector<2x32xf32>
    %292 = arith.addf %291, %290 : vector<2x32xf32>
    %293 = arith.divf %291, %292 : vector<2x32xf32>
    %294 = vector.extract_strided_slice %283 {offsets = [0, 32], sizes = [2, 32], strides = [1, 1]} : vector<2x96xf32> to vector<2x32xf32>
    %295 = vector.extract_strided_slice %285 {offsets = [0, 32], sizes = [2, 32], strides = [1, 1]} : vector<2x96xf32> to vector<2x32xf32>
    %296 = arith.addf %294, %295 : vector<2x32xf32>
    %297 = arith.negf %296 : vector<2x32xf32>
    %298 = math.exp %297 : vector<2x32xf32>
    %cst_81 = arith.constant 1.000000e+00 : f32
    %299 = vector.broadcast %cst_81 : f32 to vector<2x32xf32>
    %300 = arith.addf %299, %298 : vector<2x32xf32>
    %301 = arith.divf %299, %300 : vector<2x32xf32>
    %302 = vector.extract_strided_slice %283 {offsets = [0, 64], sizes = [2, 32], strides = [1, 1]} : vector<2x96xf32> to vector<2x32xf32>
    %303 = vector.extract_strided_slice %285 {offsets = [0, 64], sizes = [2, 32], strides = [1, 1]} : vector<2x96xf32> to vector<2x32xf32>
    %304 = vector.broadcast %15 : vector<1x32xf32> to vector<2x32xf32>
    %305 = arith.addf %303, %304 : vector<2x32xf32>
    %306 = arith.mulf %293, %305 : vector<2x32xf32>
    %307 = arith.addf %302, %306 : vector<2x32xf32>
    %308 = math.tanh %307 : vector<2x32xf32>
    %309 = arith.subf %274, %308 : vector<2x32xf32>
    %310 = arith.mulf %301, %309 : vector<2x32xf32>
    %311 = arith.addf %308, %310 : vector<2x32xf32>
    %c0_82 = arith.constant 0 : index
    %312 = arith.index_cast %280 : i32 to index
    %c0_83 = arith.constant 0 : index
    %c0_84 = arith.constant 0 : index
    %313 = vector.load %arg6[%c0_82, %312, %c0_83, %c0_84] : memref<1x8x2x32xf32, #tpu.memory_space<vmem>>, vector<1x1x2x32xf32>
    %314 = vector.shape_cast %313 : vector<1x1x2x32xf32> to vector<2x32xf32>
    %315 = vector.shape_cast %311 : vector<2x32xf32> to vector<1x1x2x32xf32>
    tpu.vector_store %arg6[%c0_82, %312, %c0_83, %c0_84], %315 {strides = array<i32>} : memref<1x8x2x32xf32, #tpu.memory_space<vmem>>, vector<1x1x2x32xf32>,
    %c8_i32 = arith.constant 8 : i32
    return
  }
  func.func @transform_0(%arg0: i32) -> (i32, i32, i32) {
    %c0_i32 = arith.constant 0 : i32
    %c0_i32_0 = arith.constant 0 : i32
    %c0_i32_1 = arith.constant 0 : i32
    %c0_i32_2 = arith.constant 0 : i32
    return %c0_i32, %c0_i32_0, %c0_i32_1 : i32, i32, i32
  }
  func.func @transform_1(%arg0: i32) -> (i32, i32, i32) {
    %c0_i32 = arith.constant 0 : i32
    %c0_i32_0 = arith.constant 0 : i32
    %c0_i32_1 = arith.constant 0 : i32
    return %arg0, %c0_i32, %c0_i32_0 : i32, i32, i32
  }
  func.func @transform_2(%arg0: i32) -> (i32, i32, i32) {
    %c0_i32 = arith.constant 0 : i32
    %c0_i32_0 = arith.constant 0 : i32
    %c0_i32_1 = arith.constant 0 : i32
    return %arg0, %c0_i32, %c0_i32_0 : i32, i32, i32
  }
  func.func @transform_3(%arg0: i32) -> (i32, i32, i32) {
    %c0_i32 = arith.constant 0 : i32
    %c0_i32_0 = arith.constant 0 : i32
    %c0_i32_1 = arith.constant 0 : i32
    return %arg0, %c0_i32, %c0_i32_0 : i32, i32, i32
  }
  func.func @transform_4(%arg0: i32) -> (i32, i32, i32) {
    %c0_i32 = arith.constant 0 : i32
    %c0_i32_0 = arith.constant 0 : i32
    %c0_i32_1 = arith.constant 0 : i32
    return %arg0, %c0_i32, %c0_i32_0 : i32, i32, i32
  }
  func.func @transform_5(%arg0: i32) -> (i32, i32, i32, i32) {
    %c0_i32 = arith.constant 0 : i32
    %c0_i32_0 = arith.constant 0 : i32
    %c0_i32_1 = arith.constant 0 : i32
    %c0_i32_2 = arith.constant 0 : i32
    return %arg0, %c0_i32, %c0_i32_0, %c0_i32_1 : i32, i32, i32, i32
  }
}

module attributes {stable_mosaic.version = 11 : i64} {
  func.func @gru_head_kernel(%arg0: memref<2x8x2x32xf32, #tpu.memory_space<vmem>>, %arg1: memref<64x96xbf16, #tpu.memory_space<vmem>>, %arg2: memref<32x96xbf16, #tpu.memory_space<vmem>>, %arg3: memref<1x96xf32, #tpu.memory_space<vmem>>, %arg4: memref<1x32xf32, #tpu.memory_space<vmem>>, %arg5: memref<64x96xbf16, #tpu.memory_space<vmem>>, %arg6: memref<1x96xf32, #tpu.memory_space<vmem>>, %arg7: memref<1x32xf32, #tpu.memory_space<vmem>>, %arg8: memref<1x64xf32, #tpu.memory_space<vmem>>, %arg9: memref<1x1xf32, #tpu.memory_space<vmem>>, %arg10: memref<2x1xf32, #tpu.memory_space<vmem>>, %arg11: memref<8x2x96xf32, #tpu.memory_space<vmem>>) attributes {dimension_semantics = [], scalar_prefetch = 0 : i64, scratch_operands = 1 : i64, tpu.core_type = #tpu.core_type<tc>} {
    %c0 = arith.constant 0 : index
    %c0_0 = arith.constant 0 : index
    %c0_1 = arith.constant 0 : index
    %c0_2 = arith.constant 0 : index
    %0 = vector.load %arg0[%c0, %c0_0, %c0_1, %c0_2] : memref<2x8x2x32xf32, #tpu.memory_space<vmem>>, vector<1x8x2x32xf32>
    %1 = vector.shape_cast %0 : vector<1x8x2x32xf32> to vector<8x2x32xf32>
    %2 = vector.shape_cast %1 : vector<8x2x32xf32> to vector<16x32xf32>
    %3 = arith.truncf %2 : vector<16x32xf32> to vector<16x32xbf16>
    %c1 = arith.constant 1 : index
    %c0_3 = arith.constant 0 : index
    %c0_4 = arith.constant 0 : index
    %c0_5 = arith.constant 0 : index
    %4 = vector.load %arg0[%c1, %c0_3, %c0_4, %c0_5] : memref<2x8x2x32xf32, #tpu.memory_space<vmem>>, vector<1x8x2x32xf32>
    %5 = vector.shape_cast %4 : vector<1x8x2x32xf32> to vector<8x2x32xf32>
    %6 = vector.shape_cast %5 : vector<8x2x32xf32> to vector<16x32xf32>
    %7 = arith.truncf %6 : vector<16x32xf32> to vector<16x32xbf16>
    %c0_6 = arith.constant 0 : index
    %c0_7 = arith.constant 0 : index
    %8 = vector.load %arg1[%c0_6, %c0_7] : memref<64x96xbf16, #tpu.memory_space<vmem>>, vector<32x96xbf16>
    %cst = arith.constant dense<0.000000e+00> : vector<16x96xf32>
    %9 = tpu.matmul %3, %8, %cst {dimension_numbers = #tpu.dot_dimension_numbers<[1], [0], [0], [1], [0, 0, 1, 1], [], []>} : vector<16x32xbf16>, vector<32x96xbf16>, vector<16x96xf32> -> vector<16x96xf32>
    %c32 = arith.constant 32 : index
    %c0_8 = arith.constant 0 : index
    %10 = vector.load %arg1[%c32, %c0_8] : memref<64x96xbf16, #tpu.memory_space<vmem>>, vector<32x96xbf16>
    %cst_9 = arith.constant dense<0.000000e+00> : vector<16x96xf32>
    %11 = tpu.matmul %7, %10, %cst_9 {dimension_numbers = #tpu.dot_dimension_numbers<[1], [0], [0], [1], [0, 0, 1, 1], [], []>} : vector<16x32xbf16>, vector<32x96xbf16>, vector<16x96xf32> -> vector<16x96xf32>
    %12 = arith.addf %9, %11 : vector<16x96xf32>
    %c0_10 = arith.constant 0 : index
    %c0_11 = arith.constant 0 : index
    %13 = vector.load %arg3[%c0_10, %c0_11] : memref<1x96xf32, #tpu.memory_space<vmem>>, vector<1x96xf32>
    %14 = vector.broadcast %13 : vector<1x96xf32> to vector<16x96xf32>
    %15 = arith.addf %12, %14 : vector<16x96xf32>
    %16 = vector.shape_cast %15 : vector<16x96xf32> to vector<8x2x96xf32>
    %c0_12 = arith.constant 0 : index
    %c0_13 = arith.constant 0 : index
    %c0_14 = arith.constant 0 : index
    %17 = vector.load %arg11[%c0_12, %c0_13, %c0_14] : memref<8x2x96xf32, #tpu.memory_space<vmem>>, vector<8x2x96xf32>
    tpu.vector_store %arg11[%c0_12, %c0_13, %c0_14], %16 {strides = array<i32>} : memref<8x2x96xf32, #tpu.memory_space<vmem>>, vector<8x2x96xf32>,
    %c0_15 = arith.constant 0 : index
    %c0_16 = arith.constant 0 : index
    %18 = vector.load %arg2[%c0_15, %c0_16] : memref<32x96xbf16, #tpu.memory_space<vmem>>, vector<32x96xbf16>
    %c0_17 = arith.constant 0 : index
    %c0_18 = arith.constant 0 : index
    %19 = vector.load %arg4[%c0_17, %c0_18] : memref<1x32xf32, #tpu.memory_space<vmem>>, vector<1x32xf32>
    %cst_19 = arith.constant 0.000000e+00 : f32
    %20 = vector.broadcast %cst_19 : f32 to vector<2x32xf32>
    %c0_i32 = arith.constant 0 : i32
    %21 = arith.index_cast %c0_i32 : i32 to index
    %c0_20 = arith.constant 0 : index
    %c0_21 = arith.constant 0 : index
    %22 = vector.load %arg11[%21, %c0_20, %c0_21] : memref<8x2x96xf32, #tpu.memory_space<vmem>>, vector<1x2x96xf32>
    %23 = vector.shape_cast %22 : vector<1x2x96xf32> to vector<2x96xf32>
    %24 = arith.truncf %20 : vector<2x32xf32> to vector<2x32xbf16>
    %cst_22 = arith.constant dense<0.000000e+00> : vector<2x96xf32>
    %25 = tpu.matmul %24, %18, %cst_22 {dimension_numbers = #tpu.dot_dimension_numbers<[1], [0], [0], [1], [0, 0, 1, 1], [], []>} : vector<2x32xbf16>, vector<32x96xbf16>, vector<2x96xf32> -> vector<2x96xf32>
    %26 = vector.extract_strided_slice %23 {offsets = [0, 0], sizes = [2, 32], strides = [1, 1]} : vector<2x96xf32> to vector<2x32xf32>
    %27 = vector.extract_strided_slice %25 {offsets = [0, 0], sizes = [2, 32], strides = [1, 1]} : vector<2x96xf32> to vector<2x32xf32>
    %28 = arith.addf %26, %27 : vector<2x32xf32>
    %29 = arith.negf %28 : vector<2x32xf32>
    %30 = math.exp %29 : vector<2x32xf32>
    %cst_23 = arith.constant 1.000000e+00 : f32
    %31 = vector.broadcast %cst_23 : f32 to vector<2x32xf32>
    %32 = arith.addf %31, %30 : vector<2x32xf32>
    %33 = arith.divf %31, %32 : vector<2x32xf32>
    %34 = vector.extract_strided_slice %23 {offsets = [0, 32], sizes = [2, 32], strides = [1, 1]} : vector<2x96xf32> to vector<2x32xf32>
    %35 = vector.extract_strided_slice %25 {offsets = [0, 32], sizes = [2, 32], strides = [1, 1]} : vector<2x96xf32> to vector<2x32xf32>
    %36 = arith.addf %34, %35 : vector<2x32xf32>
    %37 = arith.negf %36 : vector<2x32xf32>
    %38 = math.exp %37 : vector<2x32xf32>
    %cst_24 = arith.constant 1.000000e+00 : f32
    %39 = vector.broadcast %cst_24 : f32 to vector<2x32xf32>
    %40 = arith.addf %39, %38 : vector<2x32xf32>
    %41 = arith.divf %39, %40 : vector<2x32xf32>
    %42 = vector.extract_strided_slice %23 {offsets = [0, 64], sizes = [2, 32], strides = [1, 1]} : vector<2x96xf32> to vector<2x32xf32>
    %43 = vector.extract_strided_slice %25 {offsets = [0, 64], sizes = [2, 32], strides = [1, 1]} : vector<2x96xf32> to vector<2x32xf32>
    %44 = vector.broadcast %19 : vector<1x32xf32> to vector<2x32xf32>
    %45 = arith.addf %43, %44 : vector<2x32xf32>
    %46 = arith.mulf %33, %45 : vector<2x32xf32>
    %47 = arith.addf %42, %46 : vector<2x32xf32>
    %48 = math.tanh %47 : vector<2x32xf32>
    %49 = arith.subf %20, %48 : vector<2x32xf32>
    %50 = arith.mulf %41, %49 : vector<2x32xf32>
    %51 = arith.addf %48, %50 : vector<2x32xf32>
    %c1_i32 = arith.constant 1 : i32
    %52 = arith.index_cast %c1_i32 : i32 to index
    %c0_25 = arith.constant 0 : index
    %c0_26 = arith.constant 0 : index
    %53 = vector.load %arg11[%52, %c0_25, %c0_26] : memref<8x2x96xf32, #tpu.memory_space<vmem>>, vector<1x2x96xf32>
    %54 = vector.shape_cast %53 : vector<1x2x96xf32> to vector<2x96xf32>
    %55 = arith.truncf %51 : vector<2x32xf32> to vector<2x32xbf16>
    %cst_27 = arith.constant dense<0.000000e+00> : vector<2x96xf32>
    %56 = tpu.matmul %55, %18, %cst_27 {dimension_numbers = #tpu.dot_dimension_numbers<[1], [0], [0], [1], [0, 0, 1, 1], [], []>} : vector<2x32xbf16>, vector<32x96xbf16>, vector<2x96xf32> -> vector<2x96xf32>
    %57 = vector.extract_strided_slice %54 {offsets = [0, 0], sizes = [2, 32], strides = [1, 1]} : vector<2x96xf32> to vector<2x32xf32>
    %58 = vector.extract_strided_slice %56 {offsets = [0, 0], sizes = [2, 32], strides = [1, 1]} : vector<2x96xf32> to vector<2x32xf32>
    %59 = arith.addf %57, %58 : vector<2x32xf32>
    %60 = arith.negf %59 : vector<2x32xf32>
    %61 = math.exp %60 : vector<2x32xf32>
    %cst_28 = arith.constant 1.000000e+00 : f32
    %62 = vector.broadcast %cst_28 : f32 to vector<2x32xf32>
    %63 = arith.addf %62, %61 : vector<2x32xf32>
    %64 = arith.divf %62, %63 : vector<2x32xf32>
    %65 = vector.extract_strided_slice %54 {offsets = [0, 32], sizes = [2, 32], strides = [1, 1]} : vector<2x96xf32> to vector<2x32xf32>
    %66 = vector.extract_strided_slice %56 {offsets = [0, 32], sizes = [2, 32], strides = [1, 1]} : vector<2x96xf32> to vector<2x32xf32>
    %67 = arith.addf %65, %66 : vector<2x32xf32>
    %68 = arith.negf %67 : vector<2x32xf32>
    %69 = math.exp %68 : vector<2x32xf32>
    %cst_29 = arith.constant 1.000000e+00 : f32
    %70 = vector.broadcast %cst_29 : f32 to vector<2x32xf32>
    %71 = arith.addf %70, %69 : vector<2x32xf32>
    %72 = arith.divf %70, %71 : vector<2x32xf32>
    %73 = vector.extract_strided_slice %54 {offsets = [0, 64], sizes = [2, 32], strides = [1, 1]} : vector<2x96xf32> to vector<2x32xf32>
    %74 = vector.extract_strided_slice %56 {offsets = [0, 64], sizes = [2, 32], strides = [1, 1]} : vector<2x96xf32> to vector<2x32xf32>
    %75 = vector.broadcast %19 : vector<1x32xf32> to vector<2x32xf32>
    %76 = arith.addf %74, %75 : vector<2x32xf32>
    %77 = arith.mulf %64, %76 : vector<2x32xf32>
    %78 = arith.addf %73, %77 : vector<2x32xf32>
    %79 = math.tanh %78 : vector<2x32xf32>
    %80 = arith.subf %51, %79 : vector<2x32xf32>
    %81 = arith.mulf %72, %80 : vector<2x32xf32>
    %82 = arith.addf %79, %81 : vector<2x32xf32>
    %c2_i32 = arith.constant 2 : i32
    %83 = arith.index_cast %c2_i32 : i32 to index
    %c0_30 = arith.constant 0 : index
    %c0_31 = arith.constant 0 : index
    %84 = vector.load %arg11[%83, %c0_30, %c0_31] : memref<8x2x96xf32, #tpu.memory_space<vmem>>, vector<1x2x96xf32>
    %85 = vector.shape_cast %84 : vector<1x2x96xf32> to vector<2x96xf32>
    %86 = arith.truncf %82 : vector<2x32xf32> to vector<2x32xbf16>
    %cst_32 = arith.constant dense<0.000000e+00> : vector<2x96xf32>
    %87 = tpu.matmul %86, %18, %cst_32 {dimension_numbers = #tpu.dot_dimension_numbers<[1], [0], [0], [1], [0, 0, 1, 1], [], []>} : vector<2x32xbf16>, vector<32x96xbf16>, vector<2x96xf32> -> vector<2x96xf32>
    %88 = vector.extract_strided_slice %85 {offsets = [0, 0], sizes = [2, 32], strides = [1, 1]} : vector<2x96xf32> to vector<2x32xf32>
    %89 = vector.extract_strided_slice %87 {offsets = [0, 0], sizes = [2, 32], strides = [1, 1]} : vector<2x96xf32> to vector<2x32xf32>
    %90 = arith.addf %88, %89 : vector<2x32xf32>
    %91 = arith.negf %90 : vector<2x32xf32>
    %92 = math.exp %91 : vector<2x32xf32>
    %cst_33 = arith.constant 1.000000e+00 : f32
    %93 = vector.broadcast %cst_33 : f32 to vector<2x32xf32>
    %94 = arith.addf %93, %92 : vector<2x32xf32>
    %95 = arith.divf %93, %94 : vector<2x32xf32>
    %96 = vector.extract_strided_slice %85 {offsets = [0, 32], sizes = [2, 32], strides = [1, 1]} : vector<2x96xf32> to vector<2x32xf32>
    %97 = vector.extract_strided_slice %87 {offsets = [0, 32], sizes = [2, 32], strides = [1, 1]} : vector<2x96xf32> to vector<2x32xf32>
    %98 = arith.addf %96, %97 : vector<2x32xf32>
    %99 = arith.negf %98 : vector<2x32xf32>
    %100 = math.exp %99 : vector<2x32xf32>
    %cst_34 = arith.constant 1.000000e+00 : f32
    %101 = vector.broadcast %cst_34 : f32 to vector<2x32xf32>
    %102 = arith.addf %101, %100 : vector<2x32xf32>
    %103 = arith.divf %101, %102 : vector<2x32xf32>
    %104 = vector.extract_strided_slice %85 {offsets = [0, 64], sizes = [2, 32], strides = [1, 1]} : vector<2x96xf32> to vector<2x32xf32>
    %105 = vector.extract_strided_slice %87 {offsets = [0, 64], sizes = [2, 32], strides = [1, 1]} : vector<2x96xf32> to vector<2x32xf32>
    %106 = vector.broadcast %19 : vector<1x32xf32> to vector<2x32xf32>
    %107 = arith.addf %105, %106 : vector<2x32xf32>
    %108 = arith.mulf %95, %107 : vector<2x32xf32>
    %109 = arith.addf %104, %108 : vector<2x32xf32>
    %110 = math.tanh %109 : vector<2x32xf32>
    %111 = arith.subf %82, %110 : vector<2x32xf32>
    %112 = arith.mulf %103, %111 : vector<2x32xf32>
    %113 = arith.addf %110, %112 : vector<2x32xf32>
    %c3_i32 = arith.constant 3 : i32
    %114 = arith.index_cast %c3_i32 : i32 to index
    %c0_35 = arith.constant 0 : index
    %c0_36 = arith.constant 0 : index
    %115 = vector.load %arg11[%114, %c0_35, %c0_36] : memref<8x2x96xf32, #tpu.memory_space<vmem>>, vector<1x2x96xf32>
    %116 = vector.shape_cast %115 : vector<1x2x96xf32> to vector<2x96xf32>
    %117 = arith.truncf %113 : vector<2x32xf32> to vector<2x32xbf16>
    %cst_37 = arith.constant dense<0.000000e+00> : vector<2x96xf32>
    %118 = tpu.matmul %117, %18, %cst_37 {dimension_numbers = #tpu.dot_dimension_numbers<[1], [0], [0], [1], [0, 0, 1, 1], [], []>} : vector<2x32xbf16>, vector<32x96xbf16>, vector<2x96xf32> -> vector<2x96xf32>
    %119 = vector.extract_strided_slice %116 {offsets = [0, 0], sizes = [2, 32], strides = [1, 1]} : vector<2x96xf32> to vector<2x32xf32>
    %120 = vector.extract_strided_slice %118 {offsets = [0, 0], sizes = [2, 32], strides = [1, 1]} : vector<2x96xf32> to vector<2x32xf32>
    %121 = arith.addf %119, %120 : vector<2x32xf32>
    %122 = arith.negf %121 : vector<2x32xf32>
    %123 = math.exp %122 : vector<2x32xf32>
    %cst_38 = arith.constant 1.000000e+00 : f32
    %124 = vector.broadcast %cst_38 : f32 to vector<2x32xf32>
    %125 = arith.addf %124, %123 : vector<2x32xf32>
    %126 = arith.divf %124, %125 : vector<2x32xf32>
    %127 = vector.extract_strided_slice %116 {offsets = [0, 32], sizes = [2, 32], strides = [1, 1]} : vector<2x96xf32> to vector<2x32xf32>
    %128 = vector.extract_strided_slice %118 {offsets = [0, 32], sizes = [2, 32], strides = [1, 1]} : vector<2x96xf32> to vector<2x32xf32>
    %129 = arith.addf %127, %128 : vector<2x32xf32>
    %130 = arith.negf %129 : vector<2x32xf32>
    %131 = math.exp %130 : vector<2x32xf32>
    %cst_39 = arith.constant 1.000000e+00 : f32
    %132 = vector.broadcast %cst_39 : f32 to vector<2x32xf32>
    %133 = arith.addf %132, %131 : vector<2x32xf32>
    %134 = arith.divf %132, %133 : vector<2x32xf32>
    %135 = vector.extract_strided_slice %116 {offsets = [0, 64], sizes = [2, 32], strides = [1, 1]} : vector<2x96xf32> to vector<2x32xf32>
    %136 = vector.extract_strided_slice %118 {offsets = [0, 64], sizes = [2, 32], strides = [1, 1]} : vector<2x96xf32> to vector<2x32xf32>
    %137 = vector.broadcast %19 : vector<1x32xf32> to vector<2x32xf32>
    %138 = arith.addf %136, %137 : vector<2x32xf32>
    %139 = arith.mulf %126, %138 : vector<2x32xf32>
    %140 = arith.addf %135, %139 : vector<2x32xf32>
    %141 = math.tanh %140 : vector<2x32xf32>
    %142 = arith.subf %113, %141 : vector<2x32xf32>
    %143 = arith.mulf %134, %142 : vector<2x32xf32>
    %144 = arith.addf %141, %143 : vector<2x32xf32>
    %c4_i32 = arith.constant 4 : i32
    %145 = arith.index_cast %c4_i32 : i32 to index
    %c0_40 = arith.constant 0 : index
    %c0_41 = arith.constant 0 : index
    %146 = vector.load %arg11[%145, %c0_40, %c0_41] : memref<8x2x96xf32, #tpu.memory_space<vmem>>, vector<1x2x96xf32>
    %147 = vector.shape_cast %146 : vector<1x2x96xf32> to vector<2x96xf32>
    %148 = arith.truncf %144 : vector<2x32xf32> to vector<2x32xbf16>
    %cst_42 = arith.constant dense<0.000000e+00> : vector<2x96xf32>
    %149 = tpu.matmul %148, %18, %cst_42 {dimension_numbers = #tpu.dot_dimension_numbers<[1], [0], [0], [1], [0, 0, 1, 1], [], []>} : vector<2x32xbf16>, vector<32x96xbf16>, vector<2x96xf32> -> vector<2x96xf32>
    %150 = vector.extract_strided_slice %147 {offsets = [0, 0], sizes = [2, 32], strides = [1, 1]} : vector<2x96xf32> to vector<2x32xf32>
    %151 = vector.extract_strided_slice %149 {offsets = [0, 0], sizes = [2, 32], strides = [1, 1]} : vector<2x96xf32> to vector<2x32xf32>
    %152 = arith.addf %150, %151 : vector<2x32xf32>
    %153 = arith.negf %152 : vector<2x32xf32>
    %154 = math.exp %153 : vector<2x32xf32>
    %cst_43 = arith.constant 1.000000e+00 : f32
    %155 = vector.broadcast %cst_43 : f32 to vector<2x32xf32>
    %156 = arith.addf %155, %154 : vector<2x32xf32>
    %157 = arith.divf %155, %156 : vector<2x32xf32>
    %158 = vector.extract_strided_slice %147 {offsets = [0, 32], sizes = [2, 32], strides = [1, 1]} : vector<2x96xf32> to vector<2x32xf32>
    %159 = vector.extract_strided_slice %149 {offsets = [0, 32], sizes = [2, 32], strides = [1, 1]} : vector<2x96xf32> to vector<2x32xf32>
    %160 = arith.addf %158, %159 : vector<2x32xf32>
    %161 = arith.negf %160 : vector<2x32xf32>
    %162 = math.exp %161 : vector<2x32xf32>
    %cst_44 = arith.constant 1.000000e+00 : f32
    %163 = vector.broadcast %cst_44 : f32 to vector<2x32xf32>
    %164 = arith.addf %163, %162 : vector<2x32xf32>
    %165 = arith.divf %163, %164 : vector<2x32xf32>
    %166 = vector.extract_strided_slice %147 {offsets = [0, 64], sizes = [2, 32], strides = [1, 1]} : vector<2x96xf32> to vector<2x32xf32>
    %167 = vector.extract_strided_slice %149 {offsets = [0, 64], sizes = [2, 32], strides = [1, 1]} : vector<2x96xf32> to vector<2x32xf32>
    %168 = vector.broadcast %19 : vector<1x32xf32> to vector<2x32xf32>
    %169 = arith.addf %167, %168 : vector<2x32xf32>
    %170 = arith.mulf %157, %169 : vector<2x32xf32>
    %171 = arith.addf %166, %170 : vector<2x32xf32>
    %172 = math.tanh %171 : vector<2x32xf32>
    %173 = arith.subf %144, %172 : vector<2x32xf32>
    %174 = arith.mulf %165, %173 : vector<2x32xf32>
    %175 = arith.addf %172, %174 : vector<2x32xf32>
    %c5_i32 = arith.constant 5 : i32
    %176 = arith.index_cast %c5_i32 : i32 to index
    %c0_45 = arith.constant 0 : index
    %c0_46 = arith.constant 0 : index
    %177 = vector.load %arg11[%176, %c0_45, %c0_46] : memref<8x2x96xf32, #tpu.memory_space<vmem>>, vector<1x2x96xf32>
    %178 = vector.shape_cast %177 : vector<1x2x96xf32> to vector<2x96xf32>
    %179 = arith.truncf %175 : vector<2x32xf32> to vector<2x32xbf16>
    %cst_47 = arith.constant dense<0.000000e+00> : vector<2x96xf32>
    %180 = tpu.matmul %179, %18, %cst_47 {dimension_numbers = #tpu.dot_dimension_numbers<[1], [0], [0], [1], [0, 0, 1, 1], [], []>} : vector<2x32xbf16>, vector<32x96xbf16>, vector<2x96xf32> -> vector<2x96xf32>
    %181 = vector.extract_strided_slice %178 {offsets = [0, 0], sizes = [2, 32], strides = [1, 1]} : vector<2x96xf32> to vector<2x32xf32>
    %182 = vector.extract_strided_slice %180 {offsets = [0, 0], sizes = [2, 32], strides = [1, 1]} : vector<2x96xf32> to vector<2x32xf32>
    %183 = arith.addf %181, %182 : vector<2x32xf32>
    %184 = arith.negf %183 : vector<2x32xf32>
    %185 = math.exp %184 : vector<2x32xf32>
    %cst_48 = arith.constant 1.000000e+00 : f32
    %186 = vector.broadcast %cst_48 : f32 to vector<2x32xf32>
    %187 = arith.addf %186, %185 : vector<2x32xf32>
    %188 = arith.divf %186, %187 : vector<2x32xf32>
    %189 = vector.extract_strided_slice %178 {offsets = [0, 32], sizes = [2, 32], strides = [1, 1]} : vector<2x96xf32> to vector<2x32xf32>
    %190 = vector.extract_strided_slice %180 {offsets = [0, 32], sizes = [2, 32], strides = [1, 1]} : vector<2x96xf32> to vector<2x32xf32>
    %191 = arith.addf %189, %190 : vector<2x32xf32>
    %192 = arith.negf %191 : vector<2x32xf32>
    %193 = math.exp %192 : vector<2x32xf32>
    %cst_49 = arith.constant 1.000000e+00 : f32
    %194 = vector.broadcast %cst_49 : f32 to vector<2x32xf32>
    %195 = arith.addf %194, %193 : vector<2x32xf32>
    %196 = arith.divf %194, %195 : vector<2x32xf32>
    %197 = vector.extract_strided_slice %178 {offsets = [0, 64], sizes = [2, 32], strides = [1, 1]} : vector<2x96xf32> to vector<2x32xf32>
    %198 = vector.extract_strided_slice %180 {offsets = [0, 64], sizes = [2, 32], strides = [1, 1]} : vector<2x96xf32> to vector<2x32xf32>
    %199 = vector.broadcast %19 : vector<1x32xf32> to vector<2x32xf32>
    %200 = arith.addf %198, %199 : vector<2x32xf32>
    %201 = arith.mulf %188, %200 : vector<2x32xf32>
    %202 = arith.addf %197, %201 : vector<2x32xf32>
    %203 = math.tanh %202 : vector<2x32xf32>
    %204 = arith.subf %175, %203 : vector<2x32xf32>
    %205 = arith.mulf %196, %204 : vector<2x32xf32>
    %206 = arith.addf %203, %205 : vector<2x32xf32>
    %c6_i32 = arith.constant 6 : i32
    %207 = arith.index_cast %c6_i32 : i32 to index
    %c0_50 = arith.constant 0 : index
    %c0_51 = arith.constant 0 : index
    %208 = vector.load %arg11[%207, %c0_50, %c0_51] : memref<8x2x96xf32, #tpu.memory_space<vmem>>, vector<1x2x96xf32>
    %209 = vector.shape_cast %208 : vector<1x2x96xf32> to vector<2x96xf32>
    %210 = arith.truncf %206 : vector<2x32xf32> to vector<2x32xbf16>
    %cst_52 = arith.constant dense<0.000000e+00> : vector<2x96xf32>
    %211 = tpu.matmul %210, %18, %cst_52 {dimension_numbers = #tpu.dot_dimension_numbers<[1], [0], [0], [1], [0, 0, 1, 1], [], []>} : vector<2x32xbf16>, vector<32x96xbf16>, vector<2x96xf32> -> vector<2x96xf32>
    %212 = vector.extract_strided_slice %209 {offsets = [0, 0], sizes = [2, 32], strides = [1, 1]} : vector<2x96xf32> to vector<2x32xf32>
    %213 = vector.extract_strided_slice %211 {offsets = [0, 0], sizes = [2, 32], strides = [1, 1]} : vector<2x96xf32> to vector<2x32xf32>
    %214 = arith.addf %212, %213 : vector<2x32xf32>
    %215 = arith.negf %214 : vector<2x32xf32>
    %216 = math.exp %215 : vector<2x32xf32>
    %cst_53 = arith.constant 1.000000e+00 : f32
    %217 = vector.broadcast %cst_53 : f32 to vector<2x32xf32>
    %218 = arith.addf %217, %216 : vector<2x32xf32>
    %219 = arith.divf %217, %218 : vector<2x32xf32>
    %220 = vector.extract_strided_slice %209 {offsets = [0, 32], sizes = [2, 32], strides = [1, 1]} : vector<2x96xf32> to vector<2x32xf32>
    %221 = vector.extract_strided_slice %211 {offsets = [0, 32], sizes = [2, 32], strides = [1, 1]} : vector<2x96xf32> to vector<2x32xf32>
    %222 = arith.addf %220, %221 : vector<2x32xf32>
    %223 = arith.negf %222 : vector<2x32xf32>
    %224 = math.exp %223 : vector<2x32xf32>
    %cst_54 = arith.constant 1.000000e+00 : f32
    %225 = vector.broadcast %cst_54 : f32 to vector<2x32xf32>
    %226 = arith.addf %225, %224 : vector<2x32xf32>
    %227 = arith.divf %225, %226 : vector<2x32xf32>
    %228 = vector.extract_strided_slice %209 {offsets = [0, 64], sizes = [2, 32], strides = [1, 1]} : vector<2x96xf32> to vector<2x32xf32>
    %229 = vector.extract_strided_slice %211 {offsets = [0, 64], sizes = [2, 32], strides = [1, 1]} : vector<2x96xf32> to vector<2x32xf32>
    %230 = vector.broadcast %19 : vector<1x32xf32> to vector<2x32xf32>
    %231 = arith.addf %229, %230 : vector<2x32xf32>
    %232 = arith.mulf %219, %231 : vector<2x32xf32>
    %233 = arith.addf %228, %232 : vector<2x32xf32>
    %234 = math.tanh %233 : vector<2x32xf32>
    %235 = arith.subf %206, %234 : vector<2x32xf32>
    %236 = arith.mulf %227, %235 : vector<2x32xf32>
    %237 = arith.addf %234, %236 : vector<2x32xf32>
    %c7_i32 = arith.constant 7 : i32
    %238 = arith.index_cast %c7_i32 : i32 to index
    %c0_55 = arith.constant 0 : index
    %c0_56 = arith.constant 0 : index
    %239 = vector.load %arg11[%238, %c0_55, %c0_56] : memref<8x2x96xf32, #tpu.memory_space<vmem>>, vector<1x2x96xf32>
    %240 = vector.shape_cast %239 : vector<1x2x96xf32> to vector<2x96xf32>
    %241 = arith.truncf %237 : vector<2x32xf32> to vector<2x32xbf16>
    %cst_57 = arith.constant dense<0.000000e+00> : vector<2x96xf32>
    %242 = tpu.matmul %241, %18, %cst_57 {dimension_numbers = #tpu.dot_dimension_numbers<[1], [0], [0], [1], [0, 0, 1, 1], [], []>} : vector<2x32xbf16>, vector<32x96xbf16>, vector<2x96xf32> -> vector<2x96xf32>
    %243 = vector.extract_strided_slice %240 {offsets = [0, 0], sizes = [2, 32], strides = [1, 1]} : vector<2x96xf32> to vector<2x32xf32>
    %244 = vector.extract_strided_slice %242 {offsets = [0, 0], sizes = [2, 32], strides = [1, 1]} : vector<2x96xf32> to vector<2x32xf32>
    %245 = arith.addf %243, %244 : vector<2x32xf32>
    %246 = arith.negf %245 : vector<2x32xf32>
    %247 = math.exp %246 : vector<2x32xf32>
    %cst_58 = arith.constant 1.000000e+00 : f32
    %248 = vector.broadcast %cst_58 : f32 to vector<2x32xf32>
    %249 = arith.addf %248, %247 : vector<2x32xf32>
    %250 = arith.divf %248, %249 : vector<2x32xf32>
    %251 = vector.extract_strided_slice %240 {offsets = [0, 32], sizes = [2, 32], strides = [1, 1]} : vector<2x96xf32> to vector<2x32xf32>
    %252 = vector.extract_strided_slice %242 {offsets = [0, 32], sizes = [2, 32], strides = [1, 1]} : vector<2x96xf32> to vector<2x32xf32>
    %253 = arith.addf %251, %252 : vector<2x32xf32>
    %254 = arith.negf %253 : vector<2x32xf32>
    %255 = math.exp %254 : vector<2x32xf32>
    %cst_59 = arith.constant 1.000000e+00 : f32
    %256 = vector.broadcast %cst_59 : f32 to vector<2x32xf32>
    %257 = arith.addf %256, %255 : vector<2x32xf32>
    %258 = arith.divf %256, %257 : vector<2x32xf32>
    %259 = vector.extract_strided_slice %240 {offsets = [0, 64], sizes = [2, 32], strides = [1, 1]} : vector<2x96xf32> to vector<2x32xf32>
    %260 = vector.extract_strided_slice %242 {offsets = [0, 64], sizes = [2, 32], strides = [1, 1]} : vector<2x96xf32> to vector<2x32xf32>
    %261 = vector.broadcast %19 : vector<1x32xf32> to vector<2x32xf32>
    %262 = arith.addf %260, %261 : vector<2x32xf32>
    %263 = arith.mulf %250, %262 : vector<2x32xf32>
    %264 = arith.addf %259, %263 : vector<2x32xf32>
    %265 = math.tanh %264 : vector<2x32xf32>
    %266 = arith.subf %237, %265 : vector<2x32xf32>
    %267 = arith.mulf %258, %266 : vector<2x32xf32>
    %268 = arith.addf %265, %267 : vector<2x32xf32>
    %c8_i32 = arith.constant 8 : i32
    %c0_60 = arith.constant 0 : index
    %c7 = arith.constant 7 : index
    %c0_61 = arith.constant 0 : index
    %c0_62 = arith.constant 0 : index
    %269 = vector.load %arg0[%c0_60, %c7, %c0_61, %c0_62] : memref<2x8x2x32xf32, #tpu.memory_space<vmem>>, vector<1x1x2x32xf32>
    %270 = vector.shape_cast %269 : vector<1x1x2x32xf32> to vector<2x32xf32>
    %271 = arith.truncf %270 : vector<2x32xf32> to vector<2x32xbf16>
    %c1_63 = arith.constant 1 : index
    %c7_64 = arith.constant 7 : index
    %c0_65 = arith.constant 0 : index
    %c0_66 = arith.constant 0 : index
    %272 = vector.load %arg0[%c1_63, %c7_64, %c0_65, %c0_66] : memref<2x8x2x32xf32, #tpu.memory_space<vmem>>, vector<1x1x2x32xf32>
    %273 = vector.shape_cast %272 : vector<1x1x2x32xf32> to vector<2x32xf32>
    %274 = arith.truncf %273 : vector<2x32xf32> to vector<2x32xbf16>
    %c0_67 = arith.constant 0 : index
    %c0_68 = arith.constant 0 : index
    %275 = vector.load %arg5[%c0_67, %c0_68] : memref<64x96xbf16, #tpu.memory_space<vmem>>, vector<32x96xbf16>
    %cst_69 = arith.constant dense<0.000000e+00> : vector<2x96xf32>
    %276 = tpu.matmul %271, %275, %cst_69 {dimension_numbers = #tpu.dot_dimension_numbers<[1], [0], [0], [1], [0, 0, 1, 1], [], []>} : vector<2x32xbf16>, vector<32x96xbf16>, vector<2x96xf32> -> vector<2x96xf32>
    %c32_70 = arith.constant 32 : index
    %c0_71 = arith.constant 0 : index
    %277 = vector.load %arg5[%c32_70, %c0_71] : memref<64x96xbf16, #tpu.memory_space<vmem>>, vector<32x96xbf16>
    %cst_72 = arith.constant dense<0.000000e+00> : vector<2x96xf32>
    %278 = tpu.matmul %274, %277, %cst_72 {dimension_numbers = #tpu.dot_dimension_numbers<[1], [0], [0], [1], [0, 0, 1, 1], [], []>} : vector<2x32xbf16>, vector<32x96xbf16>, vector<2x96xf32> -> vector<2x96xf32>
    %279 = arith.addf %276, %278 : vector<2x96xf32>
    %c0_73 = arith.constant 0 : index
    %c0_74 = arith.constant 0 : index
    %280 = vector.load %arg6[%c0_73, %c0_74] : memref<1x96xf32, #tpu.memory_space<vmem>>, vector<1x96xf32>
    %281 = vector.broadcast %280 : vector<1x96xf32> to vector<2x96xf32>
    %282 = arith.addf %279, %281 : vector<2x96xf32>
    %283 = vector.extract_strided_slice %282 {offsets = [0, 0], sizes = [2, 32], strides = [1, 1]} : vector<2x96xf32> to vector<2x32xf32>
    %284 = arith.negf %283 : vector<2x32xf32>
    %285 = math.exp %284 : vector<2x32xf32>
    %cst_75 = arith.constant 1.000000e+00 : f32
    %286 = vector.broadcast %cst_75 : f32 to vector<2x32xf32>
    %287 = arith.addf %286, %285 : vector<2x32xf32>
    %288 = arith.divf %286, %287 : vector<2x32xf32>
    %289 = vector.extract_strided_slice %282 {offsets = [0, 32], sizes = [2, 32], strides = [1, 1]} : vector<2x96xf32> to vector<2x32xf32>
    %290 = arith.negf %289 : vector<2x32xf32>
    %291 = math.exp %290 : vector<2x32xf32>
    %cst_76 = arith.constant 1.000000e+00 : f32
    %292 = vector.broadcast %cst_76 : f32 to vector<2x32xf32>
    %293 = arith.addf %292, %291 : vector<2x32xf32>
    %294 = arith.divf %292, %293 : vector<2x32xf32>
    %295 = vector.extract_strided_slice %282 {offsets = [0, 64], sizes = [2, 32], strides = [1, 1]} : vector<2x96xf32> to vector<2x32xf32>
    %c0_77 = arith.constant 0 : index
    %c0_78 = arith.constant 0 : index
    %296 = vector.load %arg7[%c0_77, %c0_78] : memref<1x32xf32, #tpu.memory_space<vmem>>, vector<1x32xf32>
    %297 = vector.broadcast %296 : vector<1x32xf32> to vector<2x32xf32>
    %298 = arith.mulf %288, %297 : vector<2x32xf32>
    %299 = arith.addf %295, %298 : vector<2x32xf32>
    %300 = math.tanh %299 : vector<2x32xf32>
    %301 = arith.mulf %294, %300 : vector<2x32xf32>
    %302 = arith.subf %300, %301 : vector<2x32xf32>
    %c0_79 = arith.constant 0 : index
    %c0_80 = arith.constant 0 : index
    %303 = vector.load %arg8[%c0_79, %c0_80] : memref<1x64xf32, #tpu.memory_space<vmem>>, vector<1x32xf32>
    %304 = vector.broadcast %303 : vector<1x32xf32> to vector<2x32xf32>
    %305 = arith.mulf %268, %304 : vector<2x32xf32>
    %cst_81 = arith.constant dense<0.000000e+00> : vector<2xf32>
    %306 = vector.multi_reduction <add>, %305, %cst_81 [1] : vector<2x32xf32> to vector<2xf32>
    %307 = vector.shape_cast %306 : vector<2xf32> to vector<2x1xf32>
    %c0_82 = arith.constant 0 : index
    %c32_83 = arith.constant 32 : index
    %308 = vector.load %arg8[%c0_82, %c32_83] : memref<1x64xf32, #tpu.memory_space<vmem>>, vector<1x32xf32>
    %309 = vector.broadcast %308 : vector<1x32xf32> to vector<2x32xf32>
    %310 = arith.mulf %302, %309 : vector<2x32xf32>
    %cst_84 = arith.constant dense<0.000000e+00> : vector<2xf32>
    %311 = vector.multi_reduction <add>, %310, %cst_84 [1] : vector<2x32xf32> to vector<2xf32>
    %312 = vector.shape_cast %311 : vector<2xf32> to vector<2x1xf32>
    %313 = arith.addf %307, %312 : vector<2x1xf32>
    %c0_85 = arith.constant 0 : index
    %c0_86 = arith.constant 0 : index
    %314 = vector.load %arg9[%c0_85, %c0_86] : memref<1x1xf32, #tpu.memory_space<vmem>>, vector<1x1xf32>
    %315 = vector.broadcast %314 : vector<1x1xf32> to vector<2x1xf32>
    %316 = arith.addf %313, %315 : vector<2x1xf32>
    %c0_87 = arith.constant 0 : index
    %c0_88 = arith.constant 0 : index
    %317 = vector.load %arg10[%c0_87, %c0_88] : memref<2x1xf32, #tpu.memory_space<vmem>>, vector<2x1xf32>
    tpu.vector_store %arg10[%c0_87, %c0_88], %316 {strides = array<i32>} : memref<2x1xf32, #tpu.memory_space<vmem>>, vector<2x1xf32>,
    return
  }
}

</mosaic_0001>

<llo_original>
// kernel: _lambda_.2
$region0: #{_lambda_.2}
  #allocation0 [shape = 'u32[]', space=smem, size = 0x4, offset = 0x4, fixed_abs, tag = 'smem constant byte address 0x4 - core index']
  #allocation1 [shape = 'u32[144,128]{1,0:T(1,128)}', space=vmem, size = 0x12000, scoped, tag = 'internal scratch']
  #allocation2 [shape = 'f32[8,2,96]{2,1,0:T(2,128)}', space=vmem, size = 0x2000, scoped, tag = 'scratch operand']
  %s0 = inlined_call_operand.vmem [shape: f32[8,2,16], index: 0, kind: input, shape index: {}]
  %s1 = inlined_call_operand.vmem [shape: bf16[2,16,96], index: 1, kind: input, shape index: {}]
  %s2 = inlined_call_operand.vmem [shape: bf16[2,32,96], index: 2, kind: input, shape index: {}]
  %s3 = inlined_call_operand.vmem [shape: f32[2,1,96], index: 3, kind: input, shape index: {}]
  %s4 = inlined_call_operand.vmem [shape: f32[2,1,32], index: 4, kind: input, shape index: {}]
  %s5 = inlined_call_operand.vmem [shape: f32[2,8,2,32], index: 5, kind: output, shape index: {}]
  %s6 = sld [smem:[#allocation0]]
  $region53: #{_lambda_.2} parent=0
    _
  %s8 = ssub.s32 1, %s6
  %s9 = scalar_select 0, %s8, %s6
  loop: start=0, step=1, limit=4
  $region2: #{_lambda_.2} parent=0 // loop_pre_header
    _
  $region3: #{_lambda_.2} parent=0 // loop_header
    %s11 = sphi 0, %s15
    %p12 = scmp.ge.s32.totalorder %s11, 4
    %s19 = sphi 0, %s19
    %s21 = sphi 0, %s19
    %s22 = sphi 0, %s21
    %s36 = sphi 0, %s22
    %s42 = sphi 0, %s44
    %s45 = sphi 0, %s42
    %s46 = sphi 0, %s45
    %s62 = sphi 0, %s46
    %s68 = sphi 0, %s70
    %s71 = sphi 0, %s68
    %s72 = sphi 0, %s71
    %s88 = sphi 0, %s72
    %s94 = sphi 0, %s96
    %s97 = sphi 0, %s94
    %s98 = sphi 0, %s97
    %s114 = sphi 0, %s98
    %s120 = sphi 0, %s122
    %s123 = sphi 0, %s120
    %s124 = sphi 0, %s123
    %s140 = sphi 0, %s124
    %s146 = sphi 0, %s148
    %s149 = sphi 0, %s146
    %s150 = sphi 0, %s149
    %s166 = sphi 0, %s150
  $region4: #{_lambda_.2} parent=0 // loop_header_branch
    %14 = sbr.rel (%p12) target = $region8
  $region5: #{_lambda_.2} parent=0 // loop_body
    %s16 = ssub.s32 %s11, 1
    %s17 = ssub.s32 %s11, 2
    %s18 = sadd.s32 %s11, 1
    %s20 = sadd.s32 %s19, 1
    %p23 = scmp.eq.s32.totalorder %s11, 1
    %p24 = scmp.ne.s32.totalorder %s19, %s21
    %p25 = scmp.eq.s32.totalorder %s11, 0
    %p26 = por %p24, %p25
    %p27 = scmp.ne.s32.totalorder %s19, %s21
    %p28 = scmp.eq.s32.totalorder %s16, 1
    %p29 = por %p27, %p28
    %p30 = scmp.ne.s32.totalorder %s21, %s22
    %p31 = scmp.eq.s32.totalorder %s16, 0
    %p32 = por %p30, %p31
    %p33 = scmp.ne.s32.totalorder %s21, %s22
    %p34 = scmp.eq.s32.totalorder %s17, 1
    %p35 = por %p33, %p34
    %p37 = scmp.ne.s32.totalorder %s22, %s36
    %p38 = scmp.eq.s32.totalorder %s17, 0
    %p39 = por %p37, %p38
    %s40 = ssub.s32 %s11, %s18
    %p41 = scmp.eq.s32.totalorder %s40, 0
    %s43 = sadd.s32 %s42, 1
    %s44 = scalar_select %p41, %s42, %s43
    %p47 = pneg %p41
    %p48 = scmp.eq.s32.totalorder %s11, 1
    %p49 = por %p47, %p48
    %p50 = scmp.ne.s32.totalorder %s42, %s45
    %p51 = scmp.eq.s32.totalorder %s11, 0
    %p52 = por %p50, %p51
    %p53 = scmp.ne.s32.totalorder %s42, %s45
    %p54 = scmp.eq.s32.totalorder %s16, 1
    %p55 = por %p53, %p54
    %p56 = scmp.ne.s32.totalorder %s45, %s46
    %p57 = scmp.eq.s32.totalorder %s16, 0
    %p58 = por %p56, %p57
    %p59 = scmp.ne.s32.totalorder %s45, %s46
    %p60 = scmp.eq.s32.totalorder %s17, 1
    %p61 = por %p59, %p60
    %p63 = scmp.ne.s32.totalorder %s46, %s62
    %p64 = scmp.eq.s32.totalorder %s17, 0
    %p65 = por %p63, %p64
    %s66 = ssub.s32 %s11, %s18
    %p67 = scmp.eq.s32.totalorder %s66, 0
    %s69 = sadd.s32 %s68, 1
    %s70 = scalar_select %p67, %s68, %s69
    %p73 = pneg %p67
    %p74 = scmp.eq.s32.totalorder %s11, 1
    %p75 = por %p73, %p74
    %p76 = scmp.ne.s32.totalorder %s68, %s71
    %p77 = scmp.eq.s32.totalorder %s11, 0
    %p78 = por %p76, %p77
    %p79 = scmp.ne.s32.totalorder %s68, %s71
    %p80 = scmp.eq.s32.totalorder %s16, 1
    %p81 = por %p79, %p80
    %p82 = scmp.ne.s32.totalorder %s71, %s72
    %p83 = scmp.eq.s32.totalorder %s16, 0
    %p84 = por %p82, %p83
    %p85 = scmp.ne.s32.totalorder %s71, %s72
    %p86 = scmp.eq.s32.totalorder %s17, 1
    %p87 = por %p85, %p86
    %p89 = scmp.ne.s32.totalorder %s72, %s88
    %p90 = scmp.eq.s32.totalorder %s17, 0
    %p91 = por %p89, %p90
    %s92 = ssub.s32 %s11, %s18
    %p93 = scmp.eq.s32.totalorder %s92, 0
    %s95 = sadd.s32 %s94, 1
    %s96 = scalar_select %p93, %s94, %s95
    %p99 = pneg %p93
    %p100 = scmp.eq.s32.totalorder %s11, 1
    %p101 = por %p99, %p100
    %p102 = scmp.ne.s32.totalorder %s94, %s97
    %p103 = scmp.eq.s32.totalorder %s11, 0
    %p104 = por %p102, %p103
    %p105 = scmp.ne.s32.totalorder %s94, %s97
    %p106 = scmp.eq.s32.totalorder %s16, 1
    %p107 = por %p105, %p106
    %p108 = scmp.ne.s32.totalorder %s97, %s98
    %p109 = scmp.eq.s32.totalorder %s16, 0
    %p110 = por %p108, %p109
    %p111 = scmp.ne.s32.totalorder %s97, %s98
    %p112 = scmp.eq.s32.totalorder %s17, 1
    %p113 = por %p111, %p112
    %p115 = scmp.ne.s32.totalorder %s98, %s114
    %p116 = scmp.eq.s32.totalorder %s17, 0
    %p117 = por %p115, %p116
    %s118 = ssub.s32 %s11, %s18
    %p119 = scmp.eq.s32.totalorder %s118, 0
    %s121 = sadd.s32 %s120, 1
    %s122 = scalar_select %p119, %s120, %s121
    %p125 = pneg %p119
    %p126 = scmp.eq.s32.totalorder %s11, 1
    %p127 = por %p125, %p126
    %p128 = scmp.ne.s32.totalorder %s120, %s123
    %p129 = scmp.eq.s32.totalorder %s11, 0
    %p130 = por %p128, %p129
    %p131 = scmp.ne.s32.totalorder %s120, %s123
    %p132 = scmp.eq.s32.totalorder %s16, 1
    %p133 = por %p131, %p132
    %p134 = scmp.ne.s32.totalorder %s123, %s124
    %p135 = scmp.eq.s32.totalorder %s16, 0
    %p136 = por %p134, %p135
    %p137 = scmp.ne.s32.totalorder %s123, %s124
    %p138 = scmp.eq.s32.totalorder %s17, 1
    %p139 = por %p137, %p138
    %p141 = scmp.ne.s32.totalorder %s124, %s140
    %p142 = scmp.eq.s32.totalorder %s17, 0
    %p143 = por %p141, %p142
    %s144 = ssub.s32 %s11, %s18
    %p145 = scmp.eq.s32.totalorder %s144, 0
    %s147 = sadd.s32 %s146, 1
    %s148 = scalar_select %p145, %s146, %s147
    %p151 = pneg %p145
    %p152 = scmp.eq.s32.totalorder %s11, 1
    %p153 = por %p151, %p152
    %p154 = scmp.ne.s32.totalorder %s146, %s149
    %p155 = scmp.eq.s32.totalorder %s11, 0
    %p156 = por %p154, %p155
    %p157 = scmp.ne.s32.totalorder %s146, %s149
    %p158 = scmp.eq.s32.totalorder %s16, 1
    %p159 = por %p157, %p158
    %p160 = scmp.ne.s32.totalorder %s149, %s150
    %p161 = scmp.eq.s32.totalorder %s16, 0
    %p162 = por %p160, %p161
    %p163 = scmp.ne.s32.totalorder %s149, %s150
    %p164 = scmp.eq.s32.totalorder %s17, 1
    %p165 = por %p163, %p164
    %p167 = scmp.ne.s32.totalorder %s150, %s166
    %p168 = scmp.eq.s32.totalorder %s17, 0
    %p169 = por %p167, %p168
    %p170 = scmp.le.s32.totalorder 1, %s11
    %p171 = scmp.lt.s32.totalorder %s11, 3
    %p172 = pnand %p170, %p171
    %p173 = pneg %p172
    // Predicated region
    $region9: #{_lambda_.2} parent=5 // pred_check
      _
    $region10: #{_lambda_.2} parent=5 // pred_check_branch
      %175 = sbr.rel (%p172) target = $region12
    $region11: #{_lambda_.2} parent=5 // pred_region
      %s176 = ssub.s32 %s11, 1
      // Predicated region
      $region13: #{_lambda_.2} parent=11 // pred_check
        %p177 = pneg %p32
      $region14: #{_lambda_.2} parent=11 // pred_check_branch
        %179 = sbr.rel (%p177) target = $region16
      $region15: #{_lambda_.2} parent=11 // pred_region
        _
      $region16: #{_lambda_.2} parent=11 // pred_fallthru
        _
    $region12: #{_lambda_.2} parent=5 // pred_fallthru
      _
    %p180 = scmp.lt.s32.totalorder %s11, 2
    // Predicated region
    $region17: #{_lambda_.2} parent=5 // pred_check
      %p181 = pneg %p180
    $region18: #{_lambda_.2} parent=5 // pred_check_branch
      %183 = sbr.rel (%p181) target = $region20
    $region19: #{_lambda_.2} parent=5 // pred_region
      // Predicated region
      $region21: #{_lambda_.2} parent=19 // pred_check
        %p184 = pneg %p52
      $region22: #{_lambda_.2} parent=19 // pred_check_branch
        %186 = sbr.rel (%p184) target = $region24
      $region23: #{_lambda_.2} parent=19 // pred_region
        %p187 = scmp.lt.s32.totalorder %s11, 1
        %s188 = scalar_select %p187, %s11, 1
        %s189 = smul.addr %s188, 2
        %s190 = smul.addr %s189, 4
        %s191 = scalar_lea.vmem %s1, %s190
      $region24: #{_lambda_.2} parent=19 // pred_fallthru
        _
      // Predicated region
      $region25: #{_lambda_.2} parent=19 // pred_check
        %p192 = pneg %p78
      $region26: #{_lambda_.2} parent=19 // pred_check_branch
        %194 = sbr.rel (%p192) target = $region28
      $region27: #{_lambda_.2} parent=19 // pred_region
        %p195 = scmp.lt.s32.totalorder %s11, 1
        %s196 = scalar_select %p195, %s11, 1
        %s197 = smul.addr %s196, 4
        %s198 = smul.addr %s197, 4
        %s199 = scalar_lea.vmem %s2, %s198
      $region28: #{_lambda_.2} parent=19 // pred_fallthru
        _
      // Predicated region
      $region29: #{_lambda_.2} parent=19 // pred_check
        %p200 = pneg %p104
      $region30: #{_lambda_.2} parent=19 // pred_check_branch
        %202 = sbr.rel (%p200) target = $region32
      $region31: #{_lambda_.2} parent=19 // pred_region
        %p203 = scmp.lt.s32.totalorder %s11, 1
        %s204 = scalar_select %p203, %s11, 1
        %s205 = scalar_lea.vmem %s3, %s204
      $region32: #{_lambda_.2} parent=19 // pred_fallthru
        _
      // Predicated region
      $region33: #{_lambda_.2} parent=19 // pred_check
        %p206 = pneg %p130
      $region34: #{_lambda_.2} parent=19 // pred_check_branch
        %208 = sbr.rel (%p206) target = $region36
      $region35: #{_lambda_.2} parent=19 // pred_region
        %p209 = scmp.lt.s32.totalorder %s11, 1
        %s210 = scalar_select %p209, %s11, 1
        %s211 = scalar_lea.vmem %s4, %s210
      $region36: #{_lambda_.2} parent=19 // pred_fallthru
        _
    $region20: #{_lambda_.2} parent=5 // pred_fallthru
      _
    %p212 = scmp.le.s32.totalorder 1, %s11
    %p213 = scmp.lt.s32.totalorder %s11, 3
    %p214 = pnand %p212, %p213
    %p215 = pneg %p214
    // Predicated region
    $region37: #{_lambda_.2} parent=5 // pred_check
      _
    $region38: #{_lambda_.2} parent=5 // pred_check_branch
      %217 = sbr.rel (%p214) target = $region40
    $region39: #{_lambda_.2} parent=5 // pred_region
      %s218 = ssub.s32 %s11, 1
      %p219 = pneg %p32
      %p220 = pneg %p29
      %p221 = scmp.lt.s32.totalorder %s16, 1
      %s222 = scalar_select %p221, %s16, 1
      %s223 = smul.addr %s222, 2
      %s224 = smul.addr %s223, 4
      %s225 = scalar_lea.vmem %s1, %s224
      %p226 = pneg %p58
      %p227 = pneg %p55
      %p228 = scmp.lt.s32.totalorder %s16, 1
      %s229 = scalar_select %p228, %s16, 1
      %s230 = smul.addr %s229, 4
      %s231 = smul.addr %s230, 4
      %s232 = scalar_lea.vmem %s2, %s231
      %p233 = pneg %p84
      %p234 = pneg %p81
      %p235 = scmp.lt.s32.totalorder %s16, 1
      %s236 = scalar_select %p235, %s16, 1
      %s237 = scalar_lea.vmem %s3, %s236
      %p238 = pneg %p110
      %p239 = pneg %p107
      %p240 = scmp.lt.s32.totalorder %s16, 1
      %s241 = scalar_select %p240, %s16, 1
      %s242 = scalar_lea.vmem %s4, %s241
      %p243 = pneg %p136
      %p244 = pneg %p133
      %p245 = pneg %p162
      %p246 = pneg %p159
      %p247 = scmp.lt.s32.totalorder %s16, 1
      %s248 = scalar_select %p247, %s16, 1
      %s249 = smul.addr %s248, 8
      %s250 = smul.addr %s249, 2
      %s251 = scalar_lea.vmem %s5, %s250
      %p252 = scmp.lt.s32.totalorder %s16, 1
      %s253 = scalar_select %p252, %s16, 1
      %s254 = smul.addr %s253, 2
      %s255 = smul.addr %s254, 4
      %s256 = scalar_lea.vmem %s1, %s255
      %p257 = scmp.lt.s32.totalorder %s16, 1
      %s258 = scalar_select %p257, %s16, 1
      %s259 = smul.addr %s258, 4
      %s260 = smul.addr %s259, 4
      %s261 = scalar_lea.vmem %s2, %s260
      %p262 = scmp.lt.s32.totalorder %s16, 1
      %s263 = scalar_select %p262, %s16, 1
      %s264 = scalar_lea.vmem %s3, %s263
      %p265 = scmp.lt.s32.totalorder %s16, 1
      %s266 = scalar_select %p265, %s16, 1
      %s267 = scalar_lea.vmem %s4, %s266
      %p268 = scmp.lt.s32.totalorder %s16, 1
      %s269 = scalar_select %p268, %s16, 1
      %s270 = smul.addr %s269, 8
      %s271 = smul.addr %s270, 2
      %s272 = scalar_lea.vmem %s5, %s271
      %v274 = vld [vmem:[%s0] sm:$0x3]
      %v275 = vld [vmem:[%s0 + $0x2] sm:$0x3]
      %v276 = vld [vmem:[%s0 + $0x4] sm:$0x3]
      %v277 = vld [vmem:[%s0 + $0x6] sm:$0x3]
      %v278 = vld [vmem:[%s0 + $0x8] sm:$0x3]
      %v279 = vld [vmem:[%s0 + $0xa] sm:$0x3]
      %v280 = vld [vmem:[%s0 + $0xc] sm:$0x3]
      %v281 = vld [vmem:[%s0 + $0xe] sm:$0x3]
      %v290 = vcombine.low %v274, %v275
      %v291 = vcombine.low %v276, %v277
      %v293 = vunpack.c.l.s4 1983009808
      %v294 = vunpack.c.0.s8 %v293
      %v295 = vlaneseq
      %v296 = vshrl.u32 %v295, 7
      %v297 = vsub.s32 %v294, %v296
      %v298 = vrot.slane %v290, %v297
      %v300 = vunpack.c.l.s4 1983009808
      %v301 = vunpack.c.0.s8 %v300
      %v302 = vlaneseq
      %v303 = vshrl.u32 %v302, 7
      %v304 = vsub.s32 %v301, %v303
      %v305 = vrot.slane %v291, %v304
      %v306 = vcombine.low %v298, %v305
      %v307 = vcombine.low %v278, %v279
      %v308 = vcombine.low %v280, %v281
      %v310 = vunpack.c.l.s4 1983009808
      %v311 = vunpack.c.0.s8 %v310
      %v312 = vlaneseq
      %v313 = vshrl.u32 %v312, 7
      %v314 = vsub.s32 %v311, %v313
      %v315 = vrot.slane %v307, %v314
      %v317 = vunpack.c.l.s4 1983009808
      %v318 = vunpack.c.0.s8 %v317
      %v319 = vlaneseq
      %v320 = vshrl.u32 %v319, 7
      %v321 = vsub.s32 %v318, %v320
      %v322 = vrot.slane %v308, %v321
      %v323 = vcombine.low %v315, %v322
      %v326 = vpack.c.bf16 %v323, %v306
      %v327 = vld [vmem:[%s256] sm:$0xf]
      %v328 = vld [vmem:[%s256 + $0x4] sm:$0xf]
      %v329 = vld [vmem:[%s264] sm:$0x1]
      %v331 = vlaneseq
      %v332 = vshrl.u32 %v331, 7
      %v333 = vsub.s32 0, %v332
      %v334 = vrot.slane %v329, %v333
      %v338 = vunpack.c.l.b16 %v327
      %v339 = vunpack.c.l.b16 %v328
      %v340 = vpack.c.b16 %v339, %v338
      %vm342 = vcmask 130048
      %v344 = vsel %vm342, %v326, 0
      %346 = vmatprep.subr.bf16.mxu0 0
      %347 = vmatpush1.bf16.msra.mxu0 0
      %348 = vmatprep.subr.bf16.mxu0 0
      %349 = vmatpush1.bf16.msra.mxu0 0
      %350 = vmatprep.subr.bf16.mxu0 0
      %351 = vmatpush1.bf16.msra.mxu0 0
      %352 = vmatprep.subr.bf16.mxu0 0
      %353 = vmatpush1.bf16.msra.mxu0 0
      %354 = vmatprep.subr.bf16.mxu0 0
      %355 = vmatpush1.bf16.msra.mxu0 0
      %356 = vmatprep.subr.bf16.mxu0 0
      %357 = vmatpush1.bf16.msra.mxu0 0
      %358 = vmatprep.subr.bf16.mxu0 0
      %359 = vmatpush1.bf16.msra.mxu0 0
      %360 = vmatprep.subr.bf16.mxu0 0
      %361 = vmatpush1.bf16.msra.mxu0 %v340
      %362 = vmatprep.subr.bf16.mxu0 0
      %363 = vmatpush2.bf16.msra.mxu0 0
      %364 = vmatprep.subr.bf16.mxu0 0
      %365 = vmatpush2.bf16.msra.mxu0 0
      %366 = vmatprep.subr.bf16.mxu0 0
      %367 = vmatpush2.bf16.msra.mxu0 0
      %368 = vmatprep.subr.bf16.mxu0 0
      %369 = vmatpush2.bf16.msra.mxu0 0
      %370 = vmatprep.subr.bf16.mxu0 0
      %371 = vmatpush2.bf16.msra.mxu0 0
      %372 = vmatprep.subr.bf16.mxu0 0
      %373 = vmatpush2.bf16.msra.mxu0 0
      %374 = vmatprep.subr.bf16.mxu0 0
      %375 = vmatpush2.bf16.msra.mxu0 0
      %376 = vmatprep.subr.bf16.mxu0 0
      %377 = vmatpush2.bf16.msra.mxu0 0
      %378 = vmatprep.mubr.bf16.mxu0 0
      %379 = vmatmul.mubr.bf16.gmra.mxu0 %v344
      %v380 = vpop.f32.mrf.mxu0
      %v381 = vadd.f32 %v334, %v380
      %v382 = vpop.f32.mrf.mxu0
      %v383 = vpop.f32.mrf.mxu0
      %v384 = vadd.f32 %v334, %v383
      %v385 = vpop.f32.mrf.mxu0
      %386 = vdwg.mxu0
      %v389 = vcombine.high %v381, %v381
      %v391 = vunpack.c.l.s4 1983009808
      %v392 = vunpack.c.0.s8 %v391
      %v393 = vlaneseq
      %v394 = vshrl.u32 %v393, 7
      %v395 = vsub.s32 %v392, %v394
      %v396 = vrot.slane %v381, %v395
      %v398 = vunpack.c.l.s4 1983009808
      %v399 = vunpack.c.0.s8 %v398
      %v400 = vlaneseq
      %v401 = vshrl.u32 %v400, 7
      %v402 = vsub.s32 %v399, %v401
      %v403 = vrot.slane %v389, %v402
      %v404 = vcombine.high %v396, %v396
      %v405 = vcombine.high %v403, %v403
      %v406 = vcombine.high %v384, %v384
      %v408 = vunpack.c.l.s4 1983009808
      %v409 = vunpack.c.0.s8 %v408
      %v410 = vlaneseq
      %v411 = vshrl.u32 %v410, 7
      %v412 = vsub.s32 %v409, %v411
      %v413 = vrot.slane %v384, %v412
      %v415 = vunpack.c.l.s4 1983009808
      %v416 = vunpack.c.0.s8 %v415
      %v417 = vlaneseq
      %v418 = vshrl.u32 %v417, 7
      %v419 = vsub.s32 %v416, %v418
      %v420 = vrot.slane %v406, %v419
      %v421 = vcombine.high %v413, %v413
      %v422 = vcombine.high %v420, %v420
      %vm431 = vcmask 779264
      %432 = vst.msk [vmem:[#allocation2] sm:$0x3] %vm431, %v396
      %433 = vst.msk [vmem:[#allocation2 + $0x2] sm:$0x3] %vm431, %v404
      %434 = vst.msk [vmem:[#allocation2 + $0x4] sm:$0x3] %vm431, %v403
      %435 = vst.msk [vmem:[#allocation2 + $0x6] sm:$0x3] %vm431, %v405
      %436 = vst.msk [vmem:[#allocation2 + $0x8] sm:$0x3] %vm431, %v413
      %437 = vst.msk [vmem:[#allocation2 + $0xa] sm:$0x3] %vm431, %v421
      %438 = vst.msk [vmem:[#allocation2 + $0xc] sm:$0x3] %vm431, %v420
      %439 = vst.msk [vmem:[#allocation2 + $0xe] sm:$0x3] %vm431, %v422
      %v440 = vld [vmem:[%s261] sm:$0xf]
      %v441 = vld [vmem:[%s261 + $0x4] sm:$0xf]
      %v442 = vld [vmem:[%s261 + $0x8] sm:$0xf]
      %v443 = vld [vmem:[%s261 + $0xc] sm:$0xf]
      %v444 = vld [vmem:[%s267] sm:$0x1]
      %s445 = smul.u32 %s16, 7
      %s446 = smul.u32 %s16, 2
      %s447 = ssub.s32 1, %s446
      %s448 = smul.u32 %s445, 2
      %s449 = scalar_lea.vmem [#allocation2], %s448
      %v450 = vld [vmem:[%s449] sm:$0x3]
      %v455 = vunpack.c.l.b16 %v440
      %v456 = vunpack.c.l.b16 %v441
      %v457 = vunpack.c.l.b16 %v442
      %v458 = vunpack.c.l.b16 %v443
      %v459 = vpack.c.b16 %v456, %v455
      %v460 = vpack.c.b16 %v458, %v457
      %vm463 = vcmask 261120
      %v465 = vsel %vm463, 0, 0
      %467 = vmatprep.subr.bf16.mxu0 0
      %468 = vmatpush1.bf16.msra.mxu0 0
      %469 = vmatprep.subr.bf16.mxu0 0
      %470 = vmatpush1.bf16.msra.mxu0 0
      %471 = vmatprep.subr.bf16.mxu0 0
      %472 = vmatpush1.bf16.msra.mxu0 0
      %473 = vmatprep.subr.bf16.mxu0 0
      %474 = vmatpush1.bf16.msra.mxu0 0
      %475 = vmatprep.subr.bf16.mxu0 0
      %476 = vmatpush1.bf16.msra.mxu0 0
      %477 = vmatprep.subr.bf16.mxu0 0
      %478 = vmatpush1.bf16.msra.mxu0 0
      %479 = vmatprep.subr.bf16.mxu0 0
      %480 = vmatpush1.bf16.msra.mxu0 %v460
      %481 = vmatprep.subr.bf16.mxu0 0
      %482 = vmatpush1.bf16.msra.mxu0 %v459
      %483 = vmatprep.subr.bf16.mxu0 0
      %484 = vmatpush2.bf16.msra.mxu0 0
      %485 = vmatprep.subr.bf16.mxu0 0
      %486 = vmatpush2.bf16.msra.mxu0 0
      %487 = vmatprep.subr.bf16.mxu0 0
      %488 = vmatpush2.bf16.msra.mxu0 0
      %489 = vmatprep.subr.bf16.mxu0 0
      %490 = vmatpush2.bf16.msra.mxu0 0
      %491 = vmatprep.subr.bf16.mxu0 0
      %492 = vmatpush2.bf16.msra.mxu0 0
      %493 = vmatprep.subr.bf16.mxu0 0
      %494 = vmatpush2.bf16.msra.mxu0 0
      %495 = vmatprep.subr.bf16.mxu0 0
      %496 = vmatpush2.bf16.msra.mxu0 0
      %497 = vmatprep.subr.bf16.mxu0 0
      %498 = vmatpush2.bf16.msra.mxu0 0
      %499 = vmatprep.mubr.bf16.mxu0 0
      %500 = vmatmul.mubr.bf16.gmra.mxu0 %v465
      %v501 = vpop.f32.mrf.mxu0
      %v502 = vadd.f32 0.0, %v501
      %v503 = vpop.f32.mrf.mxu0
      %v504 = vpop.f32.mrf.mxu0
      %v505 = vpop.f32.mrf.mxu0
      %506 = vdwg.mxu0
      %v507 = vadd.f32 %v450, %v502
      %v508 = vxor.u32 %v507, 2147483648
      %v509 = vmul.f32 %v508, 1.442695
      %v510 = vpow.pop %v509
      %v511 = vadd.f32 %v510, 1.0
      %v512 = vrcp.pop %v511
      %v513 = vmul.f32 1.0, %v512
      %v515 = vlaneseq
      %v516 = vshrl.u32 %v515, 7
      %v517 = vsub.s32 0, %v516
      %v518 = vrot.slane %v444, %v517
      %519 = vrot.lane.b32.xlu0 %v518, 64
      %v520 = vpop.permute.xlu0 %519
      %v522 = vadd.f32 %v502, %v520
      %524 = vrot.lane.b32.xlu0 %v522, 64
      %v525 = vpop.permute.xlu0 %524
      %v527 = vmul.f32 %v513, %v525
      %529 = vrot.lane.b32.xlu0 %v527, 64
      %v530 = vpop.permute.xlu0 %529
      %v532 = vadd.f32 %v450, %v530
      %v533 = vtanh.pop %v532
      %v534 = vsub.f32 0.0, %v533
      %536 = vrot.lane.b32.xlu0 %v534, 96
      %v537 = vpop.permute.xlu0 %536
      %v539 = vmul.f32 %v513, %v537
      %541 = vrot.lane.b32.xlu0 %v539, 32
      %v542 = vpop.permute.xlu0 %541
      %v544 = vadd.f32 %v533, %v542
      %546 = vrot.lane.b32.xlu0 %v544, 64
      %v547 = vpop.permute.xlu0 %546
      %s549 = scalar_lea.vmem %s272, %s448
      %vm550 = vcmask 254976
      %551 = vst.msk [vmem:[%s549] sm:$0x3] %vm550, %v547
      %s552 = sadd.s32 %s445, %s447
      %s553 = smul.u32 %s552, 2
      %s554 = scalar_lea.vmem [#allocation2], %s553
      %v555 = vld [vmem:[%s554] sm:$0x3]
      %v556 = vpack.c.bf16 %v544, %v544
      %558 = vrot.lane.b32.xlu0 %v556, 64
      %v559 = vpop.permute.xlu0 %558
      %v561 = vsel %vm463, %v559, 0
      %563 = vmatprep.subr.bf16.mxu0 0
      %564 = vmatpush1.bf16.msra.mxu0 0
      %565 = vmatprep.subr.bf16.mxu0 0
      %566 = vmatpush1.bf16.msra.mxu0 0
      %567 = vmatprep.subr.bf16.mxu0 0
      %568 = vmatpush1.bf16.msra.mxu0 0
      %569 = vmatprep.subr.bf16.mxu0 0
      %570 = vmatpush1.bf16.msra.mxu0 0
      %571 = vmatprep.subr.bf16.mxu0 0
      %572 = vmatpush1.bf16.msra.mxu0 0
      %573 = vmatprep.subr.bf16.mxu0 0
      %574 = vmatpush1.bf16.msra.mxu0 0
      %575 = vmatprep.subr.bf16.mxu0 0
      %576 = vmatpush1.bf16.msra.mxu0 %v460
      %577 = vmatprep.subr.bf16.mxu0 0
      %578 = vmatpush1.bf16.msra.mxu0 %v459
      %579 = vmatprep.subr.bf16.mxu0 0
      %580 = vmatpush2.bf16.msra.mxu0 0
      %581 = vmatprep.subr.bf16.mxu0 0
      %582 = vmatpush2.bf16.msra.mxu0 0
      %583 = vmatprep.subr.bf16.mxu0 0
      %584 = vmatpush2.bf16.msra.mxu0 0
      %585 = vmatprep.subr.bf16.mxu0 0
      %586 = vmatpush2.bf16.msra.mxu0 0
      %587 = vmatprep.subr.bf16.mxu0 0
      %588 = vmatpush2.bf16.msra.mxu0 0
      %589 = vmatprep.subr.bf16.mxu0 0
      %590 = vmatpush2.bf16.msra.mxu0 0
      %591 = vmatprep.subr.bf16.mxu0 0
      %592 = vmatpush2.bf16.msra.mxu0 0
      %593 = vmatprep.subr.bf16.mxu0 0
      %594 = vmatpush2.bf16.msra.mxu0 0
      %595 = vmatprep.mubr.bf16.mxu0 0
      %596 = vmatmul.mubr.bf16.gmra.mxu0 %v561
      %v597 = vpop.f32.mrf.mxu0
      %v598 = vadd.f32 0.0, %v597
      %v599 = vpop.f32.mrf.mxu0
      %v600 = vpop.f32.mrf.mxu0
      %v601 = vpop.f32.mrf.mxu0
      %602 = vdwg.mxu0
      %v603 = vadd.f32 %v555, %v598
      %v604 = vxor.u32 %v603, 2147483648
      %v605 = vmul.f32 %v604, 1.442695
      %v606 = vpow.pop %v605
      %v607 = vadd.f32 %v606, 1.0
      %v608 = vrcp.pop %v607
      %v609 = vmul.f32 1.0, %v608
      %v610 = vadd.f32 %v598, %v520
      %612 = vrot.lane.b32.xlu0 %v610, 64
      %v613 = vpop.permute.xlu0 %612
      %v615 = vmul.f32 %v609, %v613
      %617 = vrot.lane.b32.xlu0 %v615, 64
      %v618 = vpop.permute.xlu0 %617
      %v620 = vadd.f32 %v555, %v618
      %v621 = vtanh.pop %v620
      %v622 = vsub.f32 %v544, %v621
      %624 = vrot.lane.b32.xlu0 %v622, 96
      %v625 = vpop.permute.xlu0 %624
      %v627 = vmul.f32 %v609, %v625
      %629 = vrot.lane.b32.xlu0 %v627, 32
      %v630 = vpop.permute.xlu0 %629
      %v632 = vadd.f32 %v621, %v630
      %634 = vrot.lane.b32.xlu0 %v632, 64
      %v635 = vpop.permute.xlu0 %634
      %s637 = scalar_lea.vmem %s272, %s553
      %638 = vst.msk [vmem:[%s637] sm:$0x3] %vm550, %v635
      %s639 = smul.u32 %s447, 2
      %s640 = sadd.s32 %s445, %s639
      %s641 = smul.u32 %s640, 2
      %s642 = scalar_lea.vmem [#allocation2], %s641
      %v643 = vld [vmem:[%s642] sm:$0x3]
      %v644 = vpack.c.bf16 %v632, %v632
      %646 = vrot.lane.b32.xlu0 %v644, 64
      %v647 = vpop.permute.xlu0 %646
      %v649 = vsel %vm463, %v647, 0
      %651 = vmatprep.subr.bf16.mxu0 0
      %652 = vmatpush1.bf16.msra.mxu0 0
      %653 = vmatprep.subr.bf16.mxu0 0
      %654 = vmatpush1.bf16.msra.mxu0 0
      %655 = vmatprep.subr.bf16.mxu0 0
      %656 = vmatpush1.bf16.msra.mxu0 0
      %657 = vmatprep.subr.bf16.mxu0 0
      %658 = vmatpush1.bf16.msra.mxu0 0
      %659 = vmatprep.subr.bf16.mxu0 0
      %660 = vmatpush1.bf16.msra.mxu0 0
      %661 = vmatprep.subr.bf16.mxu0 0
      %662 = vmatpush1.bf16.msra.mxu0 0
      %663 = vmatprep.subr.bf16.mxu0 0
      %664 = vmatpush1.bf16.msra.mxu0 %v460
      %665 = vmatprep.subr.bf16.mxu0 0
      %666 = vmatpush1.bf16.msra.mxu0 %v459
      %667 = vmatprep.subr.bf16.mxu0 0
      %668 = vmatpush2.bf16.msra.mxu0 0
      %669 = vmatprep.subr.bf16.mxu0 0
      %670 = vmatpush2.bf16.msra.mxu0 0
      %671 = vmatprep.subr.bf16.mxu0 0
      %672 = vmatpush2.bf16.msra.mxu0 0
      %673 = vmatprep.subr.bf16.mxu0 0
      %674 = vmatpush2.bf16.msra.mxu0 0
      %675 = vmatprep.subr.bf16.mxu0 0
      %676 = vmatpush2.bf16.msra.mxu0 0
      %677 = vmatprep.subr.bf16.mxu0 0
      %678 = vmatpush2.bf16.msra.mxu0 0
      %679 = vmatprep.subr.bf16.mxu0 0
      %680 = vmatpush2.bf16.msra.mxu0 0
      %681 = vmatprep.subr.bf16.mxu0 0
      %682 = vmatpush2.bf16.msra.mxu0 0
      %683 = vmatprep.mubr.bf16.mxu0 0
      %684 = vmatmul.mubr.bf16.gmra.mxu0 %v649
      %v685 = vpop.f32.mrf.mxu0
      %v686 = vadd.f32 0.0, %v685
      %v687 = vpop.f32.mrf.mxu0
      %v688 = vpop.f32.mrf.mxu0
      %v689 = vpop.f32.mrf.mxu0
      %690 = vdwg.mxu0
      %v691 = vadd.f32 %v643, %v686
      %v692 = vxor.u32 %v691, 2147483648
      %v693 = vmul.f32 %v692, 1.442695
      %v694 = vpow.pop %v693
      %v695 = vadd.f32 %v694, 1.0
      %v696 = vrcp.pop %v695
      %v697 = vmul.f32 1.0, %v696
      %v698 = vadd.f32 %v686, %v520
      %700 = vrot.lane.b32.xlu0 %v698, 64
      %v701 = vpop.permute.xlu0 %700
      %v703 = vmul.f32 %v697, %v701
      %705 = vrot.lane.b32.xlu0 %v703, 64
      %v706 = vpop.permute.xlu0 %705
      %v708 = vadd.f32 %v643, %v706
      %v709 = vtanh.pop %v708
      %v710 = vsub.f32 %v632, %v709
      %712 = vrot.lane.b32.xlu0 %v710, 96
      %v713 = vpop.permute.xlu0 %712
      %v715 = vmul.f32 %v697, %v713
      %717 = vrot.lane.b32.xlu0 %v715, 32
      %v718 = vpop.permute.xlu0 %717
      %v720 = vadd.f32 %v709, %v718
      %722 = vrot.lane.b32.xlu0 %v720, 64
      %v723 = vpop.permute.xlu0 %722
      %s725 = scalar_lea.vmem %s272, %s641
      %726 = vst.msk [vmem:[%s725] sm:$0x3] %vm550, %v723
      %s727 = smul.u32 %s447, 3
      %s728 = sadd.s32 %s445, %s727
      %s729 = smul.u32 %s728, 2
      %s730 = scalar_lea.vmem [#allocation2], %s729
      %v731 = vld [vmem:[%s730] sm:$0x3]
      %v732 = vpack.c.bf16 %v720, %v720
      %734 = vrot.lane.b32.xlu0 %v732, 64
      %v735 = vpop.permute.xlu0 %734
      %v737 = vsel %vm463, %v735, 0
      %739 = vmatprep.subr.bf16.mxu0 0
      %740 = vmatpush1.bf16.msra.mxu0 0
      %741 = vmatprep.subr.bf16.mxu0 0
      %742 = vmatpush1.bf16.msra.mxu0 0
      %743 = vmatprep.subr.bf16.mxu0 0
      %744 = vmatpush1.bf16.msra.mxu0 0
      %745 = vmatprep.subr.bf16.mxu0 0
      %746 = vmatpush1.bf16.msra.mxu0 0
      %747 = vmatprep.subr.bf16.mxu0 0
      %748 = vmatpush1.bf16.msra.mxu0 0
      %749 = vmatprep.subr.bf16.mxu0 0
      %750 = vmatpush1.bf16.msra.mxu0 0
      %751 = vmatprep.subr.bf16.mxu0 0
      %752 = vmatpush1.bf16.msra.mxu0 %v460
      %753 = vmatprep.subr.bf16.mxu0 0
      %754 = vmatpush1.bf16.msra.mxu0 %v459
      %755 = vmatprep.subr.bf16.mxu0 0
      %756 = vmatpush2.bf16.msra.mxu0 0
      %757 = vmatprep.subr.bf16.mxu0 0
      %758 = vmatpush2.bf16.msra.mxu0 0
      %759 = vmatprep.subr.bf16.mxu0 0
      %760 = vmatpush2.bf16.msra.mxu0 0
      %761 = vmatprep.subr.bf16.mxu0 0
      %762 = vmatpush2.bf16.msra.mxu0 0
      %763 = vmatprep.subr.bf16.mxu0 0
      %764 = vmatpush2.bf16.msra.mxu0 0
      %765 = vmatprep.subr.bf16.mxu0 0
      %766 = vmatpush2.bf16.msra.mxu0 0
      %767 = vmatprep.subr.bf16.mxu0 0
      %768 = vmatpush2.bf16.msra.mxu0 0
      %769 = vmatprep.subr.bf16.mxu0 0
      %770 = vmatpush2.bf16.msra.mxu0 0
      %771 = vmatprep.mubr.bf16.mxu0 0
      %772 = vmatmul.mubr.bf16.gmra.mxu0 %v737
      %v773 = vpop.f32.mrf.mxu0
      %v774 = vadd.f32 0.0, %v773
      %v775 = vpop.f32.mrf.mxu0
      %v776 = vpop.f32.mrf.mxu0
      %v777 = vpop.f32.mrf.mxu0
      %778 = vdwg.mxu0
      %v779 = vadd.f32 %v731, %v774
      %v780 = vxor.u32 %v779, 2147483648
      %v781 = vmul.f32 %v780, 1.442695
      %v782 = vpow.pop %v781
      %v783 = vadd.f32 %v782, 1.0
      %v784 = vrcp.pop %v783
      %v785 = vmul.f32 1.0, %v784
      %v786 = vadd.f32 %v774, %v520
      %788 = vrot.lane.b32.xlu0 %v786, 64
      %v789 = vpop.permute.xlu0 %788
      %v791 = vmul.f32 %v785, %v789
      %793 = vrot.lane.b32.xlu0 %v791, 64
      %v794 = vpop.permute.xlu0 %793
      %v796 = vadd.f32 %v731, %v794
      %v797 = vtanh.pop %v796
      %v798 = vsub.f32 %v720, %v797
      %800 = vrot.lane.b32.xlu0 %v798, 96
      %v801 = vpop.permute.xlu0 %800
      %v803 = vmul.f32 %v785, %v801
      %805 = vrot.lane.b32.xlu0 %v803, 32
      %v806 = vpop.permute.xlu0 %805
      %v808 = vadd.f32 %v797, %v806
      %810 = vrot.lane.b32.xlu0 %v808, 64
      %v811 = vpop.permute.xlu0 %810
      %s813 = scalar_lea.vmem %s272, %s729
      %814 = vst.msk [vmem:[%s813] sm:$0x3] %vm550, %v811
      %s815 = smul.u32 %s447, 4
      %s816 = sadd.s32 %s445, %s815
      %s817 = smul.u32 %s816, 2
      %s818 = scalar_lea.vmem [#allocation2], %s817
      %v819 = vld [vmem:[%s818] sm:$0x3]
      %v820 = vpack.c.bf16 %v808, %v808
      %822 = vrot.lane.b32.xlu0 %v820, 64
      %v823 = vpop.permute.xlu0 %822
      %v825 = vsel %vm463, %v823, 0
      %827 = vmatprep.subr.bf16.mxu0 0
      %828 = vmatpush1.bf16.msra.mxu0 0
      %829 = vmatprep.subr.bf16.mxu0 0
      %830 = vmatpush1.bf16.msra.mxu0 0
      %831 = vmatprep.subr.bf16.mxu0 0
      %832 = vmatpush1.bf16.msra.mxu0 0
      %833 = vmatprep.subr.bf16.mxu0 0
      %834 = vmatpush1.bf16.msra.mxu0 0
      %835 = vmatprep.subr.bf16.mxu0 0
      %836 = vmatpush1.bf16.msra.mxu0 0
      %837 = vmatprep.subr.bf16.mxu0 0
      %838 = vmatpush1.bf16.msra.mxu0 0
      %839 = vmatprep.subr.bf16.mxu0 0
      %840 = vmatpush1.bf16.msra.mxu0 %v460
      %841 = vmatprep.subr.bf16.mxu0 0
      %842 = vmatpush1.bf16.msra.mxu0 %v459
      %843 = vmatprep.subr.bf16.mxu0 0
      %844 = vmatpush2.bf16.msra.mxu0 0
      %845 = vmatprep.subr.bf16.mxu0 0
      %846 = vmatpush2.bf16.msra.mxu0 0
      %847 = vmatprep.subr.bf16.mxu0 0
      %848 = vmatpush2.bf16.msra.mxu0 0
      %849 = vmatprep.subr.bf16.mxu0 0
      %850 = vmatpush2.bf16.msra.mxu0 0
      %851 = vmatprep.subr.bf16.mxu0 0
      %852 = vmatpush2.bf16.msra.mxu0 0
      %853 = vmatprep.subr.bf16.mxu0 0
      %854 = vmatpush2.bf16.msra.mxu0 0
      %855 = vmatprep.subr.bf16.mxu0 0
      %856 = vmatpush2.bf16.msra.mxu0 0
      %857 = vmatprep.subr.bf16.mxu0 0
      %858 = vmatpush2.bf16.msra.mxu0 0
      %859 = vmatprep.mubr.bf16.mxu0 0
      %860 = vmatmul.mubr.bf16.gmra.mxu0 %v825
      %v861 = vpop.f32.mrf.mxu0
      %v862 = vadd.f32 0.0, %v861
      %v863 = vpop.f32.mrf.mxu0
      %v864 = vpop.f32.mrf.mxu0
      %v865 = vpop.f32.mrf.mxu0
      %866 = vdwg.mxu0
      %v867 = vadd.f32 %v819, %v862
      %v868 = vxor.u32 %v867, 2147483648
      %v869 = vmul.f32 %v868, 1.442695
      %v870 = vpow.pop %v869
      %v871 = vadd.f32 %v870, 1.0
      %v872 = vrcp.pop %v871
      %v873 = vmul.f32 1.0, %v872
      %v874 = vadd.f32 %v862, %v520
      %876 = vrot.lane.b32.xlu0 %v874, 64
      %v877 = vpop.permute.xlu0 %876
      %v879 = vmul.f32 %v873, %v877
      %881 = vrot.lane.b32.xlu0 %v879, 64
      %v882 = vpop.permute.xlu0 %881
      %v884 = vadd.f32 %v819, %v882
      %v885 = vtanh.pop %v884
      %v886 = vsub.f32 %v808, %v885
      %888 = vrot.lane.b32.xlu0 %v886, 96
      %v889 = vpop.permute.xlu0 %888
      %v891 = vmul.f32 %v873, %v889
      %893 = vrot.lane.b32.xlu0 %v891, 32
      %v894 = vpop.permute.xlu0 %893
      %v896 = vadd.f32 %v885, %v894
      %898 = vrot.lane.b32.xlu0 %v896, 64
      %v899 = vpop.permute.xlu0 %898
      %s901 = scalar_lea.vmem %s272, %s817
      %902 = vst.msk [vmem:[%s901] sm:$0x3] %vm550, %v899
      %s903 = smul.u32 %s447, 5
      %s904 = sadd.s32 %s445, %s903
      %s905 = smul.u32 %s904, 2
      %s906 = scalar_lea.vmem [#allocation2], %s905
      %v907 = vld [vmem:[%s906] sm:$0x3]
      %v908 = vpack.c.bf16 %v896, %v896
      %910 = vrot.lane.b32.xlu0 %v908, 64
      %v911 = vpop.permute.xlu0 %910
      %v913 = vsel %vm463, %v911, 0
      %915 = vmatprep.subr.bf16.mxu0 0
      %916 = vmatpush1.bf16.msra.mxu0 0
      %917 = vmatprep.subr.bf16.mxu0 0
      %918 = vmatpush1.bf16.msra.mxu0 0
      %919 = vmatprep.subr.bf16.mxu0 0
      %920 = vmatpush1.bf16.msra.mxu0 0
      %921 = vmatprep.subr.bf16.mxu0 0
      %922 = vmatpush1.bf16.msra.mxu0 0
      %923 = vmatprep.subr.bf16.mxu0 0
      %924 = vmatpush1.bf16.msra.mxu0 0
      %925 = vmatprep.subr.bf16.mxu0 0
      %926 = vmatpush1.bf16.msra.mxu0 0
      %927 = vmatprep.subr.bf16.mxu0 0
      %928 = vmatpush1.bf16.msra.mxu0 %v460
      %929 = vmatprep.subr.bf16.mxu0 0
      %930 = vmatpush1.bf16.msra.mxu0 %v459
      %931 = vmatprep.subr.bf16.mxu0 0
      %932 = vmatpush2.bf16.msra.mxu0 0
      %933 = vmatprep.subr.bf16.mxu0 0
      %934 = vmatpush2.bf16.msra.mxu0 0
      %935 = vmatprep.subr.bf16.mxu0 0
      %936 = vmatpush2.bf16.msra.mxu0 0
      %937 = vmatprep.subr.bf16.mxu0 0
      %938 = vmatpush2.bf16.msra.mxu0 0
      %939 = vmatprep.subr.bf16.mxu0 0
      %940 = vmatpush2.bf16.msra.mxu0 0
      %941 = vmatprep.subr.bf16.mxu0 0
      %942 = vmatpush2.bf16.msra.mxu0 0
      %943 = vmatprep.subr.bf16.mxu0 0
      %944 = vmatpush2.bf16.msra.mxu0 0
      %945 = vmatprep.subr.bf16.mxu0 0
      %946 = vmatpush2.bf16.msra.mxu0 0
      %947 = vmatprep.mubr.bf16.mxu0 0
      %948 = vmatmul.mubr.bf16.gmra.mxu0 %v913
      %v949 = vpop.f32.mrf.mxu0
      %v950 = vadd.f32 0.0, %v949
      %v951 = vpop.f32.mrf.mxu0
      %v952 = vpop.f32.mrf.mxu0
      %v953 = vpop.f32.mrf.mxu0
      %954 = vdwg.mxu0
      %v955 = vadd.f32 %v907, %v950
      %v956 = vxor.u32 %v955, 2147483648
      %v957 = vmul.f32 %v956, 1.442695
      %v958 = vpow.pop %v957
      %v959 = vadd.f32 %v958, 1.0
      %v960 = vrcp.pop %v959
      %v961 = vmul.f32 1.0, %v960
      %v962 = vadd.f32 %v950, %v520
      %964 = vrot.lane.b32.xlu0 %v962, 64
      %v965 = vpop.permute.xlu0 %964
      %v967 = vmul.f32 %v961, %v965
      %969 = vrot.lane.b32.xlu0 %v967, 64
      %v970 = vpop.permute.xlu0 %969
      %v972 = vadd.f32 %v907, %v970
      %v973 = vtanh.pop %v972
      %v974 = vsub.f32 %v896, %v973
      %976 = vrot.lane.b32.xlu0 %v974, 96
      %v977 = vpop.permute.xlu0 %976
      %v979 = vmul.f32 %v961, %v977
      %981 = vrot.lane.b32.xlu0 %v979, 32
      %v982 = vpop.permute.xlu0 %981
      %v984 = vadd.f32 %v973, %v982
      %986 = vrot.lane.b32.xlu0 %v984, 64
      %v987 = vpop.permute.xlu0 %986
      %s989 = scalar_lea.vmem %s272, %s905
      %990 = vst.msk [vmem:[%s989] sm:$0x3] %vm550, %v987
      %s991 = smul.u32 %s447, 6
      %s992 = sadd.s32 %s445, %s991
      %s993 = smul.u32 %s992, 2
      %s994 = scalar_lea.vmem [#allocation2], %s993
      %v995 = vld [vmem:[%s994] sm:$0x3]
      %v996 = vpack.c.bf16 %v984, %v984
      %998 = vrot.lane.b32.xlu0 %v996, 64
      %v999 = vpop.permute.xlu0 %998
      %v1001 = vsel %vm463, %v999, 0
      %1003 = vmatprep.subr.bf16.mxu0 0
      %1004 = vmatpush1.bf16.msra.mxu0 0
      %1005 = vmatprep.subr.bf16.mxu0 0
      %1006 = vmatpush1.bf16.msra.mxu0 0
      %1007 = vmatprep.subr.bf16.mxu0 0
      %1008 = vmatpush1.bf16.msra.mxu0 0
      %1009 = vmatprep.subr.bf16.mxu0 0
      %1010 = vmatpush1.bf16.msra.mxu0 0
      %1011 = vmatprep.subr.bf16.mxu0 0
      %1012 = vmatpush1.bf16.msra.mxu0 0
      %1013 = vmatprep.subr.bf16.mxu0 0
      %1014 = vmatpush1.bf16.msra.mxu0 0
      %1015 = vmatprep.subr.bf16.mxu0 0
      %1016 = vmatpush1.bf16.msra.mxu0 %v460
      %1017 = vmatprep.subr.bf16.mxu0 0
      %1018 = vmatpush1.bf16.msra.mxu0 %v459
      %1019 = vmatprep.subr.bf16.mxu0 0
      %1020 = vmatpush2.bf16.msra.mxu0 0
      %1021 = vmatprep.subr.bf16.mxu0 0
      %1022 = vmatpush2.bf16.msra.mxu0 0
      %1023 = vmatprep.subr.bf16.mxu0 0
      %1024 = vmatpush2.bf16.msra.mxu0 0
      %1025 = vmatprep.subr.bf16.mxu0 0
      %1026 = vmatpush2.bf16.msra.mxu0 0
      %1027 = vmatprep.subr.bf16.mxu0 0
      %1028 = vmatpush2.bf16.msra.mxu0 0
      %1029 = vmatprep.subr.bf16.mxu0 0
      %1030 = vmatpush2.bf16.msra.mxu0 0
      %1031 = vmatprep.subr.bf16.mxu0 0
      %1032 = vmatpush2.bf16.msra.mxu0 0
      %1033 = vmatprep.subr.bf16.mxu0 0
      %1034 = vmatpush2.bf16.msra.mxu0 0
      %1035 = vmatprep.mubr.bf16.mxu0 0
      %1036 = vmatmul.mubr.bf16.gmra.mxu0 %v1001
      %v1037 = vpop.f32.mrf.mxu0
      %v1038 = vadd.f32 0.0, %v1037
      %v1039 = vpop.f32.mrf.mxu0
      %v1040 = vpop.f32.mrf.mxu0
      %v1041 = vpop.f32.mrf.mxu0
      %1042 = vdwg.mxu0
      %v1043 = vadd.f32 %v995, %v1038
      %v1044 = vxor.u32 %v1043, 2147483648
      %v1045 = vmul.f32 %v1044, 1.442695
      %v1046 = vpow.pop %v1045
      %v1047 = vadd.f32 %v1046, 1.0
      %v1048 = vrcp.pop %v1047
      %v1049 = vmul.f32 1.0, %v1048
      %v1050 = vadd.f32 %v1038, %v520
      %1052 = vrot.lane.b32.xlu0 %v1050, 64
      %v1053 = vpop.permute.xlu0 %1052
      %v1055 = vmul.f32 %v1049, %v1053
      %1057 = vrot.lane.b32.xlu0 %v1055, 64
      %v1058 = vpop.permute.xlu0 %1057
      %v1060 = vadd.f32 %v995, %v1058
      %v1061 = vtanh.pop %v1060
      %v1062 = vsub.f32 %v984, %v1061
      %1064 = vrot.lane.b32.xlu0 %v1062, 96
      %v1065 = vpop.permute.xlu0 %1064
      %v1067 = vmul.f32 %v1049, %v1065
      %1069 = vrot.lane.b32.xlu0 %v1067, 32
      %v1070 = vpop.permute.xlu0 %1069
      %v1072 = vadd.f32 %v1061, %v1070
      %1074 = vrot.lane.b32.xlu0 %v1072, 64
      %v1075 = vpop.permute.xlu0 %1074
      %s1077 = scalar_lea.vmem %s272, %s993
      %1078 = vst.msk [vmem:[%s1077] sm:$0x3] %vm550, %v1075
      %s1079 = smul.u32 %s447, 7
      %s1080 = sadd.s32 %s445, %s1079
      %s1081 = smul.u32 %s1080, 2
      %s1082 = scalar_lea.vmem [#allocation2], %s1081
      %v1083 = vld [vmem:[%s1082] sm:$0x3]
      %v1084 = vpack.c.bf16 %v1072, %v1072
      %1086 = vrot.lane.b32.xlu0 %v1084, 64
      %v1087 = vpop.permute.xlu0 %1086
      %v1089 = vsel %vm463, %v1087, 0
      %1091 = vmatprep.subr.bf16.mxu0 0
      %1092 = vmatpush1.bf16.msra.mxu0 0
      %1093 = vmatprep.subr.bf16.mxu0 0
      %1094 = vmatpush1.bf16.msra.mxu0 0
      %1095 = vmatprep.subr.bf16.mxu0 0
      %1096 = vmatpush1.bf16.msra.mxu0 0
      %1097 = vmatprep.subr.bf16.mxu0 0
      %1098 = vmatpush1.bf16.msra.mxu0 0
      %1099 = vmatprep.subr.bf16.mxu0 0
      %1100 = vmatpush1.bf16.msra.mxu0 0
      %1101 = vmatprep.subr.bf16.mxu0 0
      %1102 = vmatpush1.bf16.msra.mxu0 0
      %1103 = vmatprep.subr.bf16.mxu0 0
      %1104 = vmatpush1.bf16.msra.mxu0 %v460
      %1105 = vmatprep.subr.bf16.mxu0 0
      %1106 = vmatpush1.bf16.msra.mxu0 %v459
      %1107 = vmatprep.subr.bf16.mxu0 0
      %1108 = vmatpush2.bf16.msra.mxu0 0
      %1109 = vmatprep.subr.bf16.mxu0 0
      %1110 = vmatpush2.bf16.msra.mxu0 0
      %1111 = vmatprep.subr.bf16.mxu0 0
      %1112 = vmatpush2.bf16.msra.mxu0 0
      %1113 = vmatprep.subr.bf16.mxu0 0
      %1114 = vmatpush2.bf16.msra.mxu0 0
      %1115 = vmatprep.subr.bf16.mxu0 0
      %1116 = vmatpush2.bf16.msra.mxu0 0
      %1117 = vmatprep.subr.bf16.mxu0 0
      %1118 = vmatpush2.bf16.msra.mxu0 0
      %1119 = vmatprep.subr.bf16.mxu0 0
      %1120 = vmatpush2.bf16.msra.mxu0 0
      %1121 = vmatprep.subr.bf16.mxu0 0
      %1122 = vmatpush2.bf16.msra.mxu0 0
      %1123 = vmatprep.mubr.bf16.mxu0 0
      %1124 = vmatmul.mubr.bf16.gmra.mxu0 %v1089
      %v1125 = vpop.f32.mrf.mxu0
      %v1126 = vadd.f32 0.0, %v1125
      %v1127 = vpop.f32.mrf.mxu0
      %v1128 = vpop.f32.mrf.mxu0
      %v1129 = vpop.f32.mrf.mxu0
      %1130 = vdwg.mxu0
      %v1131 = vadd.f32 %v1083, %v1126
      %v1132 = vxor.u32 %v1131, 2147483648
      %v1133 = vmul.f32 %v1132, 1.442695
      %v1134 = vpow.pop %v1133
      %v1135 = vadd.f32 %v1134, 1.0
      %v1136 = vrcp.pop %v1135
      %v1137 = vmul.f32 1.0, %v1136
      %v1138 = vadd.f32 %v1126, %v520
      %1140 = vrot.lane.b32.xlu0 %v1138, 64
      %v1141 = vpop.permute.xlu0 %1140
      %v1143 = vmul.f32 %v1137, %v1141
      %1145 = vrot.lane.b32.xlu0 %v1143, 64
      %v1146 = vpop.permute.xlu0 %1145
      %v1148 = vadd.f32 %v1083, %v1146
      %v1149 = vtanh.pop %v1148
      %v1150 = vsub.f32 %v1072, %v1149
      %1152 = vrot.lane.b32.xlu0 %v1150, 96
      %v1153 = vpop.permute.xlu0 %1152
      %v1155 = vmul.f32 %v1137, %v1153
      %1157 = vrot.lane.b32.xlu0 %v1155, 32
      %v1158 = vpop.permute.xlu0 %1157
      %v1160 = vadd.f32 %v1149, %v1158
      %1162 = vrot.lane.b32.xlu0 %v1160, 64
      %v1163 = vpop.permute.xlu0 %1162
      %s1165 = scalar_lea.vmem %s272, %s1081
      %1166 = vst.msk [vmem:[%s1165] sm:$0x3] %vm550, %v1163
      %p1167 = scmp.lt.s32.totalorder %s16, 1
      %s1168 = scalar_select %p1167, %s16, 1
      %s1169 = smul.addr %s1168, 8
      %s1170 = smul.addr %s1169, 2
      %s1171 = scalar_lea.vmem %s5, %s1170
      // Predicated region
      $region41: #{_lambda_.2} parent=39 // pred_check
        %p1172 = pneg %p159
      $region42: #{_lambda_.2} parent=39 // pred_check_branch
        %1174 = sbr.rel (%p1172) target = $region44
      $region43: #{_lambda_.2} parent=39 // pred_region
        _
      $region44: #{_lambda_.2} parent=39 // pred_fallthru
        _
    $region40: #{_lambda_.2} parent=5 // pred_fallthru
      _
    %p1175 = scmp.le.s32.totalorder 2, %s11
    // Predicated region
    $region45: #{_lambda_.2} parent=5 // pred_check
      %p1176 = pneg %p1175
    $region46: #{_lambda_.2} parent=5 // pred_check_branch
      %1178 = sbr.rel (%p1176) target = $region48
    $region47: #{_lambda_.2} parent=5 // pred_region
      %s1179 = ssub.s32 %s11, 2
      // Predicated region
      $region49: #{_lambda_.2} parent=47 // pred_check
        %p1180 = pneg %p165
      $region50: #{_lambda_.2} parent=47 // pred_check_branch
        %1182 = sbr.rel (%p1180) target = $region52
      $region51: #{_lambda_.2} parent=47 // pred_region
        %p1183 = scmp.lt.s32.totalorder %s17, 1
        %s1184 = scalar_select %p1183, %s17, 1
        %s1185 = smul.addr %s1184, 8
        %s1186 = smul.addr %s1185, 2
        %s1187 = scalar_lea.vmem %s5, %s1186
      $region52: #{_lambda_.2} parent=47 // pred_fallthru
        _
    $region48: #{_lambda_.2} parent=5 // pred_fallthru
      _
  $region6: #{_lambda_.2} parent=0 // loop_footer
    %s15 = sadd.s32 1, %s11
  $region7: #{_lambda_.2} parent=0 // loop_footer_branch
    %10 = sbr.rel target = $region3
  $region8: #{_lambda_.2} parent=0 // loop_exit
    _

// kernel: _lambda_.3
$region0: #{_lambda_.3}
  #allocation0 [shape = 'u32[]', space=smem, size = 0x4, offset = 0x4, fixed_abs, tag = 'smem constant byte address 0x4 - core index']
  #allocation1 [shape = 'u32[144,128]{1,0:T(1,128)}', space=vmem, size = 0x12000, scoped, tag = 'internal scratch']
  #allocation2 [shape = 'f32[8,2,96]{2,1,0:T(2,128)}', space=vmem, size = 0x2000, scoped, tag = 'scratch operand']
  #allocation3 [shape = 'f32[1,1]{1,0:T(1,128)S(1)}', space=vmem, size = 0x200, scoped, tag = 'scoped memory for _lambda_.3']
  %s0 = inlined_call_operand.vmem [shape: f32[2,8,2,32], index: 0, kind: input, shape index: {}]
  %s1 = inlined_call_operand.vmem [shape: bf16[64,96], index: 1, kind: input, shape index: {}]
  %s2 = inlined_call_operand.vmem [shape: bf16[32,96], index: 2, kind: input, shape index: {}]
  %s3 = inlined_call_operand.vmem [shape: f32[1,96], index: 3, kind: input, shape index: {}]
  %s4 = inlined_call_operand.vmem [shape: f32[1,32], index: 4, kind: input, shape index: {}]
  %s5 = inlined_call_operand.vmem [shape: bf16[64,96], index: 5, kind: input, shape index: {}]
  %s6 = inlined_call_operand.vmem [shape: f32[1,96], index: 6, kind: input, shape index: {}]
  %s7 = inlined_call_operand.vmem [shape: f32[1,32], index: 7, kind: input, shape index: {}]
  %s8 = inlined_call_operand.vmem [shape: f32[1,64], index: 8, kind: input, shape index: {}]
  %s9 = inlined_call_operand.<no memory space> [shape: f32[1,1], index: 9, kind: input, shape index: {}]
  %s10 = inlined_call_operand.vmem [shape: f32[2,1], index: 10, kind: output, shape index: {}]
  %s11 = sld [smem:[#allocation0]]
  $region50: #{_lambda_.3} parent=0
    _
  %s13 = ssub.s32 1, %s11
  %s14 = scalar_select 0, %s13, %s11
  %v15 = vstv %s9
  %16 = vst [vmem:[#allocation3] sm:$0x1] %v15
  // Predicated region
  $region2: #{_lambda_.3} parent=0 // pred_check
    _
  $region3: #{_lambda_.3} parent=0 // pred_check_branch
    %18 = sbr.rel (0) target = $region5
  $region4: #{_lambda_.3} parent=0 // pred_region
    _
  $region5: #{_lambda_.3} parent=0 // pred_fallthru
    _
  // Predicated region
  $region6: #{_lambda_.3} parent=0 // pred_check
    _
  $region7: #{_lambda_.3} parent=0 // pred_check_branch
    %20 = sbr.rel (0) target = $region9
  $region8: #{_lambda_.3} parent=0 // pred_region
    _
  $region9: #{_lambda_.3} parent=0 // pred_fallthru
    _
  // Predicated region
  $region10: #{_lambda_.3} parent=0 // pred_check
    _
  $region11: #{_lambda_.3} parent=0 // pred_check_branch
    %22 = sbr.rel (0) target = $region13
  $region12: #{_lambda_.3} parent=0 // pred_region
    _
  $region13: #{_lambda_.3} parent=0 // pred_fallthru
    _
  // Predicated region
  $region14: #{_lambda_.3} parent=0 // pred_check
    _
  $region15: #{_lambda_.3} parent=0 // pred_check_branch
    %24 = sbr.rel (0) target = $region17
  $region16: #{_lambda_.3} parent=0 // pred_region
    _
  $region17: #{_lambda_.3} parent=0 // pred_fallthru
    _
  // Predicated region
  $region18: #{_lambda_.3} parent=0 // pred_check
    _
  $region19: #{_lambda_.3} parent=0 // pred_check_branch
    %26 = sbr.rel (0) target = $region21
  $region20: #{_lambda_.3} parent=0 // pred_region
    _
  $region21: #{_lambda_.3} parent=0 // pred_fallthru
    _
  // Predicated region
  $region22: #{_lambda_.3} parent=0 // pred_check
    _
  $region23: #{_lambda_.3} parent=0 // pred_check_branch
    %28 = sbr.rel (0) target = $region25
  $region24: #{_lambda_.3} parent=0 // pred_region
    _
  $region25: #{_lambda_.3} parent=0 // pred_fallthru
    _
  // Predicated region
  $region26: #{_lambda_.3} parent=0 // pred_check
    _
  $region27: #{_lambda_.3} parent=0 // pred_check_branch
    %30 = sbr.rel (0) target = $region29
  $region28: #{_lambda_.3} parent=0 // pred_region
    _
  $region29: #{_lambda_.3} parent=0 // pred_fallthru
    _
  // Predicated region
  $region30: #{_lambda_.3} parent=0 // pred_check
    _
  $region31: #{_lambda_.3} parent=0 // pred_check_branch
    %32 = sbr.rel (0) target = $region33
  $region32: #{_lambda_.3} parent=0 // pred_region
    _
  $region33: #{_lambda_.3} parent=0 // pred_fallthru
    _
  // Predicated region
  $region34: #{_lambda_.3} parent=0 // pred_check
    _
  $region35: #{_lambda_.3} parent=0 // pred_check_branch
    %34 = sbr.rel (0) target = $region37
  $region36: #{_lambda_.3} parent=0 // pred_region
    _
  $region37: #{_lambda_.3} parent=0 // pred_fallthru
    _
  // Predicated region
  $region38: #{_lambda_.3} parent=0 // pred_check
    _
  $region39: #{_lambda_.3} parent=0 // pred_check_branch
    %36 = sbr.rel (0) target = $region41
  $region40: #{_lambda_.3} parent=0 // pred_region
    _
  $region41: #{_lambda_.3} parent=0 // pred_fallthru
    _
  %v38 = vld [vmem:[%s0] sm:$0x3]
  %v39 = vld [vmem:[%s0 + $0x2] sm:$0x3]
  %v40 = vld [vmem:[%s0 + $0x4] sm:$0x3]
  %v41 = vld [vmem:[%s0 + $0x6] sm:$0x3]
  %v42 = vld [vmem:[%s0 + $0x8] sm:$0x3]
  %v43 = vld [vmem:[%s0 + $0xa] sm:$0x3]
  %v44 = vld [vmem:[%s0 + $0xc] sm:$0x3]
  %v45 = vld [vmem:[%s0 + $0xe] sm:$0x3]
  %v54 = vcombine.low %v38, %v39
  %v55 = vcombine.low %v40, %v41
  %v57 = vunpack.c.l.s4 1983009808
  %v58 = vunpack.c.0.s8 %v57
  %v59 = vlaneseq
  %v60 = vshrl.u32 %v59, 7
  %v61 = vsub.s32 %v58, %v60
  %v62 = vrot.slane %v54, %v61
  %v64 = vunpack.c.l.s4 1983009808
  %v65 = vunpack.c.0.s8 %v64
  %v66 = vlaneseq
  %v67 = vshrl.u32 %v66, 7
  %v68 = vsub.s32 %v65, %v67
  %v69 = vrot.slane %v55, %v68
  %v70 = vcombine.low %v62, %v69
  %v71 = vcombine.low %v42, %v43
  %v72 = vcombine.low %v44, %v45
  %v74 = vunpack.c.l.s4 1983009808
  %v75 = vunpack.c.0.s8 %v74
  %v76 = vlaneseq
  %v77 = vshrl.u32 %v76, 7
  %v78 = vsub.s32 %v75, %v77
  %v79 = vrot.slane %v71, %v78
  %v81 = vunpack.c.l.s4 1983009808
  %v82 = vunpack.c.0.s8 %v81
  %v83 = vlaneseq
  %v84 = vshrl.u32 %v83, 7
  %v85 = vsub.s32 %v82, %v84
  %v86 = vrot.slane %v72, %v85
  %v87 = vcombine.low %v79, %v86
  %v90 = vpack.c.bf16 %v87, %v70
  %s91 = scalar_lea.vmem %s0, 16
  %v92 = vld [vmem:[%s91] sm:$0x3]
  %v93 = vld [vmem:[%s91 + $0x2] sm:$0x3]
  %v94 = vld [vmem:[%s91 + $0x4] sm:$0x3]
  %v95 = vld [vmem:[%s91 + $0x6] sm:$0x3]
  %v96 = vld [vmem:[%s91 + $0x8] sm:$0x3]
  %v97 = vld [vmem:[%s91 + $0xa] sm:$0x3]
  %v98 = vld [vmem:[%s91 + $0xc] sm:$0x3]
  %v99 = vld [vmem:[%s91 + $0xe] sm:$0x3]
  %v108 = vcombine.low %v92, %v93
  %v109 = vcombine.low %v94, %v95
  %v111 = vunpack.c.l.s4 1983009808
  %v112 = vunpack.c.0.s8 %v111
  %v113 = vlaneseq
  %v114 = vshrl.u32 %v113, 7
  %v115 = vsub.s32 %v112, %v114
  %v116 = vrot.slane %v108, %v115
  %v118 = vunpack.c.l.s4 1983009808
  %v119 = vunpack.c.0.s8 %v118
  %v120 = vlaneseq
  %v121 = vshrl.u32 %v120, 7
  %v122 = vsub.s32 %v119, %v121
  %v123 = vrot.slane %v109, %v122
  %v124 = vcombine.low %v116, %v123
  %v125 = vcombine.low %v96, %v97
  %v126 = vcombine.low %v98, %v99
  %v128 = vunpack.c.l.s4 1983009808
  %v129 = vunpack.c.0.s8 %v128
  %v130 = vlaneseq
  %v131 = vshrl.u32 %v130, 7
  %v132 = vsub.s32 %v129, %v131
  %v133 = vrot.slane %v125, %v132
  %v135 = vunpack.c.l.s4 1983009808
  %v136 = vunpack.c.0.s8 %v135
  %v137 = vlaneseq
  %v138 = vshrl.u32 %v137, 7
  %v139 = vsub.s32 %v136, %v138
  %v140 = vrot.slane %v126, %v139
  %v141 = vcombine.low %v133, %v140
  %v144 = vpack.c.bf16 %v141, %v124
  %v145 = vld [vmem:[%s1] sm:$0xf]
  %v146 = vld [vmem:[%s1 + $0x4] sm:$0xf]
  %v147 = vld [vmem:[%s1 + $0x8] sm:$0xf]
  %v148 = vld [vmem:[%s1 + $0xc] sm:$0xf]
  %v149 = vld [vmem:[%s1 + $0x10] sm:$0xf]
  %v150 = vld [vmem:[%s1 + $0x14] sm:$0xf]
  %v151 = vld [vmem:[%s1 + $0x18] sm:$0xf]
  %v152 = vld [vmem:[%s1 + $0x1c] sm:$0xf]
  %v157 = vunpack.c.l.b16 %v149
  %v158 = vunpack.c.l.b16 %v150
  %v159 = vunpack.c.l.b16 %v151
  %v160 = vunpack.c.l.b16 %v152
  %v161 = vpack.c.b16 %v158, %v157
  %v162 = vpack.c.b16 %v160, %v159
  %vm165 = vcmask 261120
  %v167 = vsel %vm165, %v144, 0
  %169 = vmatprep.subr.bf16.mxu0 0
  %170 = vmatpush1.bf16.msra.mxu0 0
  %171 = vmatprep.subr.bf16.mxu0 0
  %172 = vmatpush1.bf16.msra.mxu0 0
  %173 = vmatprep.subr.bf16.mxu0 0
  %174 = vmatpush1.bf16.msra.mxu0 0
  %175 = vmatprep.subr.bf16.mxu0 0
  %176 = vmatpush1.bf16.msra.mxu0 0
  %177 = vmatprep.subr.bf16.mxu0 0
  %178 = vmatpush1.bf16.msra.mxu0 0
  %179 = vmatprep.subr.bf16.mxu0 0
  %180 = vmatpush1.bf16.msra.mxu0 0
  %181 = vmatprep.subr.bf16.mxu0 0
  %182 = vmatpush1.bf16.msra.mxu0 %v162
  %183 = vmatprep.subr.bf16.mxu0 0
  %184 = vmatpush1.bf16.msra.mxu0 %v161
  %185 = vmatprep.subr.bf16.mxu0 0
  %186 = vmatpush2.bf16.msra.mxu0 0
  %187 = vmatprep.subr.bf16.mxu0 0
  %188 = vmatpush2.bf16.msra.mxu0 0
  %189 = vmatprep.subr.bf16.mxu0 0
  %190 = vmatpush2.bf16.msra.mxu0 0
  %191 = vmatprep.subr.bf16.mxu0 0
  %192 = vmatpush2.bf16.msra.mxu0 0
  %193 = vmatprep.subr.bf16.mxu0 0
  %194 = vmatpush2.bf16.msra.mxu0 0
  %195 = vmatprep.subr.bf16.mxu0 0
  %196 = vmatpush2.bf16.msra.mxu0 0
  %197 = vmatprep.subr.bf16.mxu0 0
  %198 = vmatpush2.bf16.msra.mxu0 0
  %199 = vmatprep.subr.bf16.mxu0 0
  %200 = vmatpush2.bf16.msra.mxu0 0
  %201 = vmatprep.mubr.bf16.mxu0 0
  %202 = vmatmul.mubr.bf16.gmra.mxu0 %v167
  %v203 = vpop.f32.mrf.mxu0
  %v204 = vadd.f32 0.0, %v203
  %v205 = vpop.f32.mrf.mxu0
  %v206 = vpop.f32.mrf.mxu0
  %v207 = vadd.f32 0.0, %v206
  %v208 = vpop.f32.mrf.mxu0
  %209 = vdwg.mxu0
  %v214 = vunpack.c.l.b16 %v145
  %v215 = vunpack.c.l.b16 %v146
  %v216 = vunpack.c.l.b16 %v147
  %v217 = vunpack.c.l.b16 %v148
  %v218 = vpack.c.b16 %v215, %v214
  %v219 = vpack.c.b16 %v217, %v216
  %v223 = vsel %vm165, %v90, 0
  %225 = vmatprep.subr.bf16.mxu0 0
  %226 = vmatpush1.bf16.msra.mxu0 0
  %227 = vmatprep.subr.bf16.mxu0 0
  %228 = vmatpush1.bf16.msra.mxu0 0
  %229 = vmatprep.subr.bf16.mxu0 0
  %230 = vmatpush1.bf16.msra.mxu0 0
  %231 = vmatprep.subr.bf16.mxu0 0
  %232 = vmatpush1.bf16.msra.mxu0 0
  %233 = vmatprep.subr.bf16.mxu0 0
  %234 = vmatpush1.bf16.msra.mxu0 0
  %235 = vmatprep.subr.bf16.mxu0 0
  %236 = vmatpush1.bf16.msra.mxu0 0
  %237 = vmatprep.subr.bf16.mxu0 0
  %238 = vmatpush1.bf16.msra.mxu0 %v219
  %239 = vmatprep.subr.bf16.mxu0 0
  %240 = vmatpush1.bf16.msra.mxu0 %v218
  %241 = vmatprep.subr.bf16.mxu0 0
  %242 = vmatpush2.bf16.msra.mxu0 0
  %243 = vmatprep.subr.bf16.mxu0 0
  %244 = vmatpush2.bf16.msra.mxu0 0
  %245 = vmatprep.subr.bf16.mxu0 0
  %246 = vmatpush2.bf16.msra.mxu0 0
  %247 = vmatprep.subr.bf16.mxu0 0
  %248 = vmatpush2.bf16.msra.mxu0 0
  %249 = vmatprep.subr.bf16.mxu0 0
  %250 = vmatpush2.bf16.msra.mxu0 0
  %251 = vmatprep.subr.bf16.mxu0 0
  %252 = vmatpush2.bf16.msra.mxu0 0
  %253 = vmatprep.subr.bf16.mxu0 0
  %254 = vmatpush2.bf16.msra.mxu0 0
  %255 = vmatprep.subr.bf16.mxu0 0
  %256 = vmatpush2.bf16.msra.mxu0 0
  %257 = vmatprep.mubr.bf16.mxu0 0
  %258 = vmatmul.mubr.bf16.gmra.mxu0 %v223
  %v259 = vpop.f32.mrf.mxu0
  %v260 = vadd.f32 %v204, %v259
  %v261 = vpop.f32.mrf.mxu0
  %v262 = vpop.f32.mrf.mxu0
  %v263 = vadd.f32 %v207, %v262
  %v264 = vpop.f32.mrf.mxu0
  %265 = vdwg.mxu0
  %v266 = vld [vmem:[%s3] sm:$0x1]
  %v268 = vlaneseq
  %v269 = vshrl.u32 %v268, 7
  %v270 = vsub.s32 0, %v269
  %v271 = vrot.slane %v266, %v270
  %v273 = vadd.f32 %v260, %v271
  %v274 = vadd.f32 %v263, %v271
  %v277 = vcombine.high %v273, %v273
  %v279 = vunpack.c.l.s4 1983009808
  %v280 = vunpack.c.0.s8 %v279
  %v281 = vlaneseq
  %v282 = vshrl.u32 %v281, 7
  %v283 = vsub.s32 %v280, %v282
  %v284 = vrot.slane %v273, %v283
  %v286 = vunpack.c.l.s4 1983009808
  %v287 = vunpack.c.0.s8 %v286
  %v288 = vlaneseq
  %v289 = vshrl.u32 %v288, 7
  %v290 = vsub.s32 %v287, %v289
  %v291 = vrot.slane %v277, %v290
  %v292 = vcombine.high %v284, %v284
  %v293 = vcombine.high %v291, %v291
  %v294 = vcombine.high %v274, %v274
  %v296 = vunpack.c.l.s4 1983009808
  %v297 = vunpack.c.0.s8 %v296
  %v298 = vlaneseq
  %v299 = vshrl.u32 %v298, 7
  %v300 = vsub.s32 %v297, %v299
  %v301 = vrot.slane %v274, %v300
  %v303 = vunpack.c.l.s4 1983009808
  %v304 = vunpack.c.0.s8 %v303
  %v305 = vlaneseq
  %v306 = vshrl.u32 %v305, 7
  %v307 = vsub.s32 %v304, %v306
  %v308 = vrot.slane %v294, %v307
  %v309 = vcombine.high %v301, %v301
  %v310 = vcombine.high %v308, %v308
  %vm319 = vcmask 779264
  %320 = vst.msk [vmem:[#allocation2] sm:$0x3] %vm319, %v284
  %321 = vst.msk [vmem:[#allocation2 + $0x2] sm:$0x3] %vm319, %v292
  %322 = vst.msk [vmem:[#allocation2 + $0x4] sm:$0x3] %vm319, %v291
  %323 = vst.msk [vmem:[#allocation2 + $0x6] sm:$0x3] %vm319, %v293
  %324 = vst.msk [vmem:[#allocation2 + $0x8] sm:$0x3] %vm319, %v301
  %325 = vst.msk [vmem:[#allocation2 + $0xa] sm:$0x3] %vm319, %v309
  %326 = vst.msk [vmem:[#allocation2 + $0xc] sm:$0x3] %vm319, %v308
  %327 = vst.msk [vmem:[#allocation2 + $0xe] sm:$0x3] %vm319, %v310
  %v328 = vld [vmem:[%s2] sm:$0xf]
  %v329 = vld [vmem:[%s2 + $0x4] sm:$0xf]
  %v330 = vld [vmem:[%s2 + $0x8] sm:$0xf]
  %v331 = vld [vmem:[%s2 + $0xc] sm:$0xf]
  %v332 = vld [vmem:[%s4] sm:$0x1]
  %v333 = vld [vmem:[#allocation2] sm:$0x3]
  %v338 = vunpack.c.l.b16 %v328
  %v339 = vunpack.c.l.b16 %v329
  %v340 = vunpack.c.l.b16 %v330
  %v341 = vunpack.c.l.b16 %v331
  %v342 = vpack.c.b16 %v339, %v338
  %v343 = vpack.c.b16 %v341, %v340
  %v347 = vsel %vm165, 0, 0
  %349 = vmatprep.subr.bf16.mxu0 0
  %350 = vmatpush1.bf16.msra.mxu0 0
  %351 = vmatprep.subr.bf16.mxu0 0
  %352 = vmatpush1.bf16.msra.mxu0 0
  %353 = vmatprep.subr.bf16.mxu0 0
  %354 = vmatpush1.bf16.msra.mxu0 0
  %355 = vmatprep.subr.bf16.mxu0 0
  %356 = vmatpush1.bf16.msra.mxu0 0
  %357 = vmatprep.subr.bf16.mxu0 0
  %358 = vmatpush1.bf16.msra.mxu0 0
  %359 = vmatprep.subr.bf16.mxu0 0
  %360 = vmatpush1.bf16.msra.mxu0 0
  %361 = vmatprep.subr.bf16.mxu0 0
  %362 = vmatpush1.bf16.msra.mxu0 %v343
  %363 = vmatprep.subr.bf16.mxu0 0
  %364 = vmatpush1.bf16.msra.mxu0 %v342
  %365 = vmatprep.subr.bf16.mxu0 0
  %366 = vmatpush2.bf16.msra.mxu0 0
  %367 = vmatprep.subr.bf16.mxu0 0
  %368 = vmatpush2.bf16.msra.mxu0 0
  %369 = vmatprep.subr.bf16.mxu0 0
  %370 = vmatpush2.bf16.msra.mxu0 0
  %371 = vmatprep.subr.bf16.mxu0 0
  %372 = vmatpush2.bf16.msra.mxu0 0
  %373 = vmatprep.subr.bf16.mxu0 0
  %374 = vmatpush2.bf16.msra.mxu0 0
  %375 = vmatprep.subr.bf16.mxu0 0
  %376 = vmatpush2.bf16.msra.mxu0 0
  %377 = vmatprep.subr.bf16.mxu0 0
  %378 = vmatpush2.bf16.msra.mxu0 0
  %379 = vmatprep.subr.bf16.mxu0 0
  %380 = vmatpush2.bf16.msra.mxu0 0
  %381 = vmatprep.mubr.bf16.mxu0 0
  %382 = vmatmul.mubr.bf16.gmra.mxu0 %v347
  %v383 = vpop.f32.mrf.mxu0
  %v384 = vadd.f32 0.0, %v383
  %v385 = vpop.f32.mrf.mxu0
  %v386 = vpop.f32.mrf.mxu0
  %v387 = vpop.f32.mrf.mxu0
  %388 = vdwg.mxu0
  %v389 = vadd.f32 %v333, %v384
  %v390 = vxor.u32 %v389, 2147483648
  %v391 = vmul.f32 %v390, 1.442695
  %v392 = vpow.pop %v391
  %v393 = vadd.f32 %v392, 1.0
  %v394 = vrcp.pop %v393
  %v395 = vmul.f32 1.0, %v394
  %v397 = vlaneseq
  %v398 = vshrl.u32 %v397, 7
  %v399 = vsub.s32 0, %v398
  %v400 = vrot.slane %v332, %v399
  %401 = vrot.lane.b32.xlu0 %v400, 64
  %v402 = vpop.permute.xlu0 %401
  %v404 = vadd.f32 %v384, %v402
  %406 = vrot.lane.b32.xlu0 %v404, 64
  %v407 = vpop.permute.xlu0 %406
  %v409 = vmul.f32 %v395, %v407
  %411 = vrot.lane.b32.xlu0 %v409, 64
  %v412 = vpop.permute.xlu0 %411
  %v414 = vadd.f32 %v333, %v412
  %v415 = vtanh.pop %v414
  %v416 = vsub.f32 0.0, %v415
  %418 = vrot.lane.b32.xlu0 %v416, 96
  %v419 = vpop.permute.xlu0 %418
  %v421 = vmul.f32 %v395, %v419
  %423 = vrot.lane.b32.xlu0 %v421, 32
  %v424 = vpop.permute.xlu0 %423
  %v426 = vadd.f32 %v415, %v424
  %s427 = scalar_lea.vmem [#allocation2], 2
  %v428 = vld [vmem:[%s427] sm:$0x3]
  %v429 = vpack.c.bf16 %v426, %v426
  %431 = vrot.lane.b32.xlu0 %v429, 64
  %v432 = vpop.permute.xlu0 %431
  %v434 = vsel %vm165, %v432, 0
  %436 = vmatprep.subr.bf16.mxu0 0
  %437 = vmatpush1.bf16.msra.mxu0 0
  %438 = vmatprep.subr.bf16.mxu0 0
  %439 = vmatpush1.bf16.msra.mxu0 0
  %440 = vmatprep.subr.bf16.mxu0 0
  %441 = vmatpush1.bf16.msra.mxu0 0
  %442 = vmatprep.subr.bf16.mxu0 0
  %443 = vmatpush1.bf16.msra.mxu0 0
  %444 = vmatprep.subr.bf16.mxu0 0
  %445 = vmatpush1.bf16.msra.mxu0 0
  %446 = vmatprep.subr.bf16.mxu0 0
  %447 = vmatpush1.bf16.msra.mxu0 0
  %448 = vmatprep.subr.bf16.mxu0 0
  %449 = vmatpush1.bf16.msra.mxu0 %v343
  %450 = vmatprep.subr.bf16.mxu0 0
  %451 = vmatpush1.bf16.msra.mxu0 %v342
  %452 = vmatprep.subr.bf16.mxu0 0
  %453 = vmatpush2.bf16.msra.mxu0 0
  %454 = vmatprep.subr.bf16.mxu0 0
  %455 = vmatpush2.bf16.msra.mxu0 0
  %456 = vmatprep.subr.bf16.mxu0 0
  %457 = vmatpush2.bf16.msra.mxu0 0
  %458 = vmatprep.subr.bf16.mxu0 0
  %459 = vmatpush2.bf16.msra.mxu0 0
  %460 = vmatprep.subr.bf16.mxu0 0
  %461 = vmatpush2.bf16.msra.mxu0 0
  %462 = vmatprep.subr.bf16.mxu0 0
  %463 = vmatpush2.bf16.msra.mxu0 0
  %464 = vmatprep.subr.bf16.mxu0 0
  %465 = vmatpush2.bf16.msra.mxu0 0
  %466 = vmatprep.subr.bf16.mxu0 0
  %467 = vmatpush2.bf16.msra.mxu0 0
  %468 = vmatprep.mubr.bf16.mxu0 0
  %469 = vmatmul.mubr.bf16.gmra.mxu0 %v434
  %v470 = vpop.f32.mrf.mxu0
  %v471 = vadd.f32 0.0, %v470
  %v472 = vpop.f32.mrf.mxu0
  %v473 = vpop.f32.mrf.mxu0
  %v474 = vpop.f32.mrf.mxu0
  %475 = vdwg.mxu0
  %v476 = vadd.f32 %v428, %v471
  %v477 = vxor.u32 %v476, 2147483648
  %v478 = vmul.f32 %v477, 1.442695
  %v479 = vpow.pop %v478
  %v480 = vadd.f32 %v479, 1.0
  %v481 = vrcp.pop %v480
  %v482 = vmul.f32 1.0, %v481
  %v483 = vadd.f32 %v471, %v402
  %485 = vrot.lane.b32.xlu0 %v483, 64
  %v486 = vpop.permute.xlu0 %485
  %v488 = vmul.f32 %v482, %v486
  %490 = vrot.lane.b32.xlu0 %v488, 64
  %v491 = vpop.permute.xlu0 %490
  %v493 = vadd.f32 %v428, %v491
  %v494 = vtanh.pop %v493
  %v495 = vsub.f32 %v426, %v494
  %497 = vrot.lane.b32.xlu0 %v495, 96
  %v498 = vpop.permute.xlu0 %497
  %v500 = vmul.f32 %v482, %v498
  %502 = vrot.lane.b32.xlu0 %v500, 32
  %v503 = vpop.permute.xlu0 %502
  %v505 = vadd.f32 %v494, %v503
  %s506 = scalar_lea.vmem [#allocation2], 4
  %v507 = vld [vmem:[%s506] sm:$0x3]
  %v508 = vpack.c.bf16 %v505, %v505
  %510 = vrot.lane.b32.xlu0 %v508, 64
  %v511 = vpop.permute.xlu0 %510
  %v513 = vsel %vm165, %v511, 0
  %515 = vmatprep.subr.bf16.mxu0 0
  %516 = vmatpush1.bf16.msra.mxu0 0
  %517 = vmatprep.subr.bf16.mxu0 0
  %518 = vmatpush1.bf16.msra.mxu0 0
  %519 = vmatprep.subr.bf16.mxu0 0
  %520 = vmatpush1.bf16.msra.mxu0 0
  %521 = vmatprep.subr.bf16.mxu0 0
  %522 = vmatpush1.bf16.msra.mxu0 0
  %523 = vmatprep.subr.bf16.mxu0 0
  %524 = vmatpush1.bf16.msra.mxu0 0
  %525 = vmatprep.subr.bf16.mxu0 0
  %526 = vmatpush1.bf16.msra.mxu0 0
  %527 = vmatprep.subr.bf16.mxu0 0
  %528 = vmatpush1.bf16.msra.mxu0 %v343
  %529 = vmatprep.subr.bf16.mxu0 0
  %530 = vmatpush1.bf16.msra.mxu0 %v342
  %531 = vmatprep.subr.bf16.mxu0 0
  %532 = vmatpush2.bf16.msra.mxu0 0
  %533 = vmatprep.subr.bf16.mxu0 0
  %534 = vmatpush2.bf16.msra.mxu0 0
  %535 = vmatprep.subr.bf16.mxu0 0
  %536 = vmatpush2.bf16.msra.mxu0 0
  %537 = vmatprep.subr.bf16.mxu0 0
  %538 = vmatpush2.bf16.msra.mxu0 0
  %539 = vmatprep.subr.bf16.mxu0 0
  %540 = vmatpush2.bf16.msra.mxu0 0
  %541 = vmatprep.subr.bf16.mxu0 0
  %542 = vmatpush2.bf16.msra.mxu0 0
  %543 = vmatprep.subr.bf16.mxu0 0
  %544 = vmatpush2.bf16.msra.mxu0 0
  %545 = vmatprep.subr.bf16.mxu0 0
  %546 = vmatpush2.bf16.msra.mxu0 0
  %547 = vmatprep.mubr.bf16.mxu0 0
  %548 = vmatmul.mubr.bf16.gmra.mxu0 %v513
  %v549 = vpop.f32.mrf.mxu0
  %v550 = vadd.f32 0.0, %v549
  %v551 = vpop.f32.mrf.mxu0
  %v552 = vpop.f32.mrf.mxu0
  %v553 = vpop.f32.mrf.mxu0
  %554 = vdwg.mxu0
  %v555 = vadd.f32 %v507, %v550
  %v556 = vxor.u32 %v555, 2147483648
  %v557 = vmul.f32 %v556, 1.442695
  %v558 = vpow.pop %v557
  %v559 = vadd.f32 %v558, 1.0
  %v560 = vrcp.pop %v559
  %v561 = vmul.f32 1.0, %v560
  %v562 = vadd.f32 %v550, %v402
  %564 = vrot.lane.b32.xlu0 %v562, 64
  %v565 = vpop.permute.xlu0 %564
  %v567 = vmul.f32 %v561, %v565
  %569 = vrot.lane.b32.xlu0 %v567, 64
  %v570 = vpop.permute.xlu0 %569
  %v572 = vadd.f32 %v507, %v570
  %v573 = vtanh.pop %v572
  %v574 = vsub.f32 %v505, %v573
  %576 = vrot.lane.b32.xlu0 %v574, 96
  %v577 = vpop.permute.xlu0 %576
  %v579 = vmul.f32 %v561, %v577
  %581 = vrot.lane.b32.xlu0 %v579, 32
  %v582 = vpop.permute.xlu0 %581
  %v584 = vadd.f32 %v573, %v582
  %s585 = scalar_lea.vmem [#allocation2], 6
  %v586 = vld [vmem:[%s585] sm:$0x3]
  %v587 = vpack.c.bf16 %v584, %v584
  %589 = vrot.lane.b32.xlu0 %v587, 64
  %v590 = vpop.permute.xlu0 %589
  %v592 = vsel %vm165, %v590, 0
  %594 = vmatprep.subr.bf16.mxu0 0
  %595 = vmatpush1.bf16.msra.mxu0 0
  %596 = vmatprep.subr.bf16.mxu0 0
  %597 = vmatpush1.bf16.msra.mxu0 0
  %598 = vmatprep.subr.bf16.mxu0 0
  %599 = vmatpush1.bf16.msra.mxu0 0
  %600 = vmatprep.subr.bf16.mxu0 0
  %601 = vmatpush1.bf16.msra.mxu0 0
  %602 = vmatprep.subr.bf16.mxu0 0
  %603 = vmatpush1.bf16.msra.mxu0 0
  %604 = vmatprep.subr.bf16.mxu0 0
  %605 = vmatpush1.bf16.msra.mxu0 0
  %606 = vmatprep.subr.bf16.mxu0 0
  %607 = vmatpush1.bf16.msra.mxu0 %v343
  %608 = vmatprep.subr.bf16.mxu0 0
  %609 = vmatpush1.bf16.msra.mxu0 %v342
  %610 = vmatprep.subr.bf16.mxu0 0
  %611 = vmatpush2.bf16.msra.mxu0 0
  %612 = vmatprep.subr.bf16.mxu0 0
  %613 = vmatpush2.bf16.msra.mxu0 0
  %614 = vmatprep.subr.bf16.mxu0 0
  %615 = vmatpush2.bf16.msra.mxu0 0
  %616 = vmatprep.subr.bf16.mxu0 0
  %617 = vmatpush2.bf16.msra.mxu0 0
  %618 = vmatprep.subr.bf16.mxu0 0
  %619 = vmatpush2.bf16.msra.mxu0 0
  %620 = vmatprep.subr.bf16.mxu0 0
  %621 = vmatpush2.bf16.msra.mxu0 0
  %622 = vmatprep.subr.bf16.mxu0 0
  %623 = vmatpush2.bf16.msra.mxu0 0
  %624 = vmatprep.subr.bf16.mxu0 0
  %625 = vmatpush2.bf16.msra.mxu0 0
  %626 = vmatprep.mubr.bf16.mxu0 0
  %627 = vmatmul.mubr.bf16.gmra.mxu0 %v592
  %v628 = vpop.f32.mrf.mxu0
  %v629 = vadd.f32 0.0, %v628
  %v630 = vpop.f32.mrf.mxu0
  %v631 = vpop.f32.mrf.mxu0
  %v632 = vpop.f32.mrf.mxu0
  %633 = vdwg.mxu0
  %v634 = vadd.f32 %v586, %v629
  %v635 = vxor.u32 %v634, 2147483648
  %v636 = vmul.f32 %v635, 1.442695
  %v637 = vpow.pop %v636
  %v638 = vadd.f32 %v637, 1.0
  %v639 = vrcp.pop %v638
  %v640 = vmul.f32 1.0, %v639
  %v641 = vadd.f32 %v629, %v402
  %643 = vrot.lane.b32.xlu0 %v641, 64
  %v644 = vpop.permute.xlu0 %643
  %v646 = vmul.f32 %v640, %v644
  %648 = vrot.lane.b32.xlu0 %v646, 64
  %v649 = vpop.permute.xlu0 %648
  %v651 = vadd.f32 %v586, %v649
  %v652 = vtanh.pop %v651
  %v653 = vsub.f32 %v584, %v652
  %655 = vrot.lane.b32.xlu0 %v653, 96
  %v656 = vpop.permute.xlu0 %655
  %v658 = vmul.f32 %v640, %v656
  %660 = vrot.lane.b32.xlu0 %v658, 32
  %v661 = vpop.permute.xlu0 %660
  %v663 = vadd.f32 %v652, %v661
  %s664 = scalar_lea.vmem [#allocation2], 8
  %v665 = vld [vmem:[%s664] sm:$0x3]
  %v666 = vpack.c.bf16 %v663, %v663
  %668 = vrot.lane.b32.xlu0 %v666, 64
  %v669 = vpop.permute.xlu0 %668
  %v671 = vsel %vm165, %v669, 0
  %673 = vmatprep.subr.bf16.mxu0 0
  %674 = vmatpush1.bf16.msra.mxu0 0
  %675 = vmatprep.subr.bf16.mxu0 0
  %676 = vmatpush1.bf16.msra.mxu0 0
  %677 = vmatprep.subr.bf16.mxu0 0
  %678 = vmatpush1.bf16.msra.mxu0 0
  %679 = vmatprep.subr.bf16.mxu0 0
  %680 = vmatpush1.bf16.msra.mxu0 0
  %681 = vmatprep.subr.bf16.mxu0 0
  %682 = vmatpush1.bf16.msra.mxu0 0
  %683 = vmatprep.subr.bf16.mxu0 0
  %684 = vmatpush1.bf16.msra.mxu0 0
  %685 = vmatprep.subr.bf16.mxu0 0
  %686 = vmatpush1.bf16.msra.mxu0 %v343
  %687 = vmatprep.subr.bf16.mxu0 0
  %688 = vmatpush1.bf16.msra.mxu0 %v342
  %689 = vmatprep.subr.bf16.mxu0 0
  %690 = vmatpush2.bf16.msra.mxu0 0
  %691 = vmatprep.subr.bf16.mxu0 0
  %692 = vmatpush2.bf16.msra.mxu0 0
  %693 = vmatprep.subr.bf16.mxu0 0
  %694 = vmatpush2.bf16.msra.mxu0 0
  %695 = vmatprep.subr.bf16.mxu0 0
  %696 = vmatpush2.bf16.msra.mxu0 0
  %697 = vmatprep.subr.bf16.mxu0 0
  %698 = vmatpush2.bf16.msra.mxu0 0
  %699 = vmatprep.subr.bf16.mxu0 0
  %700 = vmatpush2.bf16.msra.mxu0 0
  %701 = vmatprep.subr.bf16.mxu0 0
  %702 = vmatpush2.bf16.msra.mxu0 0
  %703 = vmatprep.subr.bf16.mxu0 0
  %704 = vmatpush2.bf16.msra.mxu0 0
  %705 = vmatprep.mubr.bf16.mxu0 0
  %706 = vmatmul.mubr.bf16.gmra.mxu0 %v671
  %v707 = vpop.f32.mrf.mxu0
  %v708 = vadd.f32 0.0, %v707
  %v709 = vpop.f32.mrf.mxu0
  %v710 = vpop.f32.mrf.mxu0
  %v711 = vpop.f32.mrf.mxu0
  %712 = vdwg.mxu0
  %v713 = vadd.f32 %v665, %v708
  %v714 = vxor.u32 %v713, 2147483648
  %v715 = vmul.f32 %v714, 1.442695
  %v716 = vpow.pop %v715
  %v717 = vadd.f32 %v716, 1.0
  %v718 = vrcp.pop %v717
  %v719 = vmul.f32 1.0, %v718
  %v720 = vadd.f32 %v708, %v402
  %722 = vrot.lane.b32.xlu0 %v720, 64
  %v723 = vpop.permute.xlu0 %722
  %v725 = vmul.f32 %v719, %v723
  %727 = vrot.lane.b32.xlu0 %v725, 64
  %v728 = vpop.permute.xlu0 %727
  %v730 = vadd.f32 %v665, %v728
  %v731 = vtanh.pop %v730
  %v732 = vsub.f32 %v663, %v731
  %734 = vrot.lane.b32.xlu0 %v732, 96
  %v735 = vpop.permute.xlu0 %734
  %v737 = vmul.f32 %v719, %v735
  %739 = vrot.lane.b32.xlu0 %v737, 32
  %v740 = vpop.permute.xlu0 %739
  %v742 = vadd.f32 %v731, %v740
  %s743 = scalar_lea.vmem [#allocation2], 10
  %v744 = vld [vmem:[%s743] sm:$0x3]
  %v745 = vpack.c.bf16 %v742, %v742
  %747 = vrot.lane.b32.xlu0 %v745, 64
  %v748 = vpop.permute.xlu0 %747
  %v750 = vsel %vm165, %v748, 0
  %752 = vmatprep.subr.bf16.mxu0 0
  %753 = vmatpush1.bf16.msra.mxu0 0
  %754 = vmatprep.subr.bf16.mxu0 0
  %755 = vmatpush1.bf16.msra.mxu0 0
  %756 = vmatprep.subr.bf16.mxu0 0
  %757 = vmatpush1.bf16.msra.mxu0 0
  %758 = vmatprep.subr.bf16.mxu0 0
  %759 = vmatpush1.bf16.msra.mxu0 0
  %760 = vmatprep.subr.bf16.mxu0 0
  %761 = vmatpush1.bf16.msra.mxu0 0
  %762 = vmatprep.subr.bf16.mxu0 0
  %763 = vmatpush1.bf16.msra.mxu0 0
  %764 = vmatprep.subr.bf16.mxu0 0
  %765 = vmatpush1.bf16.msra.mxu0 %v343
  %766 = vmatprep.subr.bf16.mxu0 0
  %767 = vmatpush1.bf16.msra.mxu0 %v342
  %768 = vmatprep.subr.bf16.mxu0 0
  %769 = vmatpush2.bf16.msra.mxu0 0
  %770 = vmatprep.subr.bf16.mxu0 0
  %771 = vmatpush2.bf16.msra.mxu0 0
  %772 = vmatprep.subr.bf16.mxu0 0
  %773 = vmatpush2.bf16.msra.mxu0 0
  %774 = vmatprep.subr.bf16.mxu0 0
  %775 = vmatpush2.bf16.msra.mxu0 0
  %776 = vmatprep.subr.bf16.mxu0 0
  %777 = vmatpush2.bf16.msra.mxu0 0
  %778 = vmatprep.subr.bf16.mxu0 0
  %779 = vmatpush2.bf16.msra.mxu0 0
  %780 = vmatprep.subr.bf16.mxu0 0
  %781 = vmatpush2.bf16.msra.mxu0 0
  %782 = vmatprep.subr.bf16.mxu0 0
  %783 = vmatpush2.bf16.msra.mxu0 0
  %784 = vmatprep.mubr.bf16.mxu0 0
  %785 = vmatmul.mubr.bf16.gmra.mxu0 %v750
  %v786 = vpop.f32.mrf.mxu0
  %v787 = vadd.f32 0.0, %v786
  %v788 = vpop.f32.mrf.mxu0
  %v789 = vpop.f32.mrf.mxu0
  %v790 = vpop.f32.mrf.mxu0
  %791 = vdwg.mxu0
  %v792 = vadd.f32 %v744, %v787
  %v793 = vxor.u32 %v792, 2147483648
  %v794 = vmul.f32 %v793, 1.442695
  %v795 = vpow.pop %v794
  %v796 = vadd.f32 %v795, 1.0
  %v797 = vrcp.pop %v796
  %v798 = vmul.f32 1.0, %v797
  %v799 = vadd.f32 %v787, %v402
  %801 = vrot.lane.b32.xlu0 %v799, 64
  %v802 = vpop.permute.xlu0 %801
  %v804 = vmul.f32 %v798, %v802
  %806 = vrot.lane.b32.xlu0 %v804, 64
  %v807 = vpop.permute.xlu0 %806
  %v809 = vadd.f32 %v744, %v807
  %v810 = vtanh.pop %v809
  %v811 = vsub.f32 %v742, %v810
  %813 = vrot.lane.b32.xlu0 %v811, 96
  %v814 = vpop.permute.xlu0 %813
  %v816 = vmul.f32 %v798, %v814
  %818 = vrot.lane.b32.xlu0 %v816, 32
  %v819 = vpop.permute.xlu0 %818
  %v821 = vadd.f32 %v810, %v819
  %s822 = scalar_lea.vmem [#allocation2], 12
  %v823 = vld [vmem:[%s822] sm:$0x3]
  %v824 = vpack.c.bf16 %v821, %v821
  %826 = vrot.lane.b32.xlu0 %v824, 64
  %v827 = vpop.permute.xlu0 %826
  %v829 = vsel %vm165, %v827, 0
  %831 = vmatprep.subr.bf16.mxu0 0
  %832 = vmatpush1.bf16.msra.mxu0 0
  %833 = vmatprep.subr.bf16.mxu0 0
  %834 = vmatpush1.bf16.msra.mxu0 0
  %835 = vmatprep.subr.bf16.mxu0 0
  %836 = vmatpush1.bf16.msra.mxu0 0
  %837 = vmatprep.subr.bf16.mxu0 0
  %838 = vmatpush1.bf16.msra.mxu0 0
  %839 = vmatprep.subr.bf16.mxu0 0
  %840 = vmatpush1.bf16.msra.mxu0 0
  %841 = vmatprep.subr.bf16.mxu0 0
  %842 = vmatpush1.bf16.msra.mxu0 0
  %843 = vmatprep.subr.bf16.mxu0 0
  %844 = vmatpush1.bf16.msra.mxu0 %v343
  %845 = vmatprep.subr.bf16.mxu0 0
  %846 = vmatpush1.bf16.msra.mxu0 %v342
  %847 = vmatprep.subr.bf16.mxu0 0
  %848 = vmatpush2.bf16.msra.mxu0 0
  %849 = vmatprep.subr.bf16.mxu0 0
  %850 = vmatpush2.bf16.msra.mxu0 0
  %851 = vmatprep.subr.bf16.mxu0 0
  %852 = vmatpush2.bf16.msra.mxu0 0
  %853 = vmatprep.subr.bf16.mxu0 0
  %854 = vmatpush2.bf16.msra.mxu0 0
  %855 = vmatprep.subr.bf16.mxu0 0
  %856 = vmatpush2.bf16.msra.mxu0 0
  %857 = vmatprep.subr.bf16.mxu0 0
  %858 = vmatpush2.bf16.msra.mxu0 0
  %859 = vmatprep.subr.bf16.mxu0 0
  %860 = vmatpush2.bf16.msra.mxu0 0
  %861 = vmatprep.subr.bf16.mxu0 0
  %862 = vmatpush2.bf16.msra.mxu0 0
  %863 = vmatprep.mubr.bf16.mxu0 0
  %864 = vmatmul.mubr.bf16.gmra.mxu0 %v829
  %v865 = vpop.f32.mrf.mxu0
  %v866 = vadd.f32 0.0, %v865
  %v867 = vpop.f32.mrf.mxu0
  %v868 = vpop.f32.mrf.mxu0
  %v869 = vpop.f32.mrf.mxu0
  %870 = vdwg.mxu0
  %v871 = vadd.f32 %v823, %v866
  %v872 = vxor.u32 %v871, 2147483648
  %v873 = vmul.f32 %v872, 1.442695
  %v874 = vpow.pop %v873
  %v875 = vadd.f32 %v874, 1.0
  %v876 = vrcp.pop %v875
  %v877 = vmul.f32 1.0, %v876
  %v878 = vadd.f32 %v866, %v402
  %880 = vrot.lane.b32.xlu0 %v878, 64
  %v881 = vpop.permute.xlu0 %880
  %v883 = vmul.f32 %v877, %v881
  %885 = vrot.lane.b32.xlu0 %v883, 64
  %v886 = vpop.permute.xlu0 %885
  %v888 = vadd.f32 %v823, %v886
  %v889 = vtanh.pop %v888
  %v890 = vsub.f32 %v821, %v889
  %892 = vrot.lane.b32.xlu0 %v890, 96
  %v893 = vpop.permute.xlu0 %892
  %v895 = vmul.f32 %v877, %v893
  %897 = vrot.lane.b32.xlu0 %v895, 32
  %v898 = vpop.permute.xlu0 %897
  %v900 = vadd.f32 %v889, %v898
  %s901 = scalar_lea.vmem [#allocation2], 14
  %v902 = vld [vmem:[%s901] sm:$0x3]
  %v903 = vpack.c.bf16 %v900, %v900
  %905 = vrot.lane.b32.xlu0 %v903, 64
  %v906 = vpop.permute.xlu0 %905
  %v908 = vsel %vm165, %v906, 0
  %910 = vmatprep.subr.bf16.mxu0 0
  %911 = vmatpush1.bf16.msra.mxu0 0
  %912 = vmatprep.subr.bf16.mxu0 0
  %913 = vmatpush1.bf16.msra.mxu0 0
  %914 = vmatprep.subr.bf16.mxu0 0
  %915 = vmatpush1.bf16.msra.mxu0 0
  %916 = vmatprep.subr.bf16.mxu0 0
  %917 = vmatpush1.bf16.msra.mxu0 0
  %918 = vmatprep.subr.bf16.mxu0 0
  %919 = vmatpush1.bf16.msra.mxu0 0
  %920 = vmatprep.subr.bf16.mxu0 0
  %921 = vmatpush1.bf16.msra.mxu0 0
  %922 = vmatprep.subr.bf16.mxu0 0
  %923 = vmatpush1.bf16.msra.mxu0 %v343
  %924 = vmatprep.subr.bf16.mxu0 0
  %925 = vmatpush1.bf16.msra.mxu0 %v342
  %926 = vmatprep.subr.bf16.mxu0 0
  %927 = vmatpush2.bf16.msra.mxu0 0
  %928 = vmatprep.subr.bf16.mxu0 0
  %929 = vmatpush2.bf16.msra.mxu0 0
  %930 = vmatprep.subr.bf16.mxu0 0
  %931 = vmatpush2.bf16.msra.mxu0 0
  %932 = vmatprep.subr.bf16.mxu0 0
  %933 = vmatpush2.bf16.msra.mxu0 0
  %934 = vmatprep.subr.bf16.mxu0 0
  %935 = vmatpush2.bf16.msra.mxu0 0
  %936 = vmatprep.subr.bf16.mxu0 0
  %937 = vmatpush2.bf16.msra.mxu0 0
  %938 = vmatprep.subr.bf16.mxu0 0
  %939 = vmatpush2.bf16.msra.mxu0 0
  %940 = vmatprep.subr.bf16.mxu0 0
  %941 = vmatpush2.bf16.msra.mxu0 0
  %942 = vmatprep.mubr.bf16.mxu0 0
  %943 = vmatmul.mubr.bf16.gmra.mxu0 %v908
  %v944 = vpop.f32.mrf.mxu0
  %v945 = vadd.f32 0.0, %v944
  %v946 = vpop.f32.mrf.mxu0
  %v947 = vpop.f32.mrf.mxu0
  %v948 = vpop.f32.mrf.mxu0
  %949 = vdwg.mxu0
  %v950 = vadd.f32 %v902, %v945
  %v951 = vxor.u32 %v950, 2147483648
  %v952 = vmul.f32 %v951, 1.442695
  %v953 = vpow.pop %v952
  %v954 = vadd.f32 %v953, 1.0
  %v955 = vrcp.pop %v954
  %v956 = vmul.f32 1.0, %v955
  %v957 = vadd.f32 %v945, %v402
  %959 = vrot.lane.b32.xlu0 %v957, 64
  %v960 = vpop.permute.xlu0 %959
  %v962 = vmul.f32 %v956, %v960
  %964 = vrot.lane.b32.xlu0 %v962, 64
  %v965 = vpop.permute.xlu0 %964
  %v967 = vadd.f32 %v902, %v965
  %v968 = vtanh.pop %v967
  %v969 = vsub.f32 %v900, %v968
  %971 = vrot.lane.b32.xlu0 %v969, 96
  %v972 = vpop.permute.xlu0 %971
  %v974 = vmul.f32 %v956, %v972
  %976 = vrot.lane.b32.xlu0 %v974, 32
  %v977 = vpop.permute.xlu0 %976
  %v979 = vadd.f32 %v968, %v977
  %s980 = scalar_lea.vmem %s0, 14
  %v981 = vld [vmem:[%s980] sm:$0x3]
  %v982 = vpack.c.bf16 %v981, %v981
  %s983 = scalar_lea.vmem %s0, 30
  %v984 = vld [vmem:[%s983] sm:$0x3]
  %v985 = vpack.c.bf16 %v984, %v984
  %v986 = vld [vmem:[%s5] sm:$0xf]
  %v987 = vld [vmem:[%s5 + $0x4] sm:$0xf]
  %v988 = vld [vmem:[%s5 + $0x8] sm:$0xf]
  %v989 = vld [vmem:[%s5 + $0xc] sm:$0xf]
  %v990 = vld [vmem:[%s5 + $0x10] sm:$0xf]
  %v991 = vld [vmem:[%s5 + $0x14] sm:$0xf]
  %v992 = vld [vmem:[%s5 + $0x18] sm:$0xf]
  %v993 = vld [vmem:[%s5 + $0x1c] sm:$0xf]
  %v998 = vunpack.c.l.b16 %v990
  %v999 = vunpack.c.l.b16 %v991
  %v1000 = vunpack.c.l.b16 %v992
  %v1001 = vunpack.c.l.b16 %v993
  %v1002 = vpack.c.b16 %v999, %v998
  %v1003 = vpack.c.b16 %v1001, %v1000
  %v1007 = vsel %vm165, %v985, 0
  %1009 = vmatprep.subr.bf16.mxu0 0
  %1010 = vmatpush1.bf16.msra.mxu0 0
  %1011 = vmatprep.subr.bf16.mxu0 0
  %1012 = vmatpush1.bf16.msra.mxu0 0
  %1013 = vmatprep.subr.bf16.mxu0 0
  %1014 = vmatpush1.bf16.msra.mxu0 0
  %1015 = vmatprep.subr.bf16.mxu0 0
  %1016 = vmatpush1.bf16.msra.mxu0 0
  %1017 = vmatprep.subr.bf16.mxu0 0
  %1018 = vmatpush1.bf16.msra.mxu0 0
  %1019 = vmatprep.subr.bf16.mxu0 0
  %1020 = vmatpush1.bf16.msra.mxu0 0
  %1021 = vmatprep.subr.bf16.mxu0 0
  %1022 = vmatpush1.bf16.msra.mxu0 %v1003
  %1023 = vmatprep.subr.bf16.mxu0 0
  %1024 = vmatpush1.bf16.msra.mxu0 %v1002
  %1025 = vmatprep.subr.bf16.mxu0 0
  %1026 = vmatpush2.bf16.msra.mxu0 0
  %1027 = vmatprep.subr.bf16.mxu0 0
  %1028 = vmatpush2.bf16.msra.mxu0 0
  %1029 = vmatprep.subr.bf16.mxu0 0
  %1030 = vmatpush2.bf16.msra.mxu0 0
  %1031 = vmatprep.subr.bf16.mxu0 0
  %1032 = vmatpush2.bf16.msra.mxu0 0
  %1033 = vmatprep.subr.bf16.mxu0 0
  %1034 = vmatpush2.bf16.msra.mxu0 0
  %1035 = vmatprep.subr.bf16.mxu0 0
  %1036 = vmatpush2.bf16.msra.mxu0 0
  %1037 = vmatprep.subr.bf16.mxu0 0
  %1038 = vmatpush2.bf16.msra.mxu0 0
  %1039 = vmatprep.subr.bf16.mxu0 0
  %1040 = vmatpush2.bf16.msra.mxu0 0
  %1041 = vmatprep.mubr.bf16.mxu0 0
  %1042 = vmatmul.mubr.bf16.gmra.mxu0 %v1007
  %v1043 = vpop.f32.mrf.mxu0
  %v1044 = vadd.f32 0.0, %v1043
  %v1045 = vpop.f32.mrf.mxu0
  %v1046 = vpop.f32.mrf.mxu0
  %v1047 = vpop.f32.mrf.mxu0
  %1048 = vdwg.mxu0
  %v1053 = vunpack.c.l.b16 %v986
  %v1054 = vunpack.c.l.b16 %v987
  %v1055 = vunpack.c.l.b16 %v988
  %v1056 = vunpack.c.l.b16 %v989
  %v1057 = vpack.c.b16 %v1054, %v1053
  %v1058 = vpack.c.b16 %v1056, %v1055
  %v1062 = vsel %vm165, %v982, 0
  %1064 = vmatprep.subr.bf16.mxu0 0
  %1065 = vmatpush1.bf16.msra.mxu0 0
  %1066 = vmatprep.subr.bf16.mxu0 0
  %1067 = vmatpush1.bf16.msra.mxu0 0
  %1068 = vmatprep.subr.bf16.mxu0 0
  %1069 = vmatpush1.bf16.msra.mxu0 0
  %1070 = vmatprep.subr.bf16.mxu0 0
  %1071 = vmatpush1.bf16.msra.mxu0 0
  %1072 = vmatprep.subr.bf16.mxu0 0
  %1073 = vmatpush1.bf16.msra.mxu0 0
  %1074 = vmatprep.subr.bf16.mxu0 0
  %1075 = vmatpush1.bf16.msra.mxu0 0
  %1076 = vmatprep.subr.bf16.mxu0 0
  %1077 = vmatpush1.bf16.msra.mxu0 %v1058
  %1078 = vmatprep.subr.bf16.mxu0 0
  %1079 = vmatpush1.bf16.msra.mxu0 %v1057
  %1080 = vmatprep.subr.bf16.mxu0 0
  %1081 = vmatpush2.bf16.msra.mxu0 0
  %1082 = vmatprep.subr.bf16.mxu0 0
  %1083 = vmatpush2.bf16.msra.mxu0 0
  %1084 = vmatprep.subr.bf16.mxu0 0
  %1085 = vmatpush2.bf16.msra.mxu0 0
  %1086 = vmatprep.subr.bf16.mxu0 0
  %1087 = vmatpush2.bf16.msra.mxu0 0
  %1088 = vmatprep.subr.bf16.mxu0 0
  %1089 = vmatpush2.bf16.msra.mxu0 0
  %1090 = vmatprep.subr.bf16.mxu0 0
  %1091 = vmatpush2.bf16.msra.mxu0 0
  %1092 = vmatprep.subr.bf16.mxu0 0
  %1093 = vmatpush2.bf16.msra.mxu0 0
  %1094 = vmatprep.subr.bf16.mxu0 0
  %1095 = vmatpush2.bf16.msra.mxu0 0
  %1096 = vmatprep.mubr.bf16.mxu0 0
  %1097 = vmatmul.mubr.bf16.gmra.mxu0 %v1062
  %v1098 = vpop.f32.mrf.mxu0
  %v1099 = vadd.f32 %v1044, %v1098
  %v1100 = vpop.f32.mrf.mxu0
  %v1101 = vpop.f32.mrf.mxu0
  %v1102 = vpop.f32.mrf.mxu0
  %1103 = vdwg.mxu0
  %v1104 = vld [vmem:[%s6] sm:$0x1]
  %v1106 = vlaneseq
  %v1107 = vshrl.u32 %v1106, 7
  %v1108 = vsub.s32 0, %v1107
  %v1109 = vrot.slane %v1104, %v1108
  %v1111 = vadd.f32 %v1099, %v1109
  %v1112 = vxor.u32 %v1111, 2147483648
  %v1113 = vmul.f32 %v1112, 1.442695
  %v1114 = vpow.pop %v1113
  %v1115 = vadd.f32 %v1114, 1.0
  %v1116 = vrcp.pop %v1115
  %v1117 = vmul.f32 1.0, %v1116
  %v1118 = vld [vmem:[%s7] sm:$0x1]
  %v1120 = vlaneseq
  %v1121 = vshrl.u32 %v1120, 7
  %v1122 = vsub.s32 0, %v1121
  %v1123 = vrot.slane %v1118, %v1122
  %v1125 = vmul.f32 %v1117, %v1123
  %1127 = vrot.lane.b32.xlu0 %v1125, 64
  %v1128 = vpop.permute.xlu0 %1127
  %v1130 = vadd.f32 %v1111, %v1128
  %v1131 = vtanh.pop %v1130
  %1133 = vrot.lane.b32.xlu0 %v1131, 96
  %v1134 = vpop.permute.xlu0 %1133
  %v1136 = vmul.f32 %v1117, %v1134
  %1138 = vrot.lane.b32.xlu0 %v1136, 32
  %v1139 = vpop.permute.xlu0 %1138
  %v1141 = vsub.f32 %v1131, %v1139
  %v1142 = vld [vmem:[%s8] sm:$0x1]
  %v1144 = vlaneseq
  %v1145 = vshrl.u32 %v1144, 7
  %v1146 = vsub.s32 0, %v1145
  %v1147 = vrot.slane %v1142, %v1146
  %1148 = vrot.lane.b32.xlu0 %v1147, 64
  %v1149 = vpop.permute.xlu0 %1148
  %v1151 = vmul.f32 %v979, %v1149
  %1153 = vrot.lane.b32.xlu0 %v1151, 64
  %v1154 = vpop.permute.xlu0 %1153
  %vm1156 = vcmask 254976
  %v1157 = vsel %vm1156, %v1154, 0.0
  %1158 = vadd.xlane.f32.xlu0 %v1157
  %v1159 = vpop.xlane.xlu0 %1158
  %1160 = vrot.lane.b32.xlu0 %v1147, 32
  %v1161 = vpop.permute.xlu0 %1160
  %v1163 = vmul.f32 %v1141, %v1161
  %1165 = vrot.lane.b32.xlu0 %v1163, 64
  %v1166 = vpop.permute.xlu0 %1165
  %v1168 = vsel %vm1156, %v1166, 0.0
  %1169 = vadd.xlane.f32.xlu0 %v1168
  %v1170 = vpop.xlane.xlu0 %1169
  %v1171 = vadd.f32 %v1159, %v1170
  %v1172 = vld [vmem:[#allocation3] sm:$0x1]
  %v1174 = vlaneseq
  %v1175 = vshrl.u32 %v1174, 7
  %v1176 = vsub.s32 0, %v1175
  %v1177 = vrot.slane %v1172, %v1176
  %v1179 = vadd.f32 %v1171, %v1177
  %vm1180 = vcmask 1024
  %1181 = vst.msk [vmem:[%s10] sm:$0x3] %vm1180, %v1179
  // Predicated region
  $region42: #{_lambda_.3} parent=0 // pred_check
    _
  $region43: #{_lambda_.3} parent=0 // pred_check_branch
    %1183 = sbr.rel (0) target = $region45
  $region44: #{_lambda_.3} parent=0 // pred_region
    _
  $region45: #{_lambda_.3} parent=0 // pred_fallthru
    _
  // Predicated region
  $region46: #{_lambda_.3} parent=0 // pred_check
    _
  $region47: #{_lambda_.3} parent=0 // pred_check_branch
    %1185 = sbr.rel (0) target = $region49
  $region48: #{_lambda_.3} parent=0 // pred_region
    _
  $region49: #{_lambda_.3} parent=0 // pred_fallthru
    _

</llo_original>
